<compile_context>
chip_gen: v6e
topology: v6e:2x2x1
jax: 0.10.0
libtpu: 0.0.40
codegen_flags: <defaults>
</compile_context>

<pallas_src>
import functools

import jax
import jax.numpy as jnp
from jax import lax
from jax.experimental import pallas as pl
from jax.experimental.pallas import tpu as pltpu

EMBED = 128        # embed_dims
IN_DIM = 11        # 3 (xyz) + 3 (scale) + 4 (rot) + 1 (opacity)
N_BRANCH = 4
BRANCH_DIMS = (3, 3, 4, 1)
LN_EPS = 1e-5      # PyTorch nn.LayerNorm default eps

_HI = jax.lax.Precision.HIGHEST   # host-side folding / reference precision


# ----------------------------- kernel ------------------------------------- #

def _encoder_kernel(box_ref, w1_ref, w2s_ref, bvec_ref, wo1_ref, wo2_ref,
                    ovec_ref, out_ref, *, ln_stats_on_mxu):
    x = box_ref[...]                                              # (TM, 11) f32

    # Fused first layer of all 4 branches: one (TM,11)@(11,4E) matmul.
    h1 = jnp.dot(x, w1_ref[...], preferred_element_type=jnp.float32)  # (TM, 4E)

    if ln_stats_on_mxu:
        # Constant 1/E matrix: dot(x, stat_m) returns the row mean already
        # broadcast across all 128 lanes (no XLU reduce, no lane broadcast).
        stat_m = jnp.full((EMBED, EMBED), 1.0 / EMBED, dtype=jnp.float32)
    else:
        stat_m = None

    def ln_norm(h):
        # LayerNorm WITHOUT affine (affine is folded into the next matmul /
        # kept explicitly by the caller where needed).
        if ln_stats_on_mxu:
            mu = jnp.dot(h, stat_m, preferred_element_type=jnp.float32)
            ms = jnp.dot(h * h, stat_m, preferred_element_type=jnp.float32)
        else:
            mu = jnp.mean(h, axis=-1, keepdims=True)
            ms = jnp.mean(h * h, axis=-1, keepdims=True)
        return (h - mu) * lax.rsqrt(ms - mu * mu + LN_EPS)

    acc = None
    for i in range(N_BRANCH):
        b1 = bvec_ref[3 * i + 0]                                  # (E,)
        b2 = bvec_ref[3 * i + 1]                                  # (E,) folded
        g2 = bvec_ref[3 * i + 2]                                  # (E,)
        h = jnp.maximum(h1[:, i * EMBED:(i + 1) * EMBED] + b1, 0.0)
        h = ln_norm(h)                               # LN1 affine folded into W2'
        w2 = w2s_ref[i]                              # (E, E), f32 or bf16
        h = jnp.dot(h.astype(w2.dtype), w2,
                    preferred_element_type=jnp.float32) + b2
        h = ln_norm(jnp.maximum(h, 0.0)) * g2        # LN2 beta folded into bo1'
        acc = h if acc is None else acc + h          # (TM, E) f32

    # output_fc on the summed features.
    bo1, bo2, go2, beo2 = (ovec_ref[0], ovec_ref[1], ovec_ref[2], ovec_ref[3])
    wo1 = wo1_ref[...]
    h = jnp.dot(acc.astype(wo1.dtype), wo1,
                preferred_element_type=jnp.float32) + bo1
    h = ln_norm(jnp.maximum(h, 0.0))                 # LN1 affine folded into Wo2'
    wo2 = wo2_ref[...]
    h = jnp.dot(h.astype(wo2.dtype), wo2,
                preferred_element_type=jnp.float32) + bo2
    h = ln_norm(jnp.maximum(h, 0.0)) * go2 + beo2    # final LN keeps its affine
    out_ref[...] = h.astype(out_ref.dtype)


# ----------------------------- wrapper ------------------------------------ #

_TILE_CANDIDATES = (2048, 1024, 512, 256, 128, 64)
_STEP_OVERHEAD_ROWS = 64   # ~0.35us/grid-step pipeline overhead in row-equivalents


def _choose_tile_m(n):
    """Pick TILE_M minimizing per-TensorCore latency.

    Model: 2 TensorCores (v7x megacore) split the grid, each grid step costs
    ~0.35us of pipeline overhead.  This prefers large tiles for big N (1024 /
    2048), balanced even grids on v7x, and avoids the old fallback's up-to-50%
    tail padding with single-step grids.  Harmless (slightly conservative) on
    the single-core v5e / v6e.
    """
    best_t, best_score = _TILE_CANDIDATES[0], None
    for t in _TILE_CANDIDATES:
        g = pl.cdiv(n, t)
        per_core_rows = pl.cdiv(g, 2) * t
        score = per_core_rows + g * _STEP_OVERHEAD_ROWS
        if best_score is None or score < best_score:
            best_t, best_score = t, score
    return best_t


def sparse_gaussian_3d_encode(box_3d, packed, *, tile_m=None,
                              ln_stats_on_mxu=False, out_dtype=jnp.float32):
    lead = box_3d.shape[:-1]
    box = box_3d.reshape(-1, IN_DIM).astype(jnp.float32)
    n = box.shape[0]
    if tile_m is None:
        tile_m = _choose_tile_m(n)
    assert tile_m % 8 == 0, tile_m
    n_pad = pl.cdiv(n, tile_m) * tile_m
    if n_pad != n:
        box = jnp.pad(box, ((0, n_pad - n), (0, 0)))   # padded rows sliced off below
    grid = (n_pad // tile_m,)

    param_order = ("w1cat", "w2s", "bvec", "wo1", "wo2", "ovec")
    param_arrays = [packed[k] for k in param_order]

    def _const_spec(shape):
        # Constant index map: the pipeline DMAs these once (weights stay
        # resident in VMEM across grid steps).  Single-buffering them would
        # save ~200 KiB VMEM; not needed with the 48 MiB limit below.
        nd = len(shape)
        return pl.BlockSpec(shape, lambda i, _nd=nd: (0,) * _nd)

    in_specs = [pl.BlockSpec((tile_m, IN_DIM), lambda i: (i, 0))]
    in_specs += [_const_spec(p.shape) for p in param_arrays]

    kernel = functools.partial(_encoder_kernel, ln_stats_on_mxu=ln_stats_on_mxu)

    out = pl.pallas_call(
        kernel,
        out_shape=jax.ShapeDtypeStruct((n_pad, EMBED), out_dtype),
        grid=grid,
        in_specs=in_specs,
        out_specs=pl.BlockSpec((tile_m, EMBED), lambda i: (i, 0)),
        compiler_params=pltpu.CompilerParams(
            dimension_semantics=("parallel",),
            vmem_limit_bytes=48 * 1024 * 1024),
    )(box, *param_arrays)

    if n_pad != n:
        out = out[:n]
    return out.reshape(*lead, EMBED)


# ------------------------- parameters & packing ---------------------------- #

def init_params(key):
    """Deterministic synthetic parameters in the torch module's natural layout."""
    keys = iter(jax.random.split(key, 64))

    def nk():
        return next(keys)

    def make_block(in_dim):
        return {
            "w1": 0.2 * jax.random.normal(nk(), (in_dim, EMBED), jnp.float32),
            "b1": 0.05 * jax.random.normal(nk(), (EMBED,), jnp.float32),
            "g1": 1.0 + 0.05 * jax.random.normal(nk(), (EMBED,), jnp.float32),
            "be1": 0.05 * jax.random.normal(nk(), (EMBED,), jnp.float32),
            "w2": 0.05 * jax.random.normal(nk(), (EMBED, EMBED), jnp.float32),
            "b2": 0.05 * jax.random.normal(nk(), (EMBED,), jnp.float32),
            "g2": 1.0 + 0.05 * jax.random.normal(nk(), (EMBED,), jnp.float32),
            "be2": 0.05 * jax.random.normal(nk(), (EMBED,), jnp.float32),
        }

    return {
        "branches": [make_block(d) for d in BRANCH_DIMS],   # xyz, scale, rot, opacity
        "output": make_block(EMBED),
    }


def pack_params(P, weights_dtype=jnp.bfloat16):
    """Pack natural-layout params into the kernel's consolidated arrays.

    Performs the exact LayerNorm-affine folding described at the top of the
    file (host side, high precision), so the kernel only needs:
      w1cat (11,4E) f32, w2s' (4,E,E), bvec (12,E)=[b1,b2',g2]x4 f32,
      wo1 (E,E), wo2' (E,E), ovec (4,E)=[bo1',bo2',go2,beo2] f32.
    bf16 weights are the default (MXU-native on v5e/v6e/v7x); pass
    weights_dtype=jnp.float32 for the high-accuracy validation path.
    """
    w1cat = jnp.zeros((IN_DIM, N_BRANCH * EMBED), jnp.float32)
    bvec_rows, w2s = [], []
    be2_sum = jnp.zeros((EMBED,), jnp.float32)
    off = 0
    for i, br in enumerate(P["branches"]):
        d = br["w1"].shape[0]
        # Block placement == slicing box_3d per branch (all other rows are 0).
        w1cat = w1cat.at[off:off + d, i * EMBED:(i + 1) * EMBED].set(br["w1"])
        off += d
        w2p = br["g1"][:, None] * br["w2"]                           # diag(g1) @ W2
        b2p = br["b2"] + jnp.dot(br["be1"], br["w2"], precision=_HI)  # be1 @ W2
        w2s.append(w2p)
        bvec_rows.append(jnp.stack([br["b1"], b2p, br["g2"]]))
        be2_sum = be2_sum + br["be2"]

    O = P["output"]
    bo1p = O["b1"] + jnp.dot(be2_sum, O["w1"], precision=_HI)        # sum(be2) @ Wo1
    wo2p = O["g1"][:, None] * O["w2"]                                # diag(go1) @ Wo2
    bo2p = O["b2"] + jnp.dot(O["be1"], O["w2"], precision=_HI)       # beo1 @ Wo2
    ovec = jnp.stack([bo1p, bo2p, O["g2"], O["be2"]])

    return {
        "w1cat": w1cat,                                    # (11, 4E) f32 (K=11: keep f32)
        "w2s": jnp.stack(w2s).astype(weights_dtype),       # (4, E, E) folded
        "bvec": jnp.concatenate(bvec_rows, axis=0),        # (12, E) f32
        "wo1": O["w1"].astype(weights_dtype),              # (E, E)
        "wo2": wo2p.astype(weights_dtype),                 # (E, E) folded
        "ovec": ovec,                                      # (4, E) f32
    }


# ------------------------------ reference ---------------------------------- #

def _ln_ref(x, g, b):
    mu = jnp.mean(x, axis=-1, keepdims=True)
    xc = x - mu
    var = jnp.mean(xc * xc, axis=-1, keepdims=True)
    return xc * lax.rsqrt(var + LN_EPS) * g + b


def _branch_ref(x, p):
    h = jnp.maximum(jnp.dot(x, p["w1"], precision=_HI) + p["b1"], 0.0)
    h = _ln_ref(h, p["g1"], p["be1"])
    h = jnp.maximum(jnp.dot(h, p["w2"], precision=_HI) + p["b2"], 0.0)
    return _ln_ref(h, p["g2"], p["be2"])


def reference_forward(box_3d, P):
    """Pure-JAX f32 (HIGHEST matmul precision) reference mirroring the PyTorch forward."""
    lead = box_3d.shape[:-1]
    x = box_3d.reshape(-1, IN_DIM).astype(jnp.float32)
    acc = jnp.zeros((x.shape[0], EMBED), jnp.float32)
    off = 0
    for br, d in zip(P["branches"], BRANCH_DIMS):
        acc = acc + _branch_ref(x[:, off:off + d], br)
        off += d
    out = _branch_ref(acc, P["output"])
    return out.reshape(*lead, EMBED)


# --------------------------------- main ------------------------------------ #

if __name__ == "__main__":
    key = jax.random.PRNGKey(0)
    kp, kx, kr = jax.random.split(key, 3)
    P = init_params(kp)

    # box_3d: (batch=2, num_anchors=128, 11) -> N=256 rows (tile 128, grid 2).
    box_3d = jax.random.normal(kx, (2, 128, IN_DIM), jnp.float32)
    ref = reference_forward(box_3d, P)

    # 1) f32-weights validation path (XLU LayerNorm reductions).
    #    The LN-affine folding is exact; residual error vs. the HIGHEST-precision
    #    reference is bounded by the TPU's default in-kernel f32 matmul precision.
    out_f32 = jax.block_until_ready(
        sparse_gaussian_3d_encode(box_3d, pack_params(P, jnp.float32)))
    assert out_f32.shape == (2, 128, EMBED), out_f32.shape
    assert bool(jnp.all(jnp.isfinite(out_f32)))
    err = jnp.abs(out_f32 - ref)
    assert float(err.max()) < 5e-2 and float(err.mean()) < 1e-2, \
        (float(err.max()), float(err.mean()))

    # 2) Ragged N (padding path) + LN-stats-on-MXU experiment, f32 weights.
    box_rag = jax.random.normal(kr, (3, 67, IN_DIM), jnp.float32)   # N=201
    ref_rag = reference_forward(box_rag, P)
    out_rag = jax.block_until_ready(
        sparse_gaussian_3d_encode(box_rag, pack_params(P, jnp.float32),
                                  ln_stats_on_mxu=True))
    assert out_rag.shape == (3, 67, EMBED), out_rag.shape
    assert bool(jnp.all(jnp.isfinite(out_rag)))
    err_rag = jnp.abs(out_rag - ref_rag)
    assert float(err_rag.max()) < 1e-1 and float(err_rag.mean()) < 2e-2, \
        (float(err_rag.max()), float(err_rag.mean()))

    # 3) Production config: bf16 weights (pack_params default) + bf16 output.
    out_bf16 = jax.block_until_ready(
        sparse_gaussian_3d_encode(box_3d, pack_params(P),
                                  out_dtype=jnp.bfloat16))
    assert out_bf16.dtype == jnp.bfloat16
    out_bf16_f32 = out_bf16.astype(jnp.float32)
    assert bool(jnp.all(jnp.isfinite(out_bf16_f32)))
    err_b = jnp.abs(out_bf16_f32 - ref)
    assert float(err_b.max()) < 0.5 and float(err_b.mean()) < 5e-2, \
        (float(err_b.max()), float(err_b.mean()))

    print("KERNEL_OK")
</pallas_src>

<mosaic_0001>
module attributes {stable_mosaic.version = 11 : i64} {
  func.func @_encoder_kernel(%arg0: i32, %arg1: memref<128x11xf32, #tpu.memory_space<vmem>>, %arg2: memref<11x512xf32, #tpu.memory_space<vmem>>, %arg3: memref<4x128x128xf32, #tpu.memory_space<vmem>>, %arg4: memref<12x128xf32, #tpu.memory_space<vmem>>, %arg5: memref<128x128xf32, #tpu.memory_space<vmem>>, %arg6: memref<128x128xf32, #tpu.memory_space<vmem>>, %arg7: memref<4x128xf32, #tpu.memory_space<vmem>>, %arg8: memref<128x128xf32, #tpu.memory_space<vmem>>) attributes {dimension_semantics = [#tpu.dimension_semantics<parallel>], iteration_bounds = array<i64: 2>, scalar_prefetch = 0 : i64, scratch_operands = 0 : i64, tpu.core_type = #tpu.core_type<tc>, window_params = [{transform_indices = @transform_0, window_bounds = array<i64: 128, 11>}, {pipeline_mode = #tpu.pipeline_mode<synchronous>, transform_indices = @transform_1, window_bounds = array<i64: 11, 512>}, {pipeline_mode = #tpu.pipeline_mode<synchronous>, transform_indices = @transform_2, window_bounds = array<i64: 4, 128, 128>}, {pipeline_mode = #tpu.pipeline_mode<synchronous>, transform_indices = @transform_3, window_bounds = array<i64: 12, 128>}, {pipeline_mode = #tpu.pipeline_mode<synchronous>, transform_indices = @transform_4, window_bounds = array<i64: 128, 128>}, {pipeline_mode = #tpu.pipeline_mode<synchronous>, transform_indices = @transform_5, window_bounds = array<i64: 128, 128>}, {pipeline_mode = #tpu.pipeline_mode<synchronous>, transform_indices = @transform_6, window_bounds = array<i64: 4, 128>}, {transform_indices = @transform_7, window_bounds = array<i64: 128, 128>}]} {
    %c0 = arith.constant 0 : index
    %c0_0 = arith.constant 0 : index
    %0 = vector.load %arg1[%c0, %c0_0] : memref<128x11xf32, #tpu.memory_space<vmem>>, vector<128x11xf32>
    %c0_1 = arith.constant 0 : index
    %c0_2 = arith.constant 0 : index
    %1 = vector.load %arg2[%c0_1, %c0_2] : memref<11x512xf32, #tpu.memory_space<vmem>>, vector<11x512xf32>
    %cst = arith.constant dense<0.000000e+00> : vector<128x512xf32>
    %2 = tpu.matmul %0, %1, %cst {dimension_numbers = #tpu.dot_dimension_numbers<[1], [0], [0], [1], [0, 0, 1, 1], [], []>} : vector<128x11xf32>, vector<11x512xf32>, vector<128x512xf32> -> vector<128x512xf32>
    %c0_3 = arith.constant 0 : index
    %c0_4 = arith.constant 0 : index
    %3 = vector.load %arg4[%c0_3, %c0_4] : memref<12x128xf32, #tpu.memory_space<vmem>>, vector<1x128xf32>
    %4 = vector.shape_cast %3 : vector<1x128xf32> to vector<128xf32>
    %c1 = arith.constant 1 : index
    %c0_5 = arith.constant 0 : index
    %5 = vector.load %arg4[%c1, %c0_5] : memref<12x128xf32, #tpu.memory_space<vmem>>, vector<1x128xf32>
    %6 = vector.shape_cast %5 : vector<1x128xf32> to vector<128xf32>
    %c2 = arith.constant 2 : index
    %c0_6 = arith.constant 0 : index
    %7 = vector.load %arg4[%c2, %c0_6] : memref<12x128xf32, #tpu.memory_space<vmem>>, vector<1x128xf32>
    %8 = vector.shape_cast %7 : vector<1x128xf32> to vector<128xf32>
    %9 = vector.extract_strided_slice %2 {offsets = [0, 0], sizes = [128, 128], strides = [1, 1]} : vector<128x512xf32> to vector<128x128xf32>
    %10 = vector.shape_cast %4 : vector<128xf32> to vector<1x128xf32>
    %11 = vector.broadcast %10 : vector<1x128xf32> to vector<128x128xf32>
    %12 = arith.addf %9, %11 : vector<128x128xf32>
    %cst_7 = arith.constant 0.000000e+00 : f32
    %13 = vector.broadcast %cst_7 : f32 to vector<128x128xf32>
    %14 = arith.maximumf %12, %13 : vector<128x128xf32>
    %cst_8 = arith.constant dense<0.000000e+00> : vector<128xf32>
    %15 = vector.multi_reduction <add>, %14, %cst_8 [1] : vector<128x128xf32> to vector<128xf32>
    %16 = vector.shape_cast %15 : vector<128xf32> to vector<128x1xf32>
    %cst_9 = arith.constant 1.280000e+02 : f32
    %17 = vector.broadcast %cst_9 : f32 to vector<128x1xf32>
    %18 = arith.divf %16, %17 : vector<128x1xf32>
    %19 = arith.mulf %14, %14 : vector<128x128xf32>
    %cst_10 = arith.constant dense<0.000000e+00> : vector<128xf32>
    %20 = vector.multi_reduction <add>, %19, %cst_10 [1] : vector<128x128xf32> to vector<128xf32>
    %21 = vector.shape_cast %20 : vector<128xf32> to vector<128x1xf32>
    %cst_11 = arith.constant 1.280000e+02 : f32
    %22 = vector.broadcast %cst_11 : f32 to vector<128x1xf32>
    %23 = arith.divf %21, %22 : vector<128x1xf32>
    %24 = vector.broadcast %18 : vector<128x1xf32> to vector<128x128xf32>
    %25 = arith.subf %14, %24 : vector<128x128xf32>
    %26 = arith.mulf %18, %18 : vector<128x1xf32>
    %27 = arith.subf %23, %26 : vector<128x1xf32>
    %cst_12 = arith.constant 9.99999974E-6 : f32
    %28 = vector.broadcast %cst_12 : f32 to vector<128x1xf32>
    %29 = arith.addf %27, %28 : vector<128x1xf32>
    %30 = math.rsqrt %29 : vector<128x1xf32>
    %31 = vector.broadcast %30 : vector<128x1xf32> to vector<128x128xf32>
    %32 = arith.mulf %25, %31 : vector<128x128xf32>
    %c0_13 = arith.constant 0 : index
    %c0_14 = arith.constant 0 : index
    %c0_15 = arith.constant 0 : index
    %33 = vector.load %arg3[%c0_13, %c0_14, %c0_15] : memref<4x128x128xf32, #tpu.memory_space<vmem>>, vector<1x128x128xf32>
    %34 = vector.shape_cast %33 : vector<1x128x128xf32> to vector<128x128xf32>
    %cst_16 = arith.constant dense<0.000000e+00> : vector<128x128xf32>
    %35 = tpu.matmul %32, %34, %cst_16 {dimension_numbers = #tpu.dot_dimension_numbers<[1], [0], [0], [1], [0, 0, 1, 1], [], []>} : vector<128x128xf32>, vector<128x128xf32>, vector<128x128xf32> -> vector<128x128xf32>
    %36 = vector.shape_cast %6 : vector<128xf32> to vector<1x128xf32>
    %37 = vector.broadcast %36 : vector<1x128xf32> to vector<128x128xf32>
    %38 = arith.addf %35, %37 : vector<128x128xf32>
    %cst_17 = arith.constant 0.000000e+00 : f32
    %39 = vector.broadcast %cst_17 : f32 to vector<128x128xf32>
    %40 = arith.maximumf %38, %39 : vector<128x128xf32>
    %cst_18 = arith.constant dense<0.000000e+00> : vector<128xf32>
    %41 = vector.multi_reduction <add>, %40, %cst_18 [1] : vector<128x128xf32> to vector<128xf32>
    %42 = vector.shape_cast %41 : vector<128xf32> to vector<128x1xf32>
    %cst_19 = arith.constant 1.280000e+02 : f32
    %43 = vector.broadcast %cst_19 : f32 to vector<128x1xf32>
    %44 = arith.divf %42, %43 : vector<128x1xf32>
    %45 = arith.mulf %40, %40 : vector<128x128xf32>
    %cst_20 = arith.constant dense<0.000000e+00> : vector<128xf32>
    %46 = vector.multi_reduction <add>, %45, %cst_20 [1] : vector<128x128xf32> to vector<128xf32>
    %47 = vector.shape_cast %46 : vector<128xf32> to vector<128x1xf32>
    %cst_21 = arith.constant 1.280000e+02 : f32
    %48 = vector.broadcast %cst_21 : f32 to vector<128x1xf32>
    %49 = arith.divf %47, %48 : vector<128x1xf32>
    %50 = vector.broadcast %44 : vector<128x1xf32> to vector<128x128xf32>
    %51 = arith.subf %40, %50 : vector<128x128xf32>
    %52 = arith.mulf %44, %44 : vector<128x1xf32>
    %53 = arith.subf %49, %52 : vector<128x1xf32>
    %cst_22 = arith.constant 9.99999974E-6 : f32
    %54 = vector.broadcast %cst_22 : f32 to vector<128x1xf32>
    %55 = arith.addf %53, %54 : vector<128x1xf32>
    %56 = math.rsqrt %55 : vector<128x1xf32>
    %57 = vector.broadcast %56 : vector<128x1xf32> to vector<128x128xf32>
    %58 = arith.mulf %51, %57 : vector<128x128xf32>
    %59 = vector.shape_cast %8 : vector<128xf32> to vector<1x128xf32>
    %60 = vector.broadcast %59 : vector<1x128xf32> to vector<128x128xf32>
    %61 = arith.mulf %58, %60 : vector<128x128xf32>
    %c3 = arith.constant 3 : index
    %c0_23 = arith.constant 0 : index
    %62 = vector.load %arg4[%c3, %c0_23] : memref<12x128xf32, #tpu.memory_space<vmem>>, vector<1x128xf32>
    %63 = vector.shape_cast %62 : vector<1x128xf32> to vector<128xf32>
    %c4 = arith.constant 4 : index
    %c0_24 = arith.constant 0 : index
    %64 = vector.load %arg4[%c4, %c0_24] : memref<12x128xf32, #tpu.memory_space<vmem>>, vector<1x128xf32>
    %65 = vector.shape_cast %64 : vector<1x128xf32> to vector<128xf32>
    %c5 = arith.constant 5 : index
    %c0_25 = arith.constant 0 : index
    %66 = vector.load %arg4[%c5, %c0_25] : memref<12x128xf32, #tpu.memory_space<vmem>>, vector<1x128xf32>
    %67 = vector.shape_cast %66 : vector<1x128xf32> to vector<128xf32>
    %68 = vector.extract_strided_slice %2 {offsets = [0, 128], sizes = [128, 128], strides = [1, 1]} : vector<128x512xf32> to vector<128x128xf32>
    %69 = vector.shape_cast %63 : vector<128xf32> to vector<1x128xf32>
    %70 = vector.broadcast %69 : vector<1x128xf32> to vector<128x128xf32>
    %71 = arith.addf %68, %70 : vector<128x128xf32>
    %cst_26 = arith.constant 0.000000e+00 : f32
    %72 = vector.broadcast %cst_26 : f32 to vector<128x128xf32>
    %73 = arith.maximumf %71, %72 : vector<128x128xf32>
    %cst_27 = arith.constant dense<0.000000e+00> : vector<128xf32>
    %74 = vector.multi_reduction <add>, %73, %cst_27 [1] : vector<128x128xf32> to vector<128xf32>
    %75 = vector.shape_cast %74 : vector<128xf32> to vector<128x1xf32>
    %cst_28 = arith.constant 1.280000e+02 : f32
    %76 = vector.broadcast %cst_28 : f32 to vector<128x1xf32>
    %77 = arith.divf %75, %76 : vector<128x1xf32>
    %78 = arith.mulf %73, %73 : vector<128x128xf32>
    %cst_29 = arith.constant dense<0.000000e+00> : vector<128xf32>
    %79 = vector.multi_reduction <add>, %78, %cst_29 [1] : vector<128x128xf32> to vector<128xf32>
    %80 = vector.shape_cast %79 : vector<128xf32> to vector<128x1xf32>
    %cst_30 = arith.constant 1.280000e+02 : f32
    %81 = vector.broadcast %cst_30 : f32 to vector<128x1xf32>
    %82 = arith.divf %80, %81 : vector<128x1xf32>
    %83 = vector.broadcast %77 : vector<128x1xf32> to vector<128x128xf32>
    %84 = arith.subf %73, %83 : vector<128x128xf32>
    %85 = arith.mulf %77, %77 : vector<128x1xf32>
    %86 = arith.subf %82, %85 : vector<128x1xf32>
    %cst_31 = arith.constant 9.99999974E-6 : f32
    %87 = vector.broadcast %cst_31 : f32 to vector<128x1xf32>
    %88 = arith.addf %86, %87 : vector<128x1xf32>
    %89 = math.rsqrt %88 : vector<128x1xf32>
    %90 = vector.broadcast %89 : vector<128x1xf32> to vector<128x128xf32>
    %91 = arith.mulf %84, %90 : vector<128x128xf32>
    %c1_32 = arith.constant 1 : index
    %c0_33 = arith.constant 0 : index
    %c0_34 = arith.constant 0 : index
    %92 = vector.load %arg3[%c1_32, %c0_33, %c0_34] : memref<4x128x128xf32, #tpu.memory_space<vmem>>, vector<1x128x128xf32>
    %93 = vector.shape_cast %92 : vector<1x128x128xf32> to vector<128x128xf32>
    %cst_35 = arith.constant dense<0.000000e+00> : vector<128x128xf32>
    %94 = tpu.matmul %91, %93, %cst_35 {dimension_numbers = #tpu.dot_dimension_numbers<[1], [0], [0], [1], [0, 0, 1, 1], [], []>} : vector<128x128xf32>, vector<128x128xf32>, vector<128x128xf32> -> vector<128x128xf32>
    %95 = vector.shape_cast %65 : vector<128xf32> to vector<1x128xf32>
    %96 = vector.broadcast %95 : vector<1x128xf32> to vector<128x128xf32>
    %97 = arith.addf %94, %96 : vector<128x128xf32>
    %cst_36 = arith.constant 0.000000e+00 : f32
    %98 = vector.broadcast %cst_36 : f32 to vector<128x128xf32>
    %99 = arith.maximumf %97, %98 : vector<128x128xf32>
    %cst_37 = arith.constant dense<0.000000e+00> : vector<128xf32>
    %100 = vector.multi_reduction <add>, %99, %cst_37 [1] : vector<128x128xf32> to vector<128xf32>
    %101 = vector.shape_cast %100 : vector<128xf32> to vector<128x1xf32>
    %cst_38 = arith.constant 1.280000e+02 : f32
    %102 = vector.broadcast %cst_38 : f32 to vector<128x1xf32>
    %103 = arith.divf %101, %102 : vector<128x1xf32>
    %104 = arith.mulf %99, %99 : vector<128x128xf32>
    %cst_39 = arith.constant dense<0.000000e+00> : vector<128xf32>
    %105 = vector.multi_reduction <add>, %104, %cst_39 [1] : vector<128x128xf32> to vector<128xf32>
    %106 = vector.shape_cast %105 : vector<128xf32> to vector<128x1xf32>
    %cst_40 = arith.constant 1.280000e+02 : f32
    %107 = vector.broadcast %cst_40 : f32 to vector<128x1xf32>
    %108 = arith.divf %106, %107 : vector<128x1xf32>
    %109 = vector.broadcast %103 : vector<128x1xf32> to vector<128x128xf32>
    %110 = arith.subf %99, %109 : vector<128x128xf32>
    %111 = arith.mulf %103, %103 : vector<128x1xf32>
    %112 = arith.subf %108, %111 : vector<128x1xf32>
    %cst_41 = arith.constant 9.99999974E-6 : f32
    %113 = vector.broadcast %cst_41 : f32 to vector<128x1xf32>
    %114 = arith.addf %112, %113 : vector<128x1xf32>
    %115 = math.rsqrt %114 : vector<128x1xf32>
    %116 = vector.broadcast %115 : vector<128x1xf32> to vector<128x128xf32>
    %117 = arith.mulf %110, %116 : vector<128x128xf32>
    %118 = vector.shape_cast %67 : vector<128xf32> to vector<1x128xf32>
    %119 = vector.broadcast %118 : vector<1x128xf32> to vector<128x128xf32>
    %120 = arith.mulf %117, %119 : vector<128x128xf32>
    %121 = arith.addf %61, %120 : vector<128x128xf32>
    %c6 = arith.constant 6 : index
    %c0_42 = arith.constant 0 : index
    %122 = vector.load %arg4[%c6, %c0_42] : memref<12x128xf32, #tpu.memory_space<vmem>>, vector<1x128xf32>
    %123 = vector.shape_cast %122 : vector<1x128xf32> to vector<128xf32>
    %c7 = arith.constant 7 : index
    %c0_43 = arith.constant 0 : index
    %124 = vector.load %arg4[%c7, %c0_43] : memref<12x128xf32, #tpu.memory_space<vmem>>, vector<1x128xf32>
    %125 = vector.shape_cast %124 : vector<1x128xf32> to vector<128xf32>
    %c8 = arith.constant 8 : index
    %c0_44 = arith.constant 0 : index
    %126 = vector.load %arg4[%c8, %c0_44] : memref<12x128xf32, #tpu.memory_space<vmem>>, vector<1x128xf32>
    %127 = vector.shape_cast %126 : vector<1x128xf32> to vector<128xf32>
    %128 = vector.extract_strided_slice %2 {offsets = [0, 256], sizes = [128, 128], strides = [1, 1]} : vector<128x512xf32> to vector<128x128xf32>
    %129 = vector.shape_cast %123 : vector<128xf32> to vector<1x128xf32>
    %130 = vector.broadcast %129 : vector<1x128xf32> to vector<128x128xf32>
    %131 = arith.addf %128, %130 : vector<128x128xf32>
    %cst_45 = arith.constant 0.000000e+00 : f32
    %132 = vector.broadcast %cst_45 : f32 to vector<128x128xf32>
    %133 = arith.maximumf %131, %132 : vector<128x128xf32>
    %cst_46 = arith.constant dense<0.000000e+00> : vector<128xf32>
    %134 = vector.multi_reduction <add>, %133, %cst_46 [1] : vector<128x128xf32> to vector<128xf32>
    %135 = vector.shape_cast %134 : vector<128xf32> to vector<128x1xf32>
    %cst_47 = arith.constant 1.280000e+02 : f32
    %136 = vector.broadcast %cst_47 : f32 to vector<128x1xf32>
    %137 = arith.divf %135, %136 : vector<128x1xf32>
    %138 = arith.mulf %133, %133 : vector<128x128xf32>
    %cst_48 = arith.constant dense<0.000000e+00> : vector<128xf32>
    %139 = vector.multi_reduction <add>, %138, %cst_48 [1] : vector<128x128xf32> to vector<128xf32>
    %140 = vector.shape_cast %139 : vector<128xf32> to vector<128x1xf32>
    %cst_49 = arith.constant 1.280000e+02 : f32
    %141 = vector.broadcast %cst_49 : f32 to vector<128x1xf32>
    %142 = arith.divf %140, %141 : vector<128x1xf32>
    %143 = vector.broadcast %137 : vector<128x1xf32> to vector<128x128xf32>
    %144 = arith.subf %133, %143 : vector<128x128xf32>
    %145 = arith.mulf %137, %137 : vector<128x1xf32>
    %146 = arith.subf %142, %145 : vector<128x1xf32>
    %cst_50 = arith.constant 9.99999974E-6 : f32
    %147 = vector.broadcast %cst_50 : f32 to vector<128x1xf32>
    %148 = arith.addf %146, %147 : vector<128x1xf32>
    %149 = math.rsqrt %148 : vector<128x1xf32>
    %150 = vector.broadcast %149 : vector<128x1xf32> to vector<128x128xf32>
    %151 = arith.mulf %144, %150 : vector<128x128xf32>
    %c2_51 = arith.constant 2 : index
    %c0_52 = arith.constant 0 : index
    %c0_53 = arith.constant 0 : index
    %152 = vector.load %arg3[%c2_51, %c0_52, %c0_53] : memref<4x128x128xf32, #tpu.memory_space<vmem>>, vector<1x128x128xf32>
    %153 = vector.shape_cast %152 : vector<1x128x128xf32> to vector<128x128xf32>
    %cst_54 = arith.constant dense<0.000000e+00> : vector<128x128xf32>
    %154 = tpu.matmul %151, %153, %cst_54 {dimension_numbers = #tpu.dot_dimension_numbers<[1], [0], [0], [1], [0, 0, 1, 1], [], []>} : vector<128x128xf32>, vector<128x128xf32>, vector<128x128xf32> -> vector<128x128xf32>
    %155 = vector.shape_cast %125 : vector<128xf32> to vector<1x128xf32>
    %156 = vector.broadcast %155 : vector<1x128xf32> to vector<128x128xf32>
    %157 = arith.addf %154, %156 : vector<128x128xf32>
    %cst_55 = arith.constant 0.000000e+00 : f32
    %158 = vector.broadcast %cst_55 : f32 to vector<128x128xf32>
    %159 = arith.maximumf %157, %158 : vector<128x128xf32>
    %cst_56 = arith.constant dense<0.000000e+00> : vector<128xf32>
    %160 = vector.multi_reduction <add>, %159, %cst_56 [1] : vector<128x128xf32> to vector<128xf32>
    %161 = vector.shape_cast %160 : vector<128xf32> to vector<128x1xf32>
    %cst_57 = arith.constant 1.280000e+02 : f32
    %162 = vector.broadcast %cst_57 : f32 to vector<128x1xf32>
    %163 = arith.divf %161, %162 : vector<128x1xf32>
    %164 = arith.mulf %159, %159 : vector<128x128xf32>
    %cst_58 = arith.constant dense<0.000000e+00> : vector<128xf32>
    %165 = vector.multi_reduction <add>, %164, %cst_58 [1] : vector<128x128xf32> to vector<128xf32>
    %166 = vector.shape_cast %165 : vector<128xf32> to vector<128x1xf32>
    %cst_59 = arith.constant 1.280000e+02 : f32
    %167 = vector.broadcast %cst_59 : f32 to vector<128x1xf32>
    %168 = arith.divf %166, %167 : vector<128x1xf32>
    %169 = vector.broadcast %163 : vector<128x1xf32> to vector<128x128xf32>
    %170 = arith.subf %159, %169 : vector<128x128xf32>
    %171 = arith.mulf %163, %163 : vector<128x1xf32>
    %172 = arith.subf %168, %171 : vector<128x1xf32>
    %cst_60 = arith.constant 9.99999974E-6 : f32
    %173 = vector.broadcast %cst_60 : f32 to vector<128x1xf32>
    %174 = arith.addf %172, %173 : vector<128x1xf32>
    %175 = math.rsqrt %174 : vector<128x1xf32>
    %176 = vector.broadcast %175 : vector<128x1xf32> to vector<128x128xf32>
    %177 = arith.mulf %170, %176 : vector<128x128xf32>
    %178 = vector.shape_cast %127 : vector<128xf32> to vector<1x128xf32>
    %179 = vector.broadcast %178 : vector<1x128xf32> to vector<128x128xf32>
    %180 = arith.mulf %177, %179 : vector<128x128xf32>
    %181 = arith.addf %121, %180 : vector<128x128xf32>
    %c9 = arith.constant 9 : index
    %c0_61 = arith.constant 0 : index
    %182 = vector.load %arg4[%c9, %c0_61] : memref<12x128xf32, #tpu.memory_space<vmem>>, vector<1x128xf32>
    %183 = vector.shape_cast %182 : vector<1x128xf32> to vector<128xf32>
    %c10 = arith.constant 10 : index
    %c0_62 = arith.constant 0 : index
    %184 = vector.load %arg4[%c10, %c0_62] : memref<12x128xf32, #tpu.memory_space<vmem>>, vector<1x128xf32>
    %185 = vector.shape_cast %184 : vector<1x128xf32> to vector<128xf32>
    %c11 = arith.constant 11 : index
    %c0_63 = arith.constant 0 : index
    %186 = vector.load %arg4[%c11, %c0_63] : memref<12x128xf32, #tpu.memory_space<vmem>>, vector<1x128xf32>
    %187 = vector.shape_cast %186 : vector<1x128xf32> to vector<128xf32>
    %188 = vector.extract_strided_slice %2 {offsets = [0, 384], sizes = [128, 128], strides = [1, 1]} : vector<128x512xf32> to vector<128x128xf32>
    %189 = vector.shape_cast %183 : vector<128xf32> to vector<1x128xf32>
    %190 = vector.broadcast %189 : vector<1x128xf32> to vector<128x128xf32>
    %191 = arith.addf %188, %190 : vector<128x128xf32>
    %cst_64 = arith.constant 0.000000e+00 : f32
    %192 = vector.broadcast %cst_64 : f32 to vector<128x128xf32>
    %193 = arith.maximumf %191, %192 : vector<128x128xf32>
    %cst_65 = arith.constant dense<0.000000e+00> : vector<128xf32>
    %194 = vector.multi_reduction <add>, %193, %cst_65 [1] : vector<128x128xf32> to vector<128xf32>
    %195 = vector.shape_cast %194 : vector<128xf32> to vector<128x1xf32>
    %cst_66 = arith.constant 1.280000e+02 : f32
    %196 = vector.broadcast %cst_66 : f32 to vector<128x1xf32>
    %197 = arith.divf %195, %196 : vector<128x1xf32>
    %198 = arith.mulf %193, %193 : vector<128x128xf32>
    %cst_67 = arith.constant dense<0.000000e+00> : vector<128xf32>
    %199 = vector.multi_reduction <add>, %198, %cst_67 [1] : vector<128x128xf32> to vector<128xf32>
    %200 = vector.shape_cast %199 : vector<128xf32> to vector<128x1xf32>
    %cst_68 = arith.constant 1.280000e+02 : f32
    %201 = vector.broadcast %cst_68 : f32 to vector<128x1xf32>
    %202 = arith.divf %200, %201 : vector<128x1xf32>
    %203 = vector.broadcast %197 : vector<128x1xf32> to vector<128x128xf32>
    %204 = arith.subf %193, %203 : vector<128x128xf32>
    %205 = arith.mulf %197, %197 : vector<128x1xf32>
    %206 = arith.subf %202, %205 : vector<128x1xf32>
    %cst_69 = arith.constant 9.99999974E-6 : f32
    %207 = vector.broadcast %cst_69 : f32 to vector<128x1xf32>
    %208 = arith.addf %206, %207 : vector<128x1xf32>
    %209 = math.rsqrt %208 : vector<128x1xf32>
    %210 = vector.broadcast %209 : vector<128x1xf32> to vector<128x128xf32>
    %211 = arith.mulf %204, %210 : vector<128x128xf32>
    %c3_70 = arith.constant 3 : index
    %c0_71 = arith.constant 0 : index
    %c0_72 = arith.constant 0 : index
    %212 = vector.load %arg3[%c3_70, %c0_71, %c0_72] : memref<4x128x128xf32, #tpu.memory_space<vmem>>, vector<1x128x128xf32>
    %213 = vector.shape_cast %212 : vector<1x128x128xf32> to vector<128x128xf32>
    %cst_73 = arith.constant dense<0.000000e+00> : vector<128x128xf32>
    %214 = tpu.matmul %211, %213, %cst_73 {dimension_numbers = #tpu.dot_dimension_numbers<[1], [0], [0], [1], [0, 0, 1, 1], [], []>} : vector<128x128xf32>, vector<128x128xf32>, vector<128x128xf32> -> vector<128x128xf32>
    %215 = vector.shape_cast %185 : vector<128xf32> to vector<1x128xf32>
    %216 = vector.broadcast %215 : vector<1x128xf32> to vector<128x128xf32>
    %217 = arith.addf %214, %216 : vector<128x128xf32>
    %cst_74 = arith.constant 0.000000e+00 : f32
    %218 = vector.broadcast %cst_74 : f32 to vector<128x128xf32>
    %219 = arith.maximumf %217, %218 : vector<128x128xf32>
    %cst_75 = arith.constant dense<0.000000e+00> : vector<128xf32>
    %220 = vector.multi_reduction <add>, %219, %cst_75 [1] : vector<128x128xf32> to vector<128xf32>
    %221 = vector.shape_cast %220 : vector<128xf32> to vector<128x1xf32>
    %cst_76 = arith.constant 1.280000e+02 : f32
    %222 = vector.broadcast %cst_76 : f32 to vector<128x1xf32>
    %223 = arith.divf %221, %222 : vector<128x1xf32>
    %224 = arith.mulf %219, %219 : vector<128x128xf32>
    %cst_77 = arith.constant dense<0.000000e+00> : vector<128xf32>
    %225 = vector.multi_reduction <add>, %224, %cst_77 [1] : vector<128x128xf32> to vector<128xf32>
    %226 = vector.shape_cast %225 : vector<128xf32> to vector<128x1xf32>
    %cst_78 = arith.constant 1.280000e+02 : f32
    %227 = vector.broadcast %cst_78 : f32 to vector<128x1xf32>
    %228 = arith.divf %226, %227 : vector<128x1xf32>
    %229 = vector.broadcast %223 : vector<128x1xf32> to vector<128x128xf32>
    %230 = arith.subf %219, %229 : vector<128x128xf32>
    %231 = arith.mulf %223, %223 : vector<128x1xf32>
    %232 = arith.subf %228, %231 : vector<128x1xf32>
    %cst_79 = arith.constant 9.99999974E-6 : f32
    %233 = vector.broadcast %cst_79 : f32 to vector<128x1xf32>
    %234 = arith.addf %232, %233 : vector<128x1xf32>
    %235 = math.rsqrt %234 : vector<128x1xf32>
    %236 = vector.broadcast %235 : vector<128x1xf32> to vector<128x128xf32>
    %237 = arith.mulf %230, %236 : vector<128x128xf32>
    %238 = vector.shape_cast %187 : vector<128xf32> to vector<1x128xf32>
    %239 = vector.broadcast %238 : vector<1x128xf32> to vector<128x128xf32>
    %240 = arith.mulf %237, %239 : vector<128x128xf32>
    %241 = arith.addf %181, %240 : vector<128x128xf32>
    %c0_80 = arith.constant 0 : index
    %c0_81 = arith.constant 0 : index
    %242 = vector.load %arg7[%c0_80, %c0_81] : memref<4x128xf32, #tpu.memory_space<vmem>>, vector<1x128xf32>
    %243 = vector.shape_cast %242 : vector<1x128xf32> to vector<128xf32>
    %c1_82 = arith.constant 1 : index
    %c0_83 = arith.constant 0 : index
    %244 = vector.load %arg7[%c1_82, %c0_83] : memref<4x128xf32, #tpu.memory_space<vmem>>, vector<1x128xf32>
    %245 = vector.shape_cast %244 : vector<1x128xf32> to vector<128xf32>
    %c2_84 = arith.constant 2 : index
    %c0_85 = arith.constant 0 : index
    %246 = vector.load %arg7[%c2_84, %c0_85] : memref<4x128xf32, #tpu.memory_space<vmem>>, vector<1x128xf32>
    %247 = vector.shape_cast %246 : vector<1x128xf32> to vector<128xf32>
    %c3_86 = arith.constant 3 : index
    %c0_87 = arith.constant 0 : index
    %248 = vector.load %arg7[%c3_86, %c0_87] : memref<4x128xf32, #tpu.memory_space<vmem>>, vector<1x128xf32>
    %249 = vector.shape_cast %248 : vector<1x128xf32> to vector<128xf32>
    %c0_88 = arith.constant 0 : index
    %c0_89 = arith.constant 0 : index
    %250 = vector.load %arg5[%c0_88, %c0_89] : memref<128x128xf32, #tpu.memory_space<vmem>>, vector<128x128xf32>
    %cst_90 = arith.constant dense<0.000000e+00> : vector<128x128xf32>
    %251 = tpu.matmul %241, %250, %cst_90 {dimension_numbers = #tpu.dot_dimension_numbers<[1], [0], [0], [1], [0, 0, 1, 1], [], []>} : vector<128x128xf32>, vector<128x128xf32>, vector<128x128xf32> -> vector<128x128xf32>
    %252 = vector.shape_cast %243 : vector<128xf32> to vector<1x128xf32>
    %253 = vector.broadcast %252 : vector<1x128xf32> to vector<128x128xf32>
    %254 = arith.addf %251, %253 : vector<128x128xf32>
    %cst_91 = arith.constant 0.000000e+00 : f32
    %255 = vector.broadcast %cst_91 : f32 to vector<128x128xf32>
    %256 = arith.maximumf %254, %255 : vector<128x128xf32>
    %cst_92 = arith.constant dense<0.000000e+00> : vector<128xf32>
    %257 = vector.multi_reduction <add>, %256, %cst_92 [1] : vector<128x128xf32> to vector<128xf32>
    %258 = vector.shape_cast %257 : vector<128xf32> to vector<128x1xf32>
    %cst_93 = arith.constant 1.280000e+02 : f32
    %259 = vector.broadcast %cst_93 : f32 to vector<128x1xf32>
    %260 = arith.divf %258, %259 : vector<128x1xf32>
    %261 = arith.mulf %256, %256 : vector<128x128xf32>
    %cst_94 = arith.constant dense<0.000000e+00> : vector<128xf32>
    %262 = vector.multi_reduction <add>, %261, %cst_94 [1] : vector<128x128xf32> to vector<128xf32>
    %263 = vector.shape_cast %262 : vector<128xf32> to vector<128x1xf32>
    %cst_95 = arith.constant 1.280000e+02 : f32
    %264 = vector.broadcast %cst_95 : f32 to vector<128x1xf32>
    %265 = arith.divf %263, %264 : vector<128x1xf32>
    %266 = vector.broadcast %260 : vector<128x1xf32> to vector<128x128xf32>
    %267 = arith.subf %256, %266 : vector<128x128xf32>
    %268 = arith.mulf %260, %260 : vector<128x1xf32>
    %269 = arith.subf %265, %268 : vector<128x1xf32>
    %cst_96 = arith.constant 9.99999974E-6 : f32
    %270 = vector.broadcast %cst_96 : f32 to vector<128x1xf32>
    %271 = arith.addf %269, %270 : vector<128x1xf32>
    %272 = math.rsqrt %271 : vector<128x1xf32>
    %273 = vector.broadcast %272 : vector<128x1xf32> to vector<128x128xf32>
    %274 = arith.mulf %267, %273 : vector<128x128xf32>
    %c0_97 = arith.constant 0 : index
    %c0_98 = arith.constant 0 : index
    %275 = vector.load %arg6[%c0_97, %c0_98] : memref<128x128xf32, #tpu.memory_space<vmem>>, vector<128x128xf32>
    %cst_99 = arith.constant dense<0.000000e+00> : vector<128x128xf32>
    %276 = tpu.matmul %274, %275, %cst_99 {dimension_numbers = #tpu.dot_dimension_numbers<[1], [0], [0], [1], [0, 0, 1, 1], [], []>} : vector<128x128xf32>, vector<128x128xf32>, vector<128x128xf32> -> vector<128x128xf32>
    %277 = vector.shape_cast %245 : vector<128xf32> to vector<1x128xf32>
    %278 = vector.broadcast %277 : vector<1x128xf32> to vector<128x128xf32>
    %279 = arith.addf %276, %278 : vector<128x128xf32>
    %cst_100 = arith.constant 0.000000e+00 : f32
    %280 = vector.broadcast %cst_100 : f32 to vector<128x128xf32>
    %281 = arith.maximumf %279, %280 : vector<128x128xf32>
    %cst_101 = arith.constant dense<0.000000e+00> : vector<128xf32>
    %282 = vector.multi_reduction <add>, %281, %cst_101 [1] : vector<128x128xf32> to vector<128xf32>
    %283 = vector.shape_cast %282 : vector<128xf32> to vector<128x1xf32>
    %cst_102 = arith.constant 1.280000e+02 : f32
    %284 = vector.broadcast %cst_102 : f32 to vector<128x1xf32>
    %285 = arith.divf %283, %284 : vector<128x1xf32>
    %286 = arith.mulf %281, %281 : vector<128x128xf32>
    %cst_103 = arith.constant dense<0.000000e+00> : vector<128xf32>
    %287 = vector.multi_reduction <add>, %286, %cst_103 [1] : vector<128x128xf32> to vector<128xf32>
    %288 = vector.shape_cast %287 : vector<128xf32> to vector<128x1xf32>
    %cst_104 = arith.constant 1.280000e+02 : f32
    %289 = vector.broadcast %cst_104 : f32 to vector<128x1xf32>
    %290 = arith.divf %288, %289 : vector<128x1xf32>
    %291 = vector.broadcast %285 : vector<128x1xf32> to vector<128x128xf32>
    %292 = arith.subf %281, %291 : vector<128x128xf32>
    %293 = arith.mulf %285, %285 : vector<128x1xf32>
    %294 = arith.subf %290, %293 : vector<128x1xf32>
    %cst_105 = arith.constant 9.99999974E-6 : f32
    %295 = vector.broadcast %cst_105 : f32 to vector<128x1xf32>
    %296 = arith.addf %294, %295 : vector<128x1xf32>
    %297 = math.rsqrt %296 : vector<128x1xf32>
    %298 = vector.broadcast %297 : vector<128x1xf32> to vector<128x128xf32>
    %299 = arith.mulf %292, %298 : vector<128x128xf32>
    %300 = vector.shape_cast %247 : vector<128xf32> to vector<1x128xf32>
    %301 = vector.broadcast %300 : vector<1x128xf32> to vector<128x128xf32>
    %302 = arith.mulf %299, %301 : vector<128x128xf32>
    %303 = vector.shape_cast %249 : vector<128xf32> to vector<1x128xf32>
    %304 = vector.broadcast %303 : vector<1x128xf32> to vector<128x128xf32>
    %305 = arith.addf %302, %304 : vector<128x128xf32>
    %c0_106 = arith.constant 0 : index
    %c0_107 = arith.constant 0 : index
    %306 = vector.load %arg8[%c0_106, %c0_107] : memref<128x128xf32, #tpu.memory_space<vmem>>, vector<128x128xf32>
    tpu.vector_store %arg8[%c0_106, %c0_107], %305 {strides = array<i32>} : memref<128x128xf32, #tpu.memory_space<vmem>>, vector<128x128xf32>,
    return
  }
  func.func @transform_0(%arg0: i32) -> (i32, i32) {
    %c0_i32 = arith.constant 0 : i32
    %c0_i32_0 = arith.constant 0 : i32
    return %arg0, %c0_i32 : i32, i32
  }
  func.func @transform_1(%arg0: i32) -> (i32, i32) {
    %c0_i32 = arith.constant 0 : i32
    %c0_i32_0 = arith.constant 0 : i32
    %c0_i32_1 = arith.constant 0 : i32
    return %c0_i32, %c0_i32_0 : i32, i32
  }
  func.func @transform_2(%arg0: i32) -> (i32, i32, i32) {
    %c0_i32 = arith.constant 0 : i32
    %c0_i32_0 = arith.constant 0 : i32
    %c0_i32_1 = arith.constant 0 : i32
    %c0_i32_2 = arith.constant 0 : i32
    return %c0_i32, %c0_i32_0, %c0_i32_1 : i32, i32, i32
  }
  func.func @transform_3(%arg0: i32) -> (i32, i32) {
    %c0_i32 = arith.constant 0 : i32
    %c0_i32_0 = arith.constant 0 : i32
    %c0_i32_1 = arith.constant 0 : i32
    return %c0_i32, %c0_i32_0 : i32, i32
  }
  func.func @transform_4(%arg0: i32) -> (i32, i32) {
    %c0_i32 = arith.constant 0 : i32
    %c0_i32_0 = arith.constant 0 : i32
    %c0_i32_1 = arith.constant 0 : i32
    return %c0_i32, %c0_i32_0 : i32, i32
  }
  func.func @transform_5(%arg0: i32) -> (i32, i32) {
    %c0_i32 = arith.constant 0 : i32
    %c0_i32_0 = arith.constant 0 : i32
    %c0_i32_1 = arith.constant 0 : i32
    return %c0_i32, %c0_i32_0 : i32, i32
  }
  func.func @transform_6(%arg0: i32) -> (i32, i32) {
    %c0_i32 = arith.constant 0 : i32
    %c0_i32_0 = arith.constant 0 : i32
    %c0_i32_1 = arith.constant 0 : i32
    return %c0_i32, %c0_i32_0 : i32, i32
  }
  func.func @transform_7(%arg0: i32) -> (i32, i32) {
    %c0_i32 = arith.constant 0 : i32
    %c0_i32_0 = arith.constant 0 : i32
    return %arg0, %c0_i32 : i32, i32
  }
}

</mosaic_0001>

<llo_original>
// kernel: tpu_custom_call.1
$region0: #{tpu_custom_call.1}
  #allocation0 [shape = 'u32[]', space=smem, size = 0x4, offset = 0x4, fixed_abs, tag = 'smem constant byte address 0x4 - core index']
  #allocation1 [shape = 'u32[144,128]{1,0:T(1,128)}', space=vmem, size = 0x12000, scoped, tag = 'internal scratch']
  %s0 = inlined_call_operand.vmem [shape: f32[256,11], index: 0, kind: input, shape index: {}]
  %s1 = inlined_call_operand.hbm [shape: f32[11,512], index: 1, kind: input, shape index: {}]
  %s2 = inlined_call_operand.hbm [shape: f32[4,128,128], index: 2, kind: input, shape index: {}]
  %s3 = inlined_call_operand.vmem [shape: f32[12,128], index: 3, kind: input, shape index: {}]
  %s4 = inlined_call_operand.vmem [shape: f32[128,128], index: 4, kind: input, shape index: {}]
  %s5 = inlined_call_operand.vmem [shape: f32[128,128], index: 5, kind: input, shape index: {}]
  %s6 = inlined_call_operand.vmem [shape: f32[4,128], index: 6, kind: input, shape index: {}]
  %s7 = inlined_call_operand.hbm [shape: f32[256,128], index: 7, kind: output, shape index: {}]
  %s8 = sld [smem:[#allocation0]]
  $region69: #{tpu_custom_call.1} parent=0
    _
  %s10 = ssub.s32 1, %s8
  %s11 = scalar_select 0, %s10, %s8
  $region1: #{tpu_custom_call.1} parent=0
    #allocation2 [shape = 'u8[32768]{0}', space=vmem, size = 0x8000, scoped, tag = 'input window, operand 1, single buffered']
    #allocation3 [shape = 's32[2]{0}', space=sflag, size = 0x8, scoped, tag = 'scoped memory for tpu_custom_call.1']
    #allocation4 [shape = 's32[2]{0}', space=sflag, size = 0x8, scoped, tag = 'scoped memory for tpu_custom_call.1']
    #allocation5 [shape = 'u8[262144]{0}', space=vmem, size = 0x40000, scoped, tag = 'input window, operand 2, single buffered']
    #allocation6 [shape = 's32[1]{0}', space=sflag, size = 0x4, scoped, tag = 'scoped memory for tpu_custom_call.1']
    #allocation7 [shape = 'u8[131072]{0}', space=vmem, size = 0x20000, scoped, tag = 'output window, operand 0']
    %12 = vsyncpa [#allocation3], 0
    %13 = vsyncpa [#allocation6], 0
    %14 = vsyncpa [#allocation4], 0
    %s15 = scalar_lea.sflag [#allocation4], 1
    %16 = vsyncpa %s15, 0
    loop: start=0, step=1, limit=4
    $region2: #{tpu_custom_call.1} parent=1 // loop_pre_header
      _
    $region3: #{tpu_custom_call.1} parent=1 // loop_header
      %s18 = sphi 0, %s22
      %p19 = scmp.ge.s32.totalorder %s18, 4
      %s28 = sphi 0, %s30
      %s31 = sphi 0, %s28
      %s32 = sphi 0, %s31
      %s48 = sphi 0, %s32
      %s52 = sphi 0, %s52
      %s54 = sphi 0, %s52
      %s55 = sphi 0, %s54
      %s69 = sphi 0, %s55
      %s73 = sphi 0, %s73
      %s75 = sphi 0, %s73
      %s76 = sphi 0, %s75
      %s90 = sphi 0, %s76
      %s94 = sphi 0, %s94
      %s96 = sphi 0, %s94
      %s97 = sphi 0, %s96
      %s111 = sphi 0, %s97
      %s115 = sphi 0, %s115
      %s117 = sphi 0, %s115
      %s118 = sphi 0, %s117
      %s132 = sphi 0, %s118
      %s136 = sphi 0, %s136
      %s138 = sphi 0, %s136
      %s139 = sphi 0, %s138
      %s153 = sphi 0, %s139
      %s157 = sphi 0, %s157
      %s159 = sphi 0, %s157
      %s160 = sphi 0, %s159
      %s174 = sphi 0, %s160
      %s180 = sphi 0, %s182
      %s183 = sphi 0, %s180
      %s184 = sphi 0, %s183
      %s200 = sphi 0, %s184
    $region4: #{tpu_custom_call.1} parent=1 // loop_header_branch
      %21 = sbr.rel (%p19) target = $region8
    $region5: #{tpu_custom_call.1} parent=1 // loop_body
      %s23 = ssub.s32 %s18, 1
      %s24 = ssub.s32 %s18, 2
      %s25 = sadd.s32 %s18, 1
      %s26 = ssub.s32 %s18, %s25
      %p27 = scmp.eq.s32.totalorder %s26, 0
      %s29 = sadd.s32 %s28, 1
      %s30 = scalar_select %p27, %s28, %s29
      %p33 = pneg %p27
      %p34 = scmp.eq.s32.totalorder %s18, 1
      %p35 = por %p33, %p34
      %p36 = scmp.ne.s32.totalorder %s28, %s31
      %p37 = scmp.eq.s32.totalorder %s18, 0
      %p38 = por %p36, %p37
      %p39 = scmp.ne.s32.totalorder %s28, %s31
      %p40 = scmp.eq.s32.totalorder %s23, 1
      %p41 = por %p39, %p40
      %p42 = scmp.ne.s32.totalorder %s31, %s32
      %p43 = scmp.eq.s32.totalorder %s23, 0
      %p44 = por %p42, %p43
      %p45 = scmp.ne.s32.totalorder %s31, %s32
      %p46 = scmp.eq.s32.totalorder %s24, 1
      %p47 = por %p45, %p46
      %p49 = scmp.ne.s32.totalorder %s32, %s48
      %p50 = scmp.eq.s32.totalorder %s24, 0
      %p51 = por %p49, %p50
      %s53 = sadd.s32 %s52, 1
      %p56 = scmp.eq.s32.totalorder %s18, 1
      %p57 = scmp.ne.s32.totalorder %s52, %s54
      %p58 = scmp.eq.s32.totalorder %s18, 0
      %p59 = por %p57, %p58
      %p60 = scmp.ne.s32.totalorder %s52, %s54
      %p61 = scmp.eq.s32.totalorder %s23, 1
      %p62 = por %p60, %p61
      %p63 = scmp.ne.s32.totalorder %s54, %s55
      %p64 = scmp.eq.s32.totalorder %s23, 0
      %p65 = por %p63, %p64
      %p66 = scmp.ne.s32.totalorder %s54, %s55
      %p67 = scmp.eq.s32.totalorder %s24, 1
      %p68 = por %p66, %p67
      %p70 = scmp.ne.s32.totalorder %s55, %s69
      %p71 = scmp.eq.s32.totalorder %s24, 0
      %p72 = por %p70, %p71
      %s74 = sadd.s32 %s73, 1
      %p77 = scmp.eq.s32.totalorder %s18, 1
      %p78 = scmp.ne.s32.totalorder %s73, %s75
      %p79 = scmp.eq.s32.totalorder %s18, 0
      %p80 = por %p78, %p79
      %p81 = scmp.ne.s32.totalorder %s73, %s75
      %p82 = scmp.eq.s32.totalorder %s23, 1
      %p83 = por %p81, %p82
      %p84 = scmp.ne.s32.totalorder %s75, %s76
      %p85 = scmp.eq.s32.totalorder %s23, 0
      %p86 = por %p84, %p85
      %p87 = scmp.ne.s32.totalorder %s75, %s76
      %p88 = scmp.eq.s32.totalorder %s24, 1
      %p89 = por %p87, %p88
      %p91 = scmp.ne.s32.totalorder %s76, %s90
      %p92 = scmp.eq.s32.totalorder %s24, 0
      %p93 = por %p91, %p92
      %s95 = sadd.s32 %s94, 1
      %p98 = scmp.eq.s32.totalorder %s18, 1
      %p99 = scmp.ne.s32.totalorder %s94, %s96
      %p100 = scmp.eq.s32.totalorder %s18, 0
      %p101 = por %p99, %p100
      %p102 = scmp.ne.s32.totalorder %s94, %s96
      %p103 = scmp.eq.s32.totalorder %s23, 1
      %p104 = por %p102, %p103
      %p105 = scmp.ne.s32.totalorder %s96, %s97
      %p106 = scmp.eq.s32.totalorder %s23, 0
      %p107 = por %p105, %p106
      %p108 = scmp.ne.s32.totalorder %s96, %s97
      %p109 = scmp.eq.s32.totalorder %s24, 1
      %p110 = por %p108, %p109
      %p112 = scmp.ne.s32.totalorder %s97, %s111
      %p113 = scmp.eq.s32.totalorder %s24, 0
      %p114 = por %p112, %p113
      %s116 = sadd.s32 %s115, 1
      %p119 = scmp.eq.s32.totalorder %s18, 1
      %p120 = scmp.ne.s32.totalorder %s115, %s117
      %p121 = scmp.eq.s32.totalorder %s18, 0
      %p122 = por %p120, %p121
      %p123 = scmp.ne.s32.totalorder %s115, %s117
      %p124 = scmp.eq.s32.totalorder %s23, 1
      %p125 = por %p123, %p124
      %p126 = scmp.ne.s32.totalorder %s117, %s118
      %p127 = scmp.eq.s32.totalorder %s23, 0
      %p128 = por %p126, %p127
      %p129 = scmp.ne.s32.totalorder %s117, %s118
      %p130 = scmp.eq.s32.totalorder %s24, 1
      %p131 = por %p129, %p130
      %p133 = scmp.ne.s32.totalorder %s118, %s132
      %p134 = scmp.eq.s32.totalorder %s24, 0
      %p135 = por %p133, %p134
      %s137 = sadd.s32 %s136, 1
      %p140 = scmp.eq.s32.totalorder %s18, 1
      %p141 = scmp.ne.s32.totalorder %s136, %s138
      %p142 = scmp.eq.s32.totalorder %s18, 0
      %p143 = por %p141, %p142
      %p144 = scmp.ne.s32.totalorder %s136, %s138
      %p145 = scmp.eq.s32.totalorder %s23, 1
      %p146 = por %p144, %p145
      %p147 = scmp.ne.s32.totalorder %s138, %s139
      %p148 = scmp.eq.s32.totalorder %s23, 0
      %p149 = por %p147, %p148
      %p150 = scmp.ne.s32.totalorder %s138, %s139
      %p151 = scmp.eq.s32.totalorder %s24, 1
      %p152 = por %p150, %p151
      %p154 = scmp.ne.s32.totalorder %s139, %s153
      %p155 = scmp.eq.s32.totalorder %s24, 0
      %p156 = por %p154, %p155
      %s158 = sadd.s32 %s157, 1
      %p161 = scmp.eq.s32.totalorder %s18, 1
      %p162 = scmp.ne.s32.totalorder %s157, %s159
      %p163 = scmp.eq.s32.totalorder %s18, 0
      %p164 = por %p162, %p163
      %p165 = scmp.ne.s32.totalorder %s157, %s159
      %p166 = scmp.eq.s32.totalorder %s23, 1
      %p167 = por %p165, %p166
      %p168 = scmp.ne.s32.totalorder %s159, %s160
      %p169 = scmp.eq.s32.totalorder %s23, 0
      %p170 = por %p168, %p169
      %p171 = scmp.ne.s32.totalorder %s159, %s160
      %p172 = scmp.eq.s32.totalorder %s24, 1
      %p173 = por %p171, %p172
      %p175 = scmp.ne.s32.totalorder %s160, %s174
      %p176 = scmp.eq.s32.totalorder %s24, 0
      %p177 = por %p175, %p176
      %s178 = ssub.s32 %s18, %s25
      %p179 = scmp.eq.s32.totalorder %s178, 0
      %s181 = sadd.s32 %s180, 1
      %s182 = scalar_select %p179, %s180, %s181
      %p185 = pneg %p179
      %p186 = scmp.eq.s32.totalorder %s18, 1
      %p187 = por %p185, %p186
      %p188 = scmp.ne.s32.totalorder %s180, %s183
      %p189 = scmp.eq.s32.totalorder %s18, 0
      %p190 = por %p188, %p189
      %p191 = scmp.ne.s32.totalorder %s180, %s183
      %p192 = scmp.eq.s32.totalorder %s23, 1
      %p193 = por %p191, %p192
      %p194 = scmp.ne.s32.totalorder %s183, %s184
      %p195 = scmp.eq.s32.totalorder %s23, 0
      %p196 = por %p194, %p195
      %p197 = scmp.ne.s32.totalorder %s183, %s184
      %p198 = scmp.eq.s32.totalorder %s24, 1
      %p199 = por %p197, %p198
      %p201 = scmp.ne.s32.totalorder %s184, %s200
      %p202 = scmp.eq.s32.totalorder %s24, 0
      %p203 = por %p201, %p202
      %p204 = scmp.le.s32.totalorder 1, %s18
      %p205 = scmp.lt.s32.totalorder %s18, 3
      %p206 = pnand %p204, %p205
      %p207 = pneg %p206
      // Predicated region
      $region9: #{tpu_custom_call.1} parent=5 // pred_check
        _
      $region10: #{tpu_custom_call.1} parent=5 // pred_check_branch
        %209 = sbr.rel (%p206) target = $region12
      $region11: #{tpu_custom_call.1} parent=5 // pred_region
        %s210 = ssub.s32 %s18, 1
        // Predicated region
        $region13: #{tpu_custom_call.1} parent=11 // pred_check
          %p211 = pneg %p65
        $region14: #{tpu_custom_call.1} parent=11 // pred_check_branch
          %213 = sbr.rel (%p211) target = $region16
        $region15: #{tpu_custom_call.1} parent=11 // pred_region
          %s215 = ssub.s32 1024, 1024
          %216 = vsyncadd [#allocation3], %s215
          %s217 = sshll.u32 [#allocation2], 4
          %s218 = int_to_ptr.vmem [resolvable:$true] %s217
          %223 = dma.hbm_to_vmem [thread:$0]  %s1, 1024, %s218, [#allocation3], 512, 512, 32
        $region16: #{tpu_custom_call.1} parent=11 // pred_fallthru
          _
        // Predicated region
        $region17: #{tpu_custom_call.1} parent=11 // pred_check
          %p224 = pneg %p86
        $region18: #{tpu_custom_call.1} parent=11 // pred_check_branch
          %226 = sbr.rel (%p224) target = $region20
        $region19: #{tpu_custom_call.1} parent=11 // pred_region
          %s228 = ssub.s32 8192, 8192
          %229 = vsyncadd [#allocation6], %s228
          %s230 = sshll.u32 [#allocation5], 4
          %s231 = int_to_ptr.vmem [resolvable:$true] %s230
          %236 = dma.hbm_to_vmem [thread:$0]  %s2, 8192, %s231, [#allocation6], 128, 128, 8
        $region20: #{tpu_custom_call.1} parent=11 // pred_fallthru
          _
        // Predicated region
        $region21: #{tpu_custom_call.1} parent=11 // pred_check
          %p237 = pneg %p107
        $region22: #{tpu_custom_call.1} parent=11 // pred_check_branch
          %239 = sbr.rel (%p237) target = $region24
        $region23: #{tpu_custom_call.1} parent=11 // pred_region
          _
        $region24: #{tpu_custom_call.1} parent=11 // pred_fallthru
          _
        // Predicated region
        $region25: #{tpu_custom_call.1} parent=11 // pred_check
          %p240 = pneg %p128
        $region26: #{tpu_custom_call.1} parent=11 // pred_check_branch
          %242 = sbr.rel (%p240) target = $region28
        $region27: #{tpu_custom_call.1} parent=11 // pred_region
          _
        $region28: #{tpu_custom_call.1} parent=11 // pred_fallthru
          _
        // Predicated region
        $region29: #{tpu_custom_call.1} parent=11 // pred_check
          %p243 = pneg %p149
        $region30: #{tpu_custom_call.1} parent=11 // pred_check_branch
          %245 = sbr.rel (%p243) target = $region32
        $region31: #{tpu_custom_call.1} parent=11 // pred_region
          _
        $region32: #{tpu_custom_call.1} parent=11 // pred_fallthru
          _
        // Predicated region
        $region33: #{tpu_custom_call.1} parent=11 // pred_check
          %p246 = pneg %p170
        $region34: #{tpu_custom_call.1} parent=11 // pred_check_branch
          %248 = sbr.rel (%p246) target = $region36
        $region35: #{tpu_custom_call.1} parent=11 // pred_region
          _
        $region36: #{tpu_custom_call.1} parent=11 // pred_fallthru
          _
      $region12: #{tpu_custom_call.1} parent=5 // pred_fallthru
        _
      %p249 = scmp.lt.s32.totalorder %s18, 2
      // Predicated region
      $region37: #{tpu_custom_call.1} parent=5 // pred_check
        %p250 = pneg %p249
      $region38: #{tpu_custom_call.1} parent=5 // pred_check_branch
        %252 = sbr.rel (%p250) target = $region40
      $region39: #{tpu_custom_call.1} parent=5 // pred_region
        // Predicated region
        $region41: #{tpu_custom_call.1} parent=39 // pred_check
          %p253 = pneg %p38
        $region42: #{tpu_custom_call.1} parent=39 // pred_check_branch
          %255 = sbr.rel (%p253) target = $region44
        $region43: #{tpu_custom_call.1} parent=39 // pred_region
          %s256 = smul.u32 16, %s18
          %p257 = scmp.lt.s32.totalorder %s256, 31
          %s258 = scalar_select %p257, %s256, 31
          %s259 = smul.addr %s258, 8
          %s260 = scalar_lea.vmem %s0, %s259
          %s261 = smul.u32 16, %s18
        $region44: #{tpu_custom_call.1} parent=39 // pred_fallthru
          _
      $region40: #{tpu_custom_call.1} parent=5 // pred_fallthru
        _
      %p262 = scmp.le.s32.totalorder 1, %s18
      %p263 = scmp.lt.s32.totalorder %s18, 3
      %p264 = pnand %p262, %p263
      %p265 = pneg %p264
      // Predicated region
      $region45: #{tpu_custom_call.1} parent=5 // pred_check
        _
      $region46: #{tpu_custom_call.1} parent=5 // pred_check_branch
        %267 = sbr.rel (%p264) target = $region48
      $region47: #{tpu_custom_call.1} parent=5 // pred_region
        %s268 = ssub.s32 %s18, 1
        // Predicated region
        $region49: #{tpu_custom_call.1} parent=47 // pred_check
          %p269 = pneg %p65
        $region50: #{tpu_custom_call.1} parent=47 // pred_check_branch
          %271 = sbr.rel (%p269) target = $region52
        $region51: #{tpu_custom_call.1} parent=47 // pred_region
          %272 = dma.done [#allocation3], 1024
        $region52: #{tpu_custom_call.1} parent=47 // pred_fallthru
          _
        // Predicated region
        $region53: #{tpu_custom_call.1} parent=47 // pred_check
          %p273 = pneg %p86
        $region54: #{tpu_custom_call.1} parent=47 // pred_check_branch
          %275 = sbr.rel (%p273) target = $region56
        $region55: #{tpu_custom_call.1} parent=47 // pred_region
          %276 = dma.done [#allocation6], 8192
        $region56: #{tpu_custom_call.1} parent=47 // pred_fallthru
          _
        %s277 = smul.u32 16, %s23
        %p278 = scmp.lt.s32.totalorder %s277, 31
        %s279 = scalar_select %p278, %s277, 31
        %s280 = smul.addr %s279, 8
        %s281 = scalar_lea.vmem %s0, %s280
        %p282 = pneg %p44
        %p283 = pneg %p41
        %p284 = pneg %p65
        %p285 = pneg %p62
        %p286 = pneg %p86
        %p287 = pneg %p83
        %p288 = pneg %p107
        %p289 = pneg %p104
        %p290 = pneg %p128
        %p291 = pneg %p125
        %p292 = pneg %p149
        %p293 = pneg %p146
        %p294 = pneg %p170
        %p295 = pneg %p167
        %p296 = pneg %p196
        %p297 = pneg %p193
        %s298 = sand.u32 %s183, 1
        %s299 = scalar_lea.sflag [#allocation4], %s298
        %s300 = sand.u32 %s183, 1
        %s301 = smul.addr %s300, 128
        %s302 = scalar_lea.vmem [#allocation7], %s301
        %s303 = smul.u32 16, %s23
        %p304 = scmp.lt.s32.totalorder %s303, 31
        %s305 = scalar_select %p304, %s303, 31
        %s306 = smul.addr %s305, 8
        %s307 = scalar_lea.vmem %s0, %s306
        %s308 = smul.u32 16, %s23
        %s309 = smul.u32 16, %s23
        %v310 = vld [vmem:[%s307] sm:$0xff]
        %v311 = vld [vmem:[%s307 + $0x8] sm:$0xff]
        %v312 = vld [vmem:[%s307 + $0x10] sm:$0xff]
        %v313 = vld [vmem:[%s307 + $0x18] sm:$0xff]
        %v314 = vld [vmem:[%s307 + $0x20] sm:$0xff]
        %v315 = vld [vmem:[%s307 + $0x28] sm:$0xff]
        %v316 = vld [vmem:[%s307 + $0x30] sm:$0xff]
        %v317 = vld [vmem:[%s307 + $0x38] sm:$0xff]
        %v318 = vld [vmem:[%s307 + $0x40] sm:$0xff]
        %v319 = vld [vmem:[%s307 + $0x48] sm:$0xff]
        %v320 = vld [vmem:[%s307 + $0x50] sm:$0xff]
        %v321 = vld [vmem:[%s307 + $0x58] sm:$0xff]
        %v322 = vld [vmem:[%s307 + $0x60] sm:$0xff]
        %v323 = vld [vmem:[%s307 + $0x68] sm:$0xff]
        %v324 = vld [vmem:[%s307 + $0x70] sm:$0xff]
        %v325 = vld [vmem:[%s307 + $0x78] sm:$0xff]
        %v326 = vld [vmem:[#allocation2] sm:$0xff]
        %v327 = vld [vmem:[#allocation2 + $0x8] sm:$0xff]
        %v328 = vld [vmem:[#allocation2 + $0x10] sm:$0xff]
        %v329 = vld [vmem:[#allocation2 + $0x18] sm:$0xff]
        %v330 = vld [vmem:[#allocation2 + $0x20] sm:$0x7]
        %v331 = vld [vmem:[#allocation2 + $0x28] sm:$0x7]
        %v332 = vld [vmem:[#allocation2 + $0x30] sm:$0x7]
        %v333 = vld [vmem:[#allocation2 + $0x38] sm:$0x7]
        %vm334 = vcmask 89088
        %v336 = vsel %vm334, %v310, 0
        %v339 = vsel %vm334, %v311, 0
        %v342 = vsel %vm334, %v312, 0
        %v345 = vsel %vm334, %v313, 0
        %v348 = vsel %vm334, %v314, 0
        %v351 = vsel %vm334, %v315, 0
        %v354 = vsel %vm334, %v316, 0
        %v357 = vsel %vm334, %v317, 0
        %v360 = vsel %vm334, %v318, 0
        %v363 = vsel %vm334, %v319, 0
        %v366 = vsel %vm334, %v320, 0
        %v369 = vsel %vm334, %v321, 0
        %v372 = vsel %vm334, %v322, 0
        %v375 = vsel %vm334, %v323, 0
        %v378 = vsel %vm334, %v324, 0
        %v381 = vsel %vm334, %v325, 0
        %vm383 = vcmask 1042432
        %v385 = vsel %vm383, %v330, 0
        %v388 = vsel %vm383, %v331, 0
        %v391 = vsel %vm383, %v332, 0
        %v394 = vsel %vm383, %v333, 0
        %396 = vmatprep.subr.mxu0 0.0
        %397 = vmatpush1.msra.mxu0 0.0
        %398 = vmatprep.subr.mxu0 0.0
        %399 = vmatpush1.msra.mxu0 0.0
        %400 = vmatprep.subr.mxu0 0.0
        %401 = vmatpush1.msra.mxu0 0.0
        %402 = vmatprep.subr.mxu0 0.0
        %403 = vmatpush1.msra.mxu0 0.0
        %404 = vmatprep.subr.mxu0 0.0
        %405 = vmatpush1.msra.mxu0 0.0
        %406 = vmatprep.subr.mxu0 0.0
        %407 = vmatpush1.msra.mxu0 0.0
        %408 = vmatprep.subr.mxu0 0.0
        %409 = vmatpush1.msra.mxu0 0.0
        %410 = vmatprep.subr.mxu0 0.0
        %411 = vmatpush1.msra.mxu0 0.0
        %412 = vmatprep.subr.mxu0 0.0
        %413 = vmatpush1.msra.mxu0 0.0
        %414 = vmatprep.subr.mxu0 0.0
        %415 = vmatpush1.msra.mxu0 0.0
        %416 = vmatprep.subr.mxu0 0.0
        %417 = vmatpush1.msra.mxu0 0.0
        %418 = vmatprep.subr.mxu0 0.0
        %419 = vmatpush1.msra.mxu0 0.0
        %420 = vmatprep.subr.mxu0 0.0
        %421 = vmatpush1.msra.mxu0 0.0
        %422 = vmatprep.subr.mxu0 0.0
        %423 = vmatpush1.msra.mxu0 0.0
        %424 = vmatprep.subr.mxu0 %v388
        %425 = vmatpush1.msra.mxu0 %v385
        %426 = vmatprep.subr.mxu0 %v327
        %427 = vmatpush1.msra.mxu0 %v326
        %428 = vmatprep.subr.mxu0 0.0
        %429 = vmatpush2.msra.mxu0 0.0
        %430 = vmatprep.subr.mxu0 0.0
        %431 = vmatpush2.msra.mxu0 0.0
        %432 = vmatprep.subr.mxu0 0.0
        %433 = vmatpush2.msra.mxu0 0.0
        %434 = vmatprep.subr.mxu0 0.0
        %435 = vmatpush2.msra.mxu0 0.0
        %436 = vmatprep.subr.mxu0 0.0
        %437 = vmatpush2.msra.mxu0 0.0
        %438 = vmatprep.subr.mxu0 0.0
        %439 = vmatpush2.msra.mxu0 0.0
        %440 = vmatprep.subr.mxu0 0.0
        %441 = vmatpush2.msra.mxu0 0.0
        %442 = vmatprep.subr.mxu0 0.0
        %443 = vmatpush2.msra.mxu0 0.0
        %444 = vmatprep.subr.mxu0 0.0
        %445 = vmatpush2.msra.mxu0 0.0
        %446 = vmatprep.subr.mxu0 0.0
        %447 = vmatpush2.msra.mxu0 0.0
        %448 = vmatprep.subr.mxu0 0.0
        %449 = vmatpush2.msra.mxu0 0.0
        %450 = vmatprep.subr.mxu0 0.0
        %451 = vmatpush2.msra.mxu0 0.0
        %452 = vmatprep.subr.mxu0 0.0
        %453 = vmatpush2.msra.mxu0 0.0
        %454 = vmatprep.subr.mxu0 0.0
        %455 = vmatpush2.msra.mxu0 0.0
        %456 = vmatprep.subr.mxu0 0.0
        %457 = vmatpush2.msra.mxu0 0.0
        %458 = vmatprep.subr.mxu0 0.0
        %459 = vmatpush2.msra.mxu0 0.0
        %460 = vmatprep.mubr.f32.mxu0 0.0
        %461 = vmatmul.mubr.f32.gmra.mxu0 %v336
        %v462 = vpop.f32.mrf.mxu0
        %v463 = vadd.f32 0.0, %v462
        %v464 = vpop.f32.mrf.mxu0
        %v465 = vadd.f32 0.0, %v464
        %466 = vmatprep.mubr.f32.mxu0 0.0
        %467 = vmatmul.mubr.f32.gmra.mxu0 %v339
        %v468 = vpop.f32.mrf.mxu0
        %v469 = vadd.f32 0.0, %v468
        %v470 = vpop.f32.mrf.mxu0
        %v471 = vadd.f32 0.0, %v470
        %472 = vmatprep.mubr.f32.mxu0 0.0
        %473 = vmatmul.mubr.f32.gmra.mxu0 %v342
        %v474 = vpop.f32.mrf.mxu0
        %v475 = vadd.f32 0.0, %v474
        %v476 = vpop.f32.mrf.mxu0
        %v477 = vadd.f32 0.0, %v476
        %478 = vmatprep.mubr.f32.mxu0 0.0
        %479 = vmatmul.mubr.f32.gmra.mxu0 %v345
        %v480 = vpop.f32.mrf.mxu0
        %v481 = vadd.f32 0.0, %v480
        %v482 = vpop.f32.mrf.mxu0
        %v483 = vadd.f32 0.0, %v482
        %484 = vmatprep.mubr.f32.mxu0 0.0
        %485 = vmatmul.mubr.f32.gmra.mxu0 %v348
        %v486 = vpop.f32.mrf.mxu0
        %v487 = vadd.f32 0.0, %v486
        %v488 = vpop.f32.mrf.mxu0
        %v489 = vadd.f32 0.0, %v488
        %490 = vmatprep.mubr.f32.mxu0 0.0
        %491 = vmatmul.mubr.f32.gmra.mxu0 %v351
        %v492 = vpop.f32.mrf.mxu0
        %v493 = vadd.f32 0.0, %v492
        %v494 = vpop.f32.mrf.mxu0
        %v495 = vadd.f32 0.0, %v494
        %496 = vmatprep.mubr.f32.mxu0 0.0
        %497 = vmatmul.mubr.f32.gmra.mxu0 %v354
        %v498 = vpop.f32.mrf.mxu0
        %v499 = vadd.f32 0.0, %v498
        %v500 = vpop.f32.mrf.mxu0
        %v501 = vadd.f32 0.0, %v500
        %502 = vmatprep.mubr.f32.mxu0 0.0
        %503 = vmatmul.mubr.f32.gmra.mxu0 %v357
        %v504 = vpop.f32.mrf.mxu0
        %v505 = vadd.f32 0.0, %v504
        %v506 = vpop.f32.mrf.mxu0
        %v507 = vadd.f32 0.0, %v506
        %508 = vmatprep.mubr.f32.mxu0 0.0
        %509 = vmatmul.mubr.f32.gmra.mxu0 %v360
        %v510 = vpop.f32.mrf.mxu0
        %v511 = vadd.f32 0.0, %v510
        %v512 = vpop.f32.mrf.mxu0
        %v513 = vadd.f32 0.0, %v512
        %514 = vmatprep.mubr.f32.mxu0 0.0
        %515 = vmatmul.mubr.f32.gmra.mxu0 %v363
        %v516 = vpop.f32.mrf.mxu0
        %v517 = vadd.f32 0.0, %v516
        %v518 = vpop.f32.mrf.mxu0
        %v519 = vadd.f32 0.0, %v518
        %520 = vmatprep.mubr.f32.mxu0 0.0
        %521 = vmatmul.mubr.f32.gmra.mxu0 %v366
        %v522 = vpop.f32.mrf.mxu0
        %v523 = vadd.f32 0.0, %v522
        %v524 = vpop.f32.mrf.mxu0
        %v525 = vadd.f32 0.0, %v524
        %526 = vmatprep.mubr.f32.mxu0 0.0
        %527 = vmatmul.mubr.f32.gmra.mxu0 %v369
        %v528 = vpop.f32.mrf.mxu0
        %v529 = vadd.f32 0.0, %v528
        %v530 = vpop.f32.mrf.mxu0
        %v531 = vadd.f32 0.0, %v530
        %532 = vmatprep.mubr.f32.mxu0 0.0
        %533 = vmatmul.mubr.f32.gmra.mxu0 %v372
        %v534 = vpop.f32.mrf.mxu0
        %v535 = vadd.f32 0.0, %v534
        %v536 = vpop.f32.mrf.mxu0
        %v537 = vadd.f32 0.0, %v536
        %538 = vmatprep.mubr.f32.mxu0 0.0
        %539 = vmatmul.mubr.f32.gmra.mxu0 %v375
        %v540 = vpop.f32.mrf.mxu0
        %v541 = vadd.f32 0.0, %v540
        %v542 = vpop.f32.mrf.mxu0
        %v543 = vadd.f32 0.0, %v542
        %544 = vmatprep.mubr.f32.mxu0 0.0
        %545 = vmatmul.mubr.f32.gmra.mxu0 %v378
        %v546 = vpop.f32.mrf.mxu0
        %v547 = vadd.f32 0.0, %v546
        %v548 = vpop.f32.mrf.mxu0
        %v549 = vadd.f32 0.0, %v548
        %550 = vmatprep.mubr.f32.mxu0 0.0
        %551 = vmatmul.mubr.f32.gmra.mxu0 %v381
        %v552 = vpop.f32.mrf.mxu0
        %v553 = vadd.f32 0.0, %v552
        %v554 = vpop.f32.mrf.mxu0
        %v555 = vadd.f32 0.0, %v554
        %556 = vdwg.mxu0
        %557 = vmatprep.subr.mxu0 0.0
        %558 = vmatpush1.msra.mxu0 0.0
        %559 = vmatprep.subr.mxu0 0.0
        %560 = vmatpush1.msra.mxu0 0.0
        %561 = vmatprep.subr.mxu0 0.0
        %562 = vmatpush1.msra.mxu0 0.0
        %563 = vmatprep.subr.mxu0 0.0
        %564 = vmatpush1.msra.mxu0 0.0
        %565 = vmatprep.subr.mxu0 0.0
        %566 = vmatpush1.msra.mxu0 0.0
        %567 = vmatprep.subr.mxu0 0.0
        %568 = vmatpush1.msra.mxu0 0.0
        %569 = vmatprep.subr.mxu0 0.0
        %570 = vmatpush1.msra.mxu0 0.0
        %571 = vmatprep.subr.mxu0 0.0
        %572 = vmatpush1.msra.mxu0 0.0
        %573 = vmatprep.subr.mxu0 0.0
        %574 = vmatpush1.msra.mxu0 0.0
        %575 = vmatprep.subr.mxu0 0.0
        %576 = vmatpush1.msra.mxu0 0.0
        %577 = vmatprep.subr.mxu0 0.0
        %578 = vmatpush1.msra.mxu0 0.0
        %579 = vmatprep.subr.mxu0 0.0
        %580 = vmatpush1.msra.mxu0 0.0
        %581 = vmatprep.subr.mxu0 0.0
        %582 = vmatpush1.msra.mxu0 0.0
        %583 = vmatprep.subr.mxu0 0.0
        %584 = vmatpush1.msra.mxu0 0.0
        %585 = vmatprep.subr.mxu0 %v394
        %586 = vmatpush1.msra.mxu0 %v391
        %587 = vmatprep.subr.mxu0 %v329
        %588 = vmatpush1.msra.mxu0 %v328
        %589 = vmatprep.subr.mxu0 0.0
        %590 = vmatpush2.msra.mxu0 0.0
        %591 = vmatprep.subr.mxu0 0.0
        %592 = vmatpush2.msra.mxu0 0.0
        %593 = vmatprep.subr.mxu0 0.0
        %594 = vmatpush2.msra.mxu0 0.0
        %595 = vmatprep.subr.mxu0 0.0
        %596 = vmatpush2.msra.mxu0 0.0
        %597 = vmatprep.subr.mxu0 0.0
        %598 = vmatpush2.msra.mxu0 0.0
        %599 = vmatprep.subr.mxu0 0.0
        %600 = vmatpush2.msra.mxu0 0.0
        %601 = vmatprep.subr.mxu0 0.0
        %602 = vmatpush2.msra.mxu0 0.0
        %603 = vmatprep.subr.mxu0 0.0
        %604 = vmatpush2.msra.mxu0 0.0
        %605 = vmatprep.subr.mxu0 0.0
        %606 = vmatpush2.msra.mxu0 0.0
        %607 = vmatprep.subr.mxu0 0.0
        %608 = vmatpush2.msra.mxu0 0.0
        %609 = vmatprep.subr.mxu0 0.0
        %610 = vmatpush2.msra.mxu0 0.0
        %611 = vmatprep.subr.mxu0 0.0
        %612 = vmatpush2.msra.mxu0 0.0
        %613 = vmatprep.subr.mxu0 0.0
        %614 = vmatpush2.msra.mxu0 0.0
        %615 = vmatprep.subr.mxu0 0.0
        %616 = vmatpush2.msra.mxu0 0.0
        %617 = vmatprep.subr.mxu0 0.0
        %618 = vmatpush2.msra.mxu0 0.0
        %619 = vmatprep.subr.mxu0 0.0
        %620 = vmatpush2.msra.mxu0 0.0
        %621 = vmatprep.mubr.f32.mxu0 0.0
        %622 = vmatmul.mubr.f32.gmra.mxu0 %v336
        %v623 = vpop.f32.mrf.mxu0
        %v624 = vadd.f32 0.0, %v623
        %v625 = vpop.f32.mrf.mxu0
        %v626 = vadd.f32 0.0, %v625
        %627 = vmatprep.mubr.f32.mxu0 0.0
        %628 = vmatmul.mubr.f32.gmra.mxu0 %v339
        %v629 = vpop.f32.mrf.mxu0
        %v630 = vadd.f32 0.0, %v629
        %v631 = vpop.f32.mrf.mxu0
        %v632 = vadd.f32 0.0, %v631
        %633 = vmatprep.mubr.f32.mxu0 0.0
        %634 = vmatmul.mubr.f32.gmra.mxu0 %v342
        %v635 = vpop.f32.mrf.mxu0
        %v636 = vadd.f32 0.0, %v635
        %v637 = vpop.f32.mrf.mxu0
        %v638 = vadd.f32 0.0, %v637
        %639 = vmatprep.mubr.f32.mxu0 0.0
        %640 = vmatmul.mubr.f32.gmra.mxu0 %v345
        %v641 = vpop.f32.mrf.mxu0
        %v642 = vadd.f32 0.0, %v641
        %v643 = vpop.f32.mrf.mxu0
        %v644 = vadd.f32 0.0, %v643
        %645 = vmatprep.mubr.f32.mxu0 0.0
        %646 = vmatmul.mubr.f32.gmra.mxu0 %v348
        %v647 = vpop.f32.mrf.mxu0
        %v648 = vadd.f32 0.0, %v647
        %v649 = vpop.f32.mrf.mxu0
        %v650 = vadd.f32 0.0, %v649
        %651 = vmatprep.mubr.f32.mxu0 0.0
        %652 = vmatmul.mubr.f32.gmra.mxu0 %v351
        %v653 = vpop.f32.mrf.mxu0
        %v654 = vadd.f32 0.0, %v653
        %v655 = vpop.f32.mrf.mxu0
        %v656 = vadd.f32 0.0, %v655
        %657 = vmatprep.mubr.f32.mxu0 0.0
        %658 = vmatmul.mubr.f32.gmra.mxu0 %v354
        %v659 = vpop.f32.mrf.mxu0
        %v660 = vadd.f32 0.0, %v659
        %v661 = vpop.f32.mrf.mxu0
        %v662 = vadd.f32 0.0, %v661
        %663 = vmatprep.mubr.f32.mxu0 0.0
        %664 = vmatmul.mubr.f32.gmra.mxu0 %v357
        %v665 = vpop.f32.mrf.mxu0
        %v666 = vadd.f32 0.0, %v665
        %v667 = vpop.f32.mrf.mxu0
        %v668 = vadd.f32 0.0, %v667
        %669 = vmatprep.mubr.f32.mxu0 0.0
        %670 = vmatmul.mubr.f32.gmra.mxu0 %v360
        %v671 = vpop.f32.mrf.mxu0
        %v672 = vadd.f32 0.0, %v671
        %v673 = vpop.f32.mrf.mxu0
        %v674 = vadd.f32 0.0, %v673
        %675 = vmatprep.mubr.f32.mxu0 0.0
        %676 = vmatmul.mubr.f32.gmra.mxu0 %v363
        %v677 = vpop.f32.mrf.mxu0
        %v678 = vadd.f32 0.0, %v677
        %v679 = vpop.f32.mrf.mxu0
        %v680 = vadd.f32 0.0, %v679
        %681 = vmatprep.mubr.f32.mxu0 0.0
        %682 = vmatmul.mubr.f32.gmra.mxu0 %v366
        %v683 = vpop.f32.mrf.mxu0
        %v684 = vadd.f32 0.0, %v683
        %v685 = vpop.f32.mrf.mxu0
        %v686 = vadd.f32 0.0, %v685
        %687 = vmatprep.mubr.f32.mxu0 0.0
        %688 = vmatmul.mubr.f32.gmra.mxu0 %v369
        %v689 = vpop.f32.mrf.mxu0
        %v690 = vadd.f32 0.0, %v689
        %v691 = vpop.f32.mrf.mxu0
        %v692 = vadd.f32 0.0, %v691
        %693 = vmatprep.mubr.f32.mxu0 0.0
        %694 = vmatmul.mubr.f32.gmra.mxu0 %v372
        %v695 = vpop.f32.mrf.mxu0
        %v696 = vadd.f32 0.0, %v695
        %v697 = vpop.f32.mrf.mxu0
        %v698 = vadd.f32 0.0, %v697
        %699 = vmatprep.mubr.f32.mxu0 0.0
        %700 = vmatmul.mubr.f32.gmra.mxu0 %v375
        %v701 = vpop.f32.mrf.mxu0
        %v702 = vadd.f32 0.0, %v701
        %v703 = vpop.f32.mrf.mxu0
        %v704 = vadd.f32 0.0, %v703
        %705 = vmatprep.mubr.f32.mxu0 0.0
        %706 = vmatmul.mubr.f32.gmra.mxu0 %v378
        %v707 = vpop.f32.mrf.mxu0
        %v708 = vadd.f32 0.0, %v707
        %v709 = vpop.f32.mrf.mxu0
        %v710 = vadd.f32 0.0, %v709
        %711 = vmatprep.mubr.f32.mxu0 0.0
        %712 = vmatmul.mubr.f32.gmra.mxu0 %v381
        %v713 = vpop.f32.mrf.mxu0
        %v714 = vadd.f32 0.0, %v713
        %v715 = vpop.f32.mrf.mxu0
        %v716 = vadd.f32 0.0, %v715
        %717 = vdwg.mxu0
        %v718 = vld [vmem:[%s3] sm:$0x1]
        %v719 = vld [vmem:[%s3 + $0x1] sm:$0x1]
        %v720 = vld [vmem:[%s3 + $0x2] sm:$0x1]
        %v721 = vlaneseq
        %v722 = vshrl.u32 %v721, 7
        %v723 = vsub.s32 0, %v722
        %v724 = vrot.slane %v718, %v723
        %v725 = vadd.f32 %v463, %v724
        %v726 = vadd.f32 %v469, %v724
        %v727 = vadd.f32 %v475, %v724
        %v728 = vadd.f32 %v481, %v724
        %v729 = vadd.f32 %v487, %v724
        %v730 = vadd.f32 %v493, %v724
        %v731 = vadd.f32 %v499, %v724
        %v732 = vadd.f32 %v505, %v724
        %v733 = vadd.f32 %v511, %v724
        %v734 = vadd.f32 %v517, %v724
        %v735 = vadd.f32 %v523, %v724
        %v736 = vadd.f32 %v529, %v724
        %v737 = vadd.f32 %v535, %v724
        %v738 = vadd.f32 %v541, %v724
        %v739 = vadd.f32 %v547, %v724
        %v740 = vadd.f32 %v553, %v724
        %v741 = vmax.f32 %v725, 0.0
        %v742 = vmax.f32 %v726, 0.0
        %v743 = vmax.f32 %v727, 0.0
        %v744 = vmax.f32 %v728, 0.0
        %v745 = vmax.f32 %v729, 0.0
        %v746 = vmax.f32 %v730, 0.0
        %v747 = vmax.f32 %v731, 0.0
        %v748 = vmax.f32 %v732, 0.0
        %v749 = vmax.f32 %v733, 0.0
        %v750 = vmax.f32 %v734, 0.0
        %v751 = vmax.f32 %v735, 0.0
        %v752 = vmax.f32 %v736, 0.0
        %v753 = vmax.f32 %v737, 0.0
        %v754 = vmax.f32 %v738, 0.0
        %v755 = vmax.f32 %v739, 0.0
        %v756 = vmax.f32 %v740, 0.0
        %757 = vadd.xlane.f32.xlu0 %v741
        %v758 = vpop.xlane.xlu0 %757
        %759 = vadd.xlane.f32.xlu0 %v742
        %v760 = vpop.xlane.xlu0 %759
        %761 = vadd.xlane.f32.xlu0 %v743
        %v762 = vpop.xlane.xlu0 %761
        %763 = vadd.xlane.f32.xlu0 %v744
        %v764 = vpop.xlane.xlu0 %763
        %765 = vadd.xlane.f32.xlu0 %v745
        %v766 = vpop.xlane.xlu0 %765
        %767 = vadd.xlane.f32.xlu0 %v746
        %v768 = vpop.xlane.xlu0 %767
        %769 = vadd.xlane.f32.xlu0 %v747
        %v770 = vpop.xlane.xlu0 %769
        %771 = vadd.xlane.f32.xlu0 %v748
        %v772 = vpop.xlane.xlu0 %771
        %773 = vadd.xlane.f32.xlu0 %v749
        %v774 = vpop.xlane.xlu0 %773
        %775 = vadd.xlane.f32.xlu0 %v750
        %v776 = vpop.xlane.xlu0 %775
        %777 = vadd.xlane.f32.xlu0 %v751
        %v778 = vpop.xlane.xlu0 %777
        %779 = vadd.xlane.f32.xlu0 %v752
        %v780 = vpop.xlane.xlu0 %779
        %781 = vadd.xlane.f32.xlu0 %v753
        %v782 = vpop.xlane.xlu0 %781
        %783 = vadd.xlane.f32.xlu0 %v754
        %v784 = vpop.xlane.xlu0 %783
        %785 = vadd.xlane.f32.xlu0 %v755
        %v786 = vpop.xlane.xlu0 %785
        %787 = vadd.xlane.f32.xlu0 %v756
        %v788 = vpop.xlane.xlu0 %787
        %v789 = vrcp.pop 128.0
        %v790 = vmul.f32 %v758, %v789
        %v791 = vmul.f32 %v760, %v789
        %v792 = vmul.f32 %v762, %v789
        %v793 = vmul.f32 %v764, %v789
        %v794 = vmul.f32 %v766, %v789
        %v795 = vmul.f32 %v768, %v789
        %v796 = vmul.f32 %v770, %v789
        %v797 = vmul.f32 %v772, %v789
        %v798 = vmul.f32 %v774, %v789
        %v799 = vmul.f32 %v776, %v789
        %v800 = vmul.f32 %v778, %v789
        %v801 = vmul.f32 %v780, %v789
        %v802 = vmul.f32 %v782, %v789
        %v803 = vmul.f32 %v784, %v789
        %v804 = vmul.f32 %v786, %v789
        %v805 = vmul.f32 %v788, %v789
        %v806 = vmul.f32 %v741, %v741
        %v807 = vmul.f32 %v742, %v742
        %v808 = vmul.f32 %v743, %v743
        %v809 = vmul.f32 %v744, %v744
        %v810 = vmul.f32 %v745, %v745
        %v811 = vmul.f32 %v746, %v746
        %v812 = vmul.f32 %v747, %v747
        %v813 = vmul.f32 %v748, %v748
        %v814 = vmul.f32 %v749, %v749
        %v815 = vmul.f32 %v750, %v750
        %v816 = vmul.f32 %v751, %v751
        %v817 = vmul.f32 %v752, %v752
        %v818 = vmul.f32 %v753, %v753
        %v819 = vmul.f32 %v754, %v754
        %v820 = vmul.f32 %v755, %v755
        %v821 = vmul.f32 %v756, %v756
        %822 = vadd.xlane.f32.xlu0 %v806
        %v823 = vpop.xlane.xlu0 %822
        %824 = vadd.xlane.f32.xlu0 %v807
        %v825 = vpop.xlane.xlu0 %824
        %826 = vadd.xlane.f32.xlu0 %v808
        %v827 = vpop.xlane.xlu0 %826
        %828 = vadd.xlane.f32.xlu0 %v809
        %v829 = vpop.xlane.xlu0 %828
        %830 = vadd.xlane.f32.xlu0 %v810
        %v831 = vpop.xlane.xlu0 %830
        %832 = vadd.xlane.f32.xlu0 %v811
        %v833 = vpop.xlane.xlu0 %832
        %834 = vadd.xlane.f32.xlu0 %v812
        %v835 = vpop.xlane.xlu0 %834
        %836 = vadd.xlane.f32.xlu0 %v813
        %v837 = vpop.xlane.xlu0 %836
        %838 = vadd.xlane.f32.xlu0 %v814
        %v839 = vpop.xlane.xlu0 %838
        %840 = vadd.xlane.f32.xlu0 %v815
        %v841 = vpop.xlane.xlu0 %840
        %842 = vadd.xlane.f32.xlu0 %v816
        %v843 = vpop.xlane.xlu0 %842
        %844 = vadd.xlane.f32.xlu0 %v817
        %v845 = vpop.xlane.xlu0 %844
        %846 = vadd.xlane.f32.xlu0 %v818
        %v847 = vpop.xlane.xlu0 %846
        %848 = vadd.xlane.f32.xlu0 %v819
        %v849 = vpop.xlane.xlu0 %848
        %850 = vadd.xlane.f32.xlu0 %v820
        %v851 = vpop.xlane.xlu0 %850
        %852 = vadd.xlane.f32.xlu0 %v821
        %v853 = vpop.xlane.xlu0 %852
        %v854 = vmul.f32 %v823, %v789
        %v855 = vmul.f32 %v825, %v789
        %v856 = vmul.f32 %v827, %v789
        %v857 = vmul.f32 %v829, %v789
        %v858 = vmul.f32 %v831, %v789
        %v859 = vmul.f32 %v833, %v789
        %v860 = vmul.f32 %v835, %v789
        %v861 = vmul.f32 %v837, %v789
        %v862 = vmul.f32 %v839, %v789
        %v863 = vmul.f32 %v841, %v789
        %v864 = vmul.f32 %v843, %v789
        %v865 = vmul.f32 %v845, %v789
        %v866 = vmul.f32 %v847, %v789
        %v867 = vmul.f32 %v849, %v789
        %v868 = vmul.f32 %v851, %v789
        %v869 = vmul.f32 %v853, %v789
        %v870 = vsub.f32 %v741, %v790
        %v871 = vsub.f32 %v742, %v791
        %v872 = vsub.f32 %v743, %v792
        %v873 = vsub.f32 %v744, %v793
        %v874 = vsub.f32 %v745, %v794
        %v875 = vsub.f32 %v746, %v795
        %v876 = vsub.f32 %v747, %v796
        %v877 = vsub.f32 %v748, %v797
        %v878 = vsub.f32 %v749, %v798
        %v879 = vsub.f32 %v750, %v799
        %v880 = vsub.f32 %v751, %v800
        %v881 = vsub.f32 %v752, %v801
        %v882 = vsub.f32 %v753, %v802
        %v883 = vsub.f32 %v754, %v803
        %v884 = vsub.f32 %v755, %v804
        %v885 = vsub.f32 %v756, %v805
        %v886 = vmul.f32 %v790, %v790
        %v887 = vmul.f32 %v791, %v791
        %v888 = vmul.f32 %v792, %v792
        %v889 = vmul.f32 %v793, %v793
        %v890 = vmul.f32 %v794, %v794
        %v891 = vmul.f32 %v795, %v795
        %v892 = vmul.f32 %v796, %v796
        %v893 = vmul.f32 %v797, %v797
        %v894 = vmul.f32 %v798, %v798
        %v895 = vmul.f32 %v799, %v799
        %v896 = vmul.f32 %v800, %v800
        %v897 = vmul.f32 %v801, %v801
        %v898 = vmul.f32 %v802, %v802
        %v899 = vmul.f32 %v803, %v803
        %v900 = vmul.f32 %v804, %v804
        %v901 = vmul.f32 %v805, %v805
        %v902 = vsub.f32 %v854, %v886
        %v903 = vsub.f32 %v855, %v887
        %v904 = vsub.f32 %v856, %v888
        %v905 = vsub.f32 %v857, %v889
        %v906 = vsub.f32 %v858, %v890
        %v907 = vsub.f32 %v859, %v891
        %v908 = vsub.f32 %v860, %v892
        %v909 = vsub.f32 %v861, %v893
        %v910 = vsub.f32 %v862, %v894
        %v911 = vsub.f32 %v863, %v895
        %v912 = vsub.f32 %v864, %v896
        %v913 = vsub.f32 %v865, %v897
        %v914 = vsub.f32 %v866, %v898
        %v915 = vsub.f32 %v867, %v899
        %v916 = vsub.f32 %v868, %v900
        %v917 = vsub.f32 %v869, %v901
        %v918 = vadd.f32 %v902, 1e-05
        %v919 = vadd.f32 %v903, 1e-05
        %v920 = vadd.f32 %v904, 1e-05
        %v921 = vadd.f32 %v905, 1e-05
        %v922 = vadd.f32 %v906, 1e-05
        %v923 = vadd.f32 %v907, 1e-05
        %v924 = vadd.f32 %v908, 1e-05
        %v925 = vadd.f32 %v909, 1e-05
        %v926 = vadd.f32 %v910, 1e-05
        %v927 = vadd.f32 %v911, 1e-05
        %v928 = vadd.f32 %v912, 1e-05
        %v929 = vadd.f32 %v913, 1e-05
        %v930 = vadd.f32 %v914, 1e-05
        %v931 = vadd.f32 %v915, 1e-05
        %v932 = vadd.f32 %v916, 1e-05
        %v933 = vadd.f32 %v917, 1e-05
        %v934 = vrsqrt.pop %v918
        %v935 = vrsqrt.pop %v919
        %v936 = vrsqrt.pop %v920
        %v937 = vrsqrt.pop %v921
        %v938 = vrsqrt.pop %v922
        %v939 = vrsqrt.pop %v923
        %v940 = vrsqrt.pop %v924
        %v941 = vrsqrt.pop %v925
        %v942 = vrsqrt.pop %v926
        %v943 = vrsqrt.pop %v927
        %v944 = vrsqrt.pop %v928
        %v945 = vrsqrt.pop %v929
        %v946 = vrsqrt.pop %v930
        %v947 = vrsqrt.pop %v931
        %v948 = vrsqrt.pop %v932
        %v949 = vrsqrt.pop %v933
        %v950 = vmul.f32 %v870, %v934
        %v951 = vmul.f32 %v871, %v935
        %v952 = vmul.f32 %v872, %v936
        %v953 = vmul.f32 %v873, %v937
        %v954 = vmul.f32 %v874, %v938
        %v955 = vmul.f32 %v875, %v939
        %v956 = vmul.f32 %v876, %v940
        %v957 = vmul.f32 %v877, %v941
        %v958 = vmul.f32 %v878, %v942
        %v959 = vmul.f32 %v879, %v943
        %v960 = vmul.f32 %v880, %v944
        %v961 = vmul.f32 %v881, %v945
        %v962 = vmul.f32 %v882, %v946
        %v963 = vmul.f32 %v883, %v947
        %v964 = vmul.f32 %v884, %v948
        %v965 = vmul.f32 %v885, %v949
        %v966 = vld [vmem:[#allocation5] sm:$0xff]
        %v967 = vld [vmem:[#allocation5 + $0x8] sm:$0xff]
        %v968 = vld [vmem:[#allocation5 + $0x10] sm:$0xff]
        %v969 = vld [vmem:[#allocation5 + $0x18] sm:$0xff]
        %v970 = vld [vmem:[#allocation5 + $0x20] sm:$0xff]
        %v971 = vld [vmem:[#allocation5 + $0x28] sm:$0xff]
        %v972 = vld [vmem:[#allocation5 + $0x30] sm:$0xff]
        %v973 = vld [vmem:[#allocation5 + $0x38] sm:$0xff]
        %v974 = vld [vmem:[#allocation5 + $0x40] sm:$0xff]
        %v975 = vld [vmem:[#allocation5 + $0x48] sm:$0xff]
        %v976 = vld [vmem:[#allocation5 + $0x50] sm:$0xff]
        %v977 = vld [vmem:[#allocation5 + $0x58] sm:$0xff]
        %v978 = vld [vmem:[#allocation5 + $0x60] sm:$0xff]
        %v979 = vld [vmem:[#allocation5 + $0x68] sm:$0xff]
        %v980 = vld [vmem:[#allocation5 + $0x70] sm:$0xff]
        %v981 = vld [vmem:[#allocation5 + $0x78] sm:$0xff]
        %v982 = vlaneseq
        %v983 = vshrl.u32 %v982, 7
        %v984 = vsub.s32 0, %v983
        %v985 = vrot.slane %v719, %v984
        %986 = vmatprep.subr.mxu0 0.0
        %987 = vmatpush1.msra.mxu0 %v981
        %988 = vmatprep.subr.mxu0 0.0
        %989 = vmatpush1.msra.mxu0 %v980
        %990 = vmatprep.subr.mxu0 0.0
        %991 = vmatpush1.msra.mxu0 %v979
        %992 = vmatprep.subr.mxu0 0.0
        %993 = vmatpush1.msra.mxu0 %v978
        %994 = vmatprep.subr.mxu0 0.0
        %995 = vmatpush1.msra.mxu0 %v977
        %996 = vmatprep.subr.mxu0 0.0
        %997 = vmatpush1.msra.mxu0 %v976
        %998 = vmatprep.subr.mxu0 0.0
        %999 = vmatpush1.msra.mxu0 %v975
        %1000 = vmatprep.subr.mxu0 0.0
        %1001 = vmatpush1.msra.mxu0 %v974
        %1002 = vmatprep.subr.mxu0 0.0
        %1003 = vmatpush1.msra.mxu0 %v973
        %1004 = vmatprep.subr.mxu0 0.0
        %1005 = vmatpush1.msra.mxu0 %v972
        %1006 = vmatprep.subr.mxu0 0.0
        %1007 = vmatpush1.msra.mxu0 %v971
        %1008 = vmatprep.subr.mxu0 0.0
        %1009 = vmatpush1.msra.mxu0 %v970
        %1010 = vmatprep.subr.mxu0 0.0
        %1011 = vmatpush1.msra.mxu0 %v969
        %1012 = vmatprep.subr.mxu0 0.0
        %1013 = vmatpush1.msra.mxu0 %v968
        %1014 = vmatprep.subr.mxu0 0.0
        %1015 = vmatpush1.msra.mxu0 %v967
        %1016 = vmatprep.subr.mxu0 0.0
        %1017 = vmatpush1.msra.mxu0 %v966
        %1018 = vmatprep.subr.mxu0 0.0
        %1019 = vmatpush2.msra.mxu0 0.0
        %1020 = vmatprep.subr.mxu0 0.0
        %1021 = vmatpush2.msra.mxu0 0.0
        %1022 = vmatprep.subr.mxu0 0.0
        %1023 = vmatpush2.msra.mxu0 0.0
        %1024 = vmatprep.subr.mxu0 0.0
        %1025 = vmatpush2.msra.mxu0 0.0
        %1026 = vmatprep.subr.mxu0 0.0
        %1027 = vmatpush2.msra.mxu0 0.0
        %1028 = vmatprep.subr.mxu0 0.0
        %1029 = vmatpush2.msra.mxu0 0.0
        %1030 = vmatprep.subr.mxu0 0.0
        %1031 = vmatpush2.msra.mxu0 0.0
        %1032 = vmatprep.subr.mxu0 0.0
        %1033 = vmatpush2.msra.mxu0 0.0
        %1034 = vmatprep.subr.mxu0 0.0
        %1035 = vmatpush2.msra.mxu0 0.0
        %1036 = vmatprep.subr.mxu0 0.0
        %1037 = vmatpush2.msra.mxu0 0.0
        %1038 = vmatprep.subr.mxu0 0.0
        %1039 = vmatpush2.msra.mxu0 0.0
        %1040 = vmatprep.subr.mxu0 0.0
        %1041 = vmatpush2.msra.mxu0 0.0
        %1042 = vmatprep.subr.mxu0 0.0
        %1043 = vmatpush2.msra.mxu0 0.0
        %1044 = vmatprep.subr.mxu0 0.0
        %1045 = vmatpush2.msra.mxu0 0.0
        %1046 = vmatprep.subr.mxu0 0.0
        %1047 = vmatpush2.msra.mxu0 0.0
        %1048 = vmatprep.subr.mxu0 0.0
        %1049 = vmatpush2.msra.mxu0 0.0
        %1050 = vmatprep.mubr.f32.mxu0 0.0
        %1051 = vmatmul.mubr.f32.gmra.mxu0 %v950
        %v1052 = vpop.f32.mrf.mxu0
        %v1053 = vadd.f32 %v985, %v1052
        %v1054 = vpop.f32.mrf.mxu0
        %1055 = vmatprep.mubr.f32.mxu0 0.0
        %1056 = vmatmul.mubr.f32.gmra.mxu0 %v951
        %v1057 = vpop.f32.mrf.mxu0
        %v1058 = vadd.f32 %v985, %v1057
        %v1059 = vpop.f32.mrf.mxu0
        %1060 = vmatprep.mubr.f32.mxu0 0.0
        %1061 = vmatmul.mubr.f32.gmra.mxu0 %v952
        %v1062 = vpop.f32.mrf.mxu0
        %v1063 = vadd.f32 %v985, %v1062
        %v1064 = vpop.f32.mrf.mxu0
        %1065 = vmatprep.mubr.f32.mxu0 0.0
        %1066 = vmatmul.mubr.f32.gmra.mxu0 %v953
        %v1067 = vpop.f32.mrf.mxu0
        %v1068 = vadd.f32 %v985, %v1067
        %v1069 = vpop.f32.mrf.mxu0
        %1070 = vmatprep.mubr.f32.mxu0 0.0
        %1071 = vmatmul.mubr.f32.gmra.mxu0 %v954
        %v1072 = vpop.f32.mrf.mxu0
        %v1073 = vadd.f32 %v985, %v1072
        %v1074 = vpop.f32.mrf.mxu0
        %1075 = vmatprep.mubr.f32.mxu0 0.0
        %1076 = vmatmul.mubr.f32.gmra.mxu0 %v955
        %v1077 = vpop.f32.mrf.mxu0
        %v1078 = vadd.f32 %v985, %v1077
        %v1079 = vpop.f32.mrf.mxu0
        %1080 = vmatprep.mubr.f32.mxu0 0.0
        %1081 = vmatmul.mubr.f32.gmra.mxu0 %v956
        %v1082 = vpop.f32.mrf.mxu0
        %v1083 = vadd.f32 %v985, %v1082
        %v1084 = vpop.f32.mrf.mxu0
        %1085 = vmatprep.mubr.f32.mxu0 0.0
        %1086 = vmatmul.mubr.f32.gmra.mxu0 %v957
        %v1087 = vpop.f32.mrf.mxu0
        %v1088 = vadd.f32 %v985, %v1087
        %v1089 = vpop.f32.mrf.mxu0
        %1090 = vmatprep.mubr.f32.mxu0 0.0
        %1091 = vmatmul.mubr.f32.gmra.mxu0 %v958
        %v1092 = vpop.f32.mrf.mxu0
        %v1093 = vadd.f32 %v985, %v1092
        %v1094 = vpop.f32.mrf.mxu0
        %1095 = vmatprep.mubr.f32.mxu0 0.0
        %1096 = vmatmul.mubr.f32.gmra.mxu0 %v959
        %v1097 = vpop.f32.mrf.mxu0
        %v1098 = vadd.f32 %v985, %v1097
        %v1099 = vpop.f32.mrf.mxu0
        %1100 = vmatprep.mubr.f32.mxu0 0.0
        %1101 = vmatmul.mubr.f32.gmra.mxu0 %v960
        %v1102 = vpop.f32.mrf.mxu0
        %v1103 = vadd.f32 %v985, %v1102
        %v1104 = vpop.f32.mrf.mxu0
        %1105 = vmatprep.mubr.f32.mxu0 0.0
        %1106 = vmatmul.mubr.f32.gmra.mxu0 %v961
        %v1107 = vpop.f32.mrf.mxu0
        %v1108 = vadd.f32 %v985, %v1107
        %v1109 = vpop.f32.mrf.mxu0
        %1110 = vmatprep.mubr.f32.mxu0 0.0
        %1111 = vmatmul.mubr.f32.gmra.mxu0 %v962
        %v1112 = vpop.f32.mrf.mxu0
        %v1113 = vadd.f32 %v985, %v1112
        %v1114 = vpop.f32.mrf.mxu0
        %1115 = vmatprep.mubr.f32.mxu0 0.0
        %1116 = vmatmul.mubr.f32.gmra.mxu0 %v963
        %v1117 = vpop.f32.mrf.mxu0
        %v1118 = vadd.f32 %v985, %v1117
        %v1119 = vpop.f32.mrf.mxu0
        %1120 = vmatprep.mubr.f32.mxu0 0.0
        %1121 = vmatmul.mubr.f32.gmra.mxu0 %v964
        %v1122 = vpop.f32.mrf.mxu0
        %v1123 = vadd.f32 %v985, %v1122
        %v1124 = vpop.f32.mrf.mxu0
        %1125 = vmatprep.mubr.f32.mxu0 0.0
        %1126 = vmatmul.mubr.f32.gmra.mxu0 %v965
        %v1127 = vpop.f32.mrf.mxu0
        %v1128 = vadd.f32 %v985, %v1127
        %v1129 = vpop.f32.mrf.mxu0
        %1130 = vdwg.mxu0
        %v1131 = vmax.f32 %v1053, 0.0
        %v1132 = vmax.f32 %v1058, 0.0
        %v1133 = vmax.f32 %v1063, 0.0
        %v1134 = vmax.f32 %v1068, 0.0
        %v1135 = vmax.f32 %v1073, 0.0
        %v1136 = vmax.f32 %v1078, 0.0
        %v1137 = vmax.f32 %v1083, 0.0
        %v1138 = vmax.f32 %v1088, 0.0
        %v1139 = vmax.f32 %v1093, 0.0
        %v1140 = vmax.f32 %v1098, 0.0
        %v1141 = vmax.f32 %v1103, 0.0
        %v1142 = vmax.f32 %v1108, 0.0
        %v1143 = vmax.f32 %v1113, 0.0
        %v1144 = vmax.f32 %v1118, 0.0
        %v1145 = vmax.f32 %v1123, 0.0
        %v1146 = vmax.f32 %v1128, 0.0
        %1147 = vadd.xlane.f32.xlu0 %v1131
        %v1148 = vpop.xlane.xlu0 %1147
        %1149 = vadd.xlane.f32.xlu0 %v1132
        %v1150 = vpop.xlane.xlu0 %1149
        %1151 = vadd.xlane.f32.xlu0 %v1133
        %v1152 = vpop.xlane.xlu0 %1151
        %1153 = vadd.xlane.f32.xlu0 %v1134
        %v1154 = vpop.xlane.xlu0 %1153
        %1155 = vadd.xlane.f32.xlu0 %v1135
        %v1156 = vpop.xlane.xlu0 %1155
        %1157 = vadd.xlane.f32.xlu0 %v1136
        %v1158 = vpop.xlane.xlu0 %1157
        %1159 = vadd.xlane.f32.xlu0 %v1137
        %v1160 = vpop.xlane.xlu0 %1159
        %1161 = vadd.xlane.f32.xlu0 %v1138
        %v1162 = vpop.xlane.xlu0 %1161
        %1163 = vadd.xlane.f32.xlu0 %v1139
        %v1164 = vpop.xlane.xlu0 %1163
        %1165 = vadd.xlane.f32.xlu0 %v1140
        %v1166 = vpop.xlane.xlu0 %1165
        %1167 = vadd.xlane.f32.xlu0 %v1141
        %v1168 = vpop.xlane.xlu0 %1167
        %1169 = vadd.xlane.f32.xlu0 %v1142
        %v1170 = vpop.xlane.xlu0 %1169
        %1171 = vadd.xlane.f32.xlu0 %v1143
        %v1172 = vpop.xlane.xlu0 %1171
        %1173 = vadd.xlane.f32.xlu0 %v1144
        %v1174 = vpop.xlane.xlu0 %1173
        %1175 = vadd.xlane.f32.xlu0 %v1145
        %v1176 = vpop.xlane.xlu0 %1175
        %1177 = vadd.xlane.f32.xlu0 %v1146
        %v1178 = vpop.xlane.xlu0 %1177
        %v1179 = vmul.f32 %v1148, %v789
        %v1180 = vmul.f32 %v1150, %v789
        %v1181 = vmul.f32 %v1152, %v789
        %v1182 = vmul.f32 %v1154, %v789
        %v1183 = vmul.f32 %v1156, %v789
        %v1184 = vmul.f32 %v1158, %v789
        %v1185 = vmul.f32 %v1160, %v789
        %v1186 = vmul.f32 %v1162, %v789
        %v1187 = vmul.f32 %v1164, %v789
        %v1188 = vmul.f32 %v1166, %v789
        %v1189 = vmul.f32 %v1168, %v789
        %v1190 = vmul.f32 %v1170, %v789
        %v1191 = vmul.f32 %v1172, %v789
        %v1192 = vmul.f32 %v1174, %v789
        %v1193 = vmul.f32 %v1176, %v789
        %v1194 = vmul.f32 %v1178, %v789
        %v1195 = vmul.f32 %v1131, %v1131
        %v1196 = vmul.f32 %v1132, %v1132
        %v1197 = vmul.f32 %v1133, %v1133
        %v1198 = vmul.f32 %v1134, %v1134
        %v1199 = vmul.f32 %v1135, %v1135
        %v1200 = vmul.f32 %v1136, %v1136
        %v1201 = vmul.f32 %v1137, %v1137
        %v1202 = vmul.f32 %v1138, %v1138
        %v1203 = vmul.f32 %v1139, %v1139
        %v1204 = vmul.f32 %v1140, %v1140
        %v1205 = vmul.f32 %v1141, %v1141
        %v1206 = vmul.f32 %v1142, %v1142
        %v1207 = vmul.f32 %v1143, %v1143
        %v1208 = vmul.f32 %v1144, %v1144
        %v1209 = vmul.f32 %v1145, %v1145
        %v1210 = vmul.f32 %v1146, %v1146
        %1211 = vadd.xlane.f32.xlu0 %v1195
        %v1212 = vpop.xlane.xlu0 %1211
        %1213 = vadd.xlane.f32.xlu0 %v1196
        %v1214 = vpop.xlane.xlu0 %1213
        %1215 = vadd.xlane.f32.xlu0 %v1197
        %v1216 = vpop.xlane.xlu0 %1215
        %1217 = vadd.xlane.f32.xlu0 %v1198
        %v1218 = vpop.xlane.xlu0 %1217
        %1219 = vadd.xlane.f32.xlu0 %v1199
        %v1220 = vpop.xlane.xlu0 %1219
        %1221 = vadd.xlane.f32.xlu0 %v1200
        %v1222 = vpop.xlane.xlu0 %1221
        %1223 = vadd.xlane.f32.xlu0 %v1201
        %v1224 = vpop.xlane.xlu0 %1223
        %1225 = vadd.xlane.f32.xlu0 %v1202
        %v1226 = vpop.xlane.xlu0 %1225
        %1227 = vadd.xlane.f32.xlu0 %v1203
        %v1228 = vpop.xlane.xlu0 %1227
        %1229 = vadd.xlane.f32.xlu0 %v1204
        %v1230 = vpop.xlane.xlu0 %1229
        %1231 = vadd.xlane.f32.xlu0 %v1205
        %v1232 = vpop.xlane.xlu0 %1231
        %1233 = vadd.xlane.f32.xlu0 %v1206
        %v1234 = vpop.xlane.xlu0 %1233
        %1235 = vadd.xlane.f32.xlu0 %v1207
        %v1236 = vpop.xlane.xlu0 %1235
        %1237 = vadd.xlane.f32.xlu0 %v1208
        %v1238 = vpop.xlane.xlu0 %1237
        %1239 = vadd.xlane.f32.xlu0 %v1209
        %v1240 = vpop.xlane.xlu0 %1239
        %1241 = vadd.xlane.f32.xlu0 %v1210
        %v1242 = vpop.xlane.xlu0 %1241
        %v1243 = vmul.f32 %v1212, %v789
        %v1244 = vmul.f32 %v1214, %v789
        %v1245 = vmul.f32 %v1216, %v789
        %v1246 = vmul.f32 %v1218, %v789
        %v1247 = vmul.f32 %v1220, %v789
        %v1248 = vmul.f32 %v1222, %v789
        %v1249 = vmul.f32 %v1224, %v789
        %v1250 = vmul.f32 %v1226, %v789
        %v1251 = vmul.f32 %v1228, %v789
        %v1252 = vmul.f32 %v1230, %v789
        %v1253 = vmul.f32 %v1232, %v789
        %v1254 = vmul.f32 %v1234, %v789
        %v1255 = vmul.f32 %v1236, %v789
        %v1256 = vmul.f32 %v1238, %v789
        %v1257 = vmul.f32 %v1240, %v789
        %v1258 = vmul.f32 %v1242, %v789
        %v1259 = vsub.f32 %v1131, %v1179
        %v1260 = vsub.f32 %v1132, %v1180
        %v1261 = vsub.f32 %v1133, %v1181
        %v1262 = vsub.f32 %v1134, %v1182
        %v1263 = vsub.f32 %v1135, %v1183
        %v1264 = vsub.f32 %v1136, %v1184
        %v1265 = vsub.f32 %v1137, %v1185
        %v1266 = vsub.f32 %v1138, %v1186
        %v1267 = vsub.f32 %v1139, %v1187
        %v1268 = vsub.f32 %v1140, %v1188
        %v1269 = vsub.f32 %v1141, %v1189
        %v1270 = vsub.f32 %v1142, %v1190
        %v1271 = vsub.f32 %v1143, %v1191
        %v1272 = vsub.f32 %v1144, %v1192
        %v1273 = vsub.f32 %v1145, %v1193
        %v1274 = vsub.f32 %v1146, %v1194
        %v1275 = vmul.f32 %v1179, %v1179
        %v1276 = vmul.f32 %v1180, %v1180
        %v1277 = vmul.f32 %v1181, %v1181
        %v1278 = vmul.f32 %v1182, %v1182
        %v1279 = vmul.f32 %v1183, %v1183
        %v1280 = vmul.f32 %v1184, %v1184
        %v1281 = vmul.f32 %v1185, %v1185
        %v1282 = vmul.f32 %v1186, %v1186
        %v1283 = vmul.f32 %v1187, %v1187
        %v1284 = vmul.f32 %v1188, %v1188
        %v1285 = vmul.f32 %v1189, %v1189
        %v1286 = vmul.f32 %v1190, %v1190
        %v1287 = vmul.f32 %v1191, %v1191
        %v1288 = vmul.f32 %v1192, %v1192
        %v1289 = vmul.f32 %v1193, %v1193
        %v1290 = vmul.f32 %v1194, %v1194
        %v1291 = vsub.f32 %v1243, %v1275
        %v1292 = vsub.f32 %v1244, %v1276
        %v1293 = vsub.f32 %v1245, %v1277
        %v1294 = vsub.f32 %v1246, %v1278
        %v1295 = vsub.f32 %v1247, %v1279
        %v1296 = vsub.f32 %v1248, %v1280
        %v1297 = vsub.f32 %v1249, %v1281
        %v1298 = vsub.f32 %v1250, %v1282
        %v1299 = vsub.f32 %v1251, %v1283
        %v1300 = vsub.f32 %v1252, %v1284
        %v1301 = vsub.f32 %v1253, %v1285
        %v1302 = vsub.f32 %v1254, %v1286
        %v1303 = vsub.f32 %v1255, %v1287
        %v1304 = vsub.f32 %v1256, %v1288
        %v1305 = vsub.f32 %v1257, %v1289
        %v1306 = vsub.f32 %v1258, %v1290
        %v1307 = vadd.f32 %v1291, 1e-05
        %v1308 = vadd.f32 %v1292, 1e-05
        %v1309 = vadd.f32 %v1293, 1e-05
        %v1310 = vadd.f32 %v1294, 1e-05
        %v1311 = vadd.f32 %v1295, 1e-05
        %v1312 = vadd.f32 %v1296, 1e-05
        %v1313 = vadd.f32 %v1297, 1e-05
        %v1314 = vadd.f32 %v1298, 1e-05
        %v1315 = vadd.f32 %v1299, 1e-05
        %v1316 = vadd.f32 %v1300, 1e-05
        %v1317 = vadd.f32 %v1301, 1e-05
        %v1318 = vadd.f32 %v1302, 1e-05
        %v1319 = vadd.f32 %v1303, 1e-05
        %v1320 = vadd.f32 %v1304, 1e-05
        %v1321 = vadd.f32 %v1305, 1e-05
        %v1322 = vadd.f32 %v1306, 1e-05
        %v1323 = vrsqrt.pop %v1307
        %v1324 = vrsqrt.pop %v1308
        %v1325 = vrsqrt.pop %v1309
        %v1326 = vrsqrt.pop %v1310
        %v1327 = vrsqrt.pop %v1311
        %v1328 = vrsqrt.pop %v1312
        %v1329 = vrsqrt.pop %v1313
        %v1330 = vrsqrt.pop %v1314
        %v1331 = vrsqrt.pop %v1315
        %v1332 = vrsqrt.pop %v1316
        %v1333 = vrsqrt.pop %v1317
        %v1334 = vrsqrt.pop %v1318
        %v1335 = vrsqrt.pop %v1319
        %v1336 = vrsqrt.pop %v1320
        %v1337 = vrsqrt.pop %v1321
        %v1338 = vrsqrt.pop %v1322
        %v1339 = vmul.f32 %v1259, %v1323
        %v1340 = vmul.f32 %v1260, %v1324
        %v1341 = vmul.f32 %v1261, %v1325
        %v1342 = vmul.f32 %v1262, %v1326
        %v1343 = vmul.f32 %v1263, %v1327
        %v1344 = vmul.f32 %v1264, %v1328
        %v1345 = vmul.f32 %v1265, %v1329
        %v1346 = vmul.f32 %v1266, %v1330
        %v1347 = vmul.f32 %v1267, %v1331
        %v1348 = vmul.f32 %v1268, %v1332
        %v1349 = vmul.f32 %v1269, %v1333
        %v1350 = vmul.f32 %v1270, %v1334
        %v1351 = vmul.f32 %v1271, %v1335
        %v1352 = vmul.f32 %v1272, %v1336
        %v1353 = vmul.f32 %v1273, %v1337
        %v1354 = vmul.f32 %v1274, %v1338
        %v1355 = vlaneseq
        %v1356 = vshrl.u32 %v1355, 7
        %v1357 = vsub.s32 0, %v1356
        %v1358 = vrot.slane %v720, %v1357
        %v1359 = vmul.f32 %v1339, %v1358
        %v1360 = vmul.f32 %v1340, %v1358
        %v1361 = vmul.f32 %v1341, %v1358
        %v1362 = vmul.f32 %v1342, %v1358
        %v1363 = vmul.f32 %v1343, %v1358
        %v1364 = vmul.f32 %v1344, %v1358
        %v1365 = vmul.f32 %v1345, %v1358
        %v1366 = vmul.f32 %v1346, %v1358
        %v1367 = vmul.f32 %v1347, %v1358
        %v1368 = vmul.f32 %v1348, %v1358
        %v1369 = vmul.f32 %v1349, %v1358
        %v1370 = vmul.f32 %v1350, %v1358
        %v1371 = vmul.f32 %v1351, %v1358
        %v1372 = vmul.f32 %v1352, %v1358
        %v1373 = vmul.f32 %v1353, %v1358
        %v1374 = vmul.f32 %v1354, %v1358
        %v1375 = vld [vmem:[%s3 + $0x3] sm:$0x1]
        %v1376 = vld [vmem:[%s3 + $0x4] sm:$0x1]
        %v1377 = vld [vmem:[%s3 + $0x5] sm:$0x1]
        %v1378 = vlaneseq
        %v1379 = vshrl.u32 %v1378, 7
        %v1380 = vsub.s32 0, %v1379
        %v1381 = vrot.slane %v1375, %v1380
        %v1382 = vadd.f32 %v465, %v1381
        %v1383 = vadd.f32 %v471, %v1381
        %v1384 = vadd.f32 %v477, %v1381
        %v1385 = vadd.f32 %v483, %v1381
        %v1386 = vadd.f32 %v489, %v1381
        %v1387 = vadd.f32 %v495, %v1381
        %v1388 = vadd.f32 %v501, %v1381
        %v1389 = vadd.f32 %v507, %v1381
        %v1390 = vadd.f32 %v513, %v1381
        %v1391 = vadd.f32 %v519, %v1381
        %v1392 = vadd.f32 %v525, %v1381
        %v1393 = vadd.f32 %v531, %v1381
        %v1394 = vadd.f32 %v537, %v1381
        %v1395 = vadd.f32 %v543, %v1381
        %v1396 = vadd.f32 %v549, %v1381
        %v1397 = vadd.f32 %v555, %v1381
        %v1398 = vmax.f32 %v1382, 0.0
        %v1399 = vmax.f32 %v1383, 0.0
        %v1400 = vmax.f32 %v1384, 0.0
        %v1401 = vmax.f32 %v1385, 0.0
        %v1402 = vmax.f32 %v1386, 0.0
        %v1403 = vmax.f32 %v1387, 0.0
        %v1404 = vmax.f32 %v1388, 0.0
        %v1405 = vmax.f32 %v1389, 0.0
        %v1406 = vmax.f32 %v1390, 0.0
        %v1407 = vmax.f32 %v1391, 0.0
        %v1408 = vmax.f32 %v1392, 0.0
        %v1409 = vmax.f32 %v1393, 0.0
        %v1410 = vmax.f32 %v1394, 0.0
        %v1411 = vmax.f32 %v1395, 0.0
        %v1412 = vmax.f32 %v1396, 0.0
        %v1413 = vmax.f32 %v1397, 0.0
        %1414 = vadd.xlane.f32.xlu0 %v1398
        %v1415 = vpop.xlane.xlu0 %1414
        %1416 = vadd.xlane.f32.xlu0 %v1399
        %v1417 = vpop.xlane.xlu0 %1416
        %1418 = vadd.xlane.f32.xlu0 %v1400
        %v1419 = vpop.xlane.xlu0 %1418
        %1420 = vadd.xlane.f32.xlu0 %v1401
        %v1421 = vpop.xlane.xlu0 %1420
        %1422 = vadd.xlane.f32.xlu0 %v1402
        %v1423 = vpop.xlane.xlu0 %1422
        %1424 = vadd.xlane.f32.xlu0 %v1403
        %v1425 = vpop.xlane.xlu0 %1424
        %1426 = vadd.xlane.f32.xlu0 %v1404
        %v1427 = vpop.xlane.xlu0 %1426
        %1428 = vadd.xlane.f32.xlu0 %v1405
        %v1429 = vpop.xlane.xlu0 %1428
        %1430 = vadd.xlane.f32.xlu0 %v1406
        %v1431 = vpop.xlane.xlu0 %1430
        %1432 = vadd.xlane.f32.xlu0 %v1407
        %v1433 = vpop.xlane.xlu0 %1432
        %1434 = vadd.xlane.f32.xlu0 %v1408
        %v1435 = vpop.xlane.xlu0 %1434
        %1436 = vadd.xlane.f32.xlu0 %v1409
        %v1437 = vpop.xlane.xlu0 %1436
        %1438 = vadd.xlane.f32.xlu0 %v1410
        %v1439 = vpop.xlane.xlu0 %1438
        %1440 = vadd.xlane.f32.xlu0 %v1411
        %v1441 = vpop.xlane.xlu0 %1440
        %1442 = vadd.xlane.f32.xlu0 %v1412
        %v1443 = vpop.xlane.xlu0 %1442
        %1444 = vadd.xlane.f32.xlu0 %v1413
        %v1445 = vpop.xlane.xlu0 %1444
        %v1446 = vmul.f32 %v1415, %v789
        %v1447 = vmul.f32 %v1417, %v789
        %v1448 = vmul.f32 %v1419, %v789
        %v1449 = vmul.f32 %v1421, %v789
        %v1450 = vmul.f32 %v1423, %v789
        %v1451 = vmul.f32 %v1425, %v789
        %v1452 = vmul.f32 %v1427, %v789
        %v1453 = vmul.f32 %v1429, %v789
        %v1454 = vmul.f32 %v1431, %v789
        %v1455 = vmul.f32 %v1433, %v789
        %v1456 = vmul.f32 %v1435, %v789
        %v1457 = vmul.f32 %v1437, %v789
        %v1458 = vmul.f32 %v1439, %v789
        %v1459 = vmul.f32 %v1441, %v789
        %v1460 = vmul.f32 %v1443, %v789
        %v1461 = vmul.f32 %v1445, %v789
        %v1462 = vmul.f32 %v1398, %v1398
        %v1463 = vmul.f32 %v1399, %v1399
        %v1464 = vmul.f32 %v1400, %v1400
        %v1465 = vmul.f32 %v1401, %v1401
        %v1466 = vmul.f32 %v1402, %v1402
        %v1467 = vmul.f32 %v1403, %v1403
        %v1468 = vmul.f32 %v1404, %v1404
        %v1469 = vmul.f32 %v1405, %v1405
        %v1470 = vmul.f32 %v1406, %v1406
        %v1471 = vmul.f32 %v1407, %v1407
        %v1472 = vmul.f32 %v1408, %v1408
        %v1473 = vmul.f32 %v1409, %v1409
        %v1474 = vmul.f32 %v1410, %v1410
        %v1475 = vmul.f32 %v1411, %v1411
        %v1476 = vmul.f32 %v1412, %v1412
        %v1477 = vmul.f32 %v1413, %v1413
        %1478 = vadd.xlane.f32.xlu0 %v1462
        %v1479 = vpop.xlane.xlu0 %1478
        %1480 = vadd.xlane.f32.xlu0 %v1463
        %v1481 = vpop.xlane.xlu0 %1480
        %1482 = vadd.xlane.f32.xlu0 %v1464
        %v1483 = vpop.xlane.xlu0 %1482
        %1484 = vadd.xlane.f32.xlu0 %v1465
        %v1485 = vpop.xlane.xlu0 %1484
        %1486 = vadd.xlane.f32.xlu0 %v1466
        %v1487 = vpop.xlane.xlu0 %1486
        %1488 = vadd.xlane.f32.xlu0 %v1467
        %v1489 = vpop.xlane.xlu0 %1488
        %1490 = vadd.xlane.f32.xlu0 %v1468
        %v1491 = vpop.xlane.xlu0 %1490
        %1492 = vadd.xlane.f32.xlu0 %v1469
        %v1493 = vpop.xlane.xlu0 %1492
        %1494 = vadd.xlane.f32.xlu0 %v1470
        %v1495 = vpop.xlane.xlu0 %1494
        %1496 = vadd.xlane.f32.xlu0 %v1471
        %v1497 = vpop.xlane.xlu0 %1496
        %1498 = vadd.xlane.f32.xlu0 %v1472
        %v1499 = vpop.xlane.xlu0 %1498
        %1500 = vadd.xlane.f32.xlu0 %v1473
        %v1501 = vpop.xlane.xlu0 %1500
        %1502 = vadd.xlane.f32.xlu0 %v1474
        %v1503 = vpop.xlane.xlu0 %1502
        %1504 = vadd.xlane.f32.xlu0 %v1475
        %v1505 = vpop.xlane.xlu0 %1504
        %1506 = vadd.xlane.f32.xlu0 %v1476
        %v1507 = vpop.xlane.xlu0 %1506
        %1508 = vadd.xlane.f32.xlu0 %v1477
        %v1509 = vpop.xlane.xlu0 %1508
        %v1510 = vmul.f32 %v1479, %v789
        %v1511 = vmul.f32 %v1481, %v789
        %v1512 = vmul.f32 %v1483, %v789
        %v1513 = vmul.f32 %v1485, %v789
        %v1514 = vmul.f32 %v1487, %v789
        %v1515 = vmul.f32 %v1489, %v789
        %v1516 = vmul.f32 %v1491, %v789
        %v1517 = vmul.f32 %v1493, %v789
        %v1518 = vmul.f32 %v1495, %v789
        %v1519 = vmul.f32 %v1497, %v789
        %v1520 = vmul.f32 %v1499, %v789
        %v1521 = vmul.f32 %v1501, %v789
        %v1522 = vmul.f32 %v1503, %v789
        %v1523 = vmul.f32 %v1505, %v789
        %v1524 = vmul.f32 %v1507, %v789
        %v1525 = vmul.f32 %v1509, %v789
        %v1526 = vsub.f32 %v1398, %v1446
        %v1527 = vsub.f32 %v1399, %v1447
        %v1528 = vsub.f32 %v1400, %v1448
        %v1529 = vsub.f32 %v1401, %v1449
        %v1530 = vsub.f32 %v1402, %v1450
        %v1531 = vsub.f32 %v1403, %v1451
        %v1532 = vsub.f32 %v1404, %v1452
        %v1533 = vsub.f32 %v1405, %v1453
        %v1534 = vsub.f32 %v1406, %v1454
        %v1535 = vsub.f32 %v1407, %v1455
        %v1536 = vsub.f32 %v1408, %v1456
        %v1537 = vsub.f32 %v1409, %v1457
        %v1538 = vsub.f32 %v1410, %v1458
        %v1539 = vsub.f32 %v1411, %v1459
        %v1540 = vsub.f32 %v1412, %v1460
        %v1541 = vsub.f32 %v1413, %v1461
        %v1542 = vmul.f32 %v1446, %v1446
        %v1543 = vmul.f32 %v1447, %v1447
        %v1544 = vmul.f32 %v1448, %v1448
        %v1545 = vmul.f32 %v1449, %v1449
        %v1546 = vmul.f32 %v1450, %v1450
        %v1547 = vmul.f32 %v1451, %v1451
        %v1548 = vmul.f32 %v1452, %v1452
        %v1549 = vmul.f32 %v1453, %v1453
        %v1550 = vmul.f32 %v1454, %v1454
        %v1551 = vmul.f32 %v1455, %v1455
        %v1552 = vmul.f32 %v1456, %v1456
        %v1553 = vmul.f32 %v1457, %v1457
        %v1554 = vmul.f32 %v1458, %v1458
        %v1555 = vmul.f32 %v1459, %v1459
        %v1556 = vmul.f32 %v1460, %v1460
        %v1557 = vmul.f32 %v1461, %v1461
        %v1558 = vsub.f32 %v1510, %v1542
        %v1559 = vsub.f32 %v1511, %v1543
        %v1560 = vsub.f32 %v1512, %v1544
        %v1561 = vsub.f32 %v1513, %v1545
        %v1562 = vsub.f32 %v1514, %v1546
        %v1563 = vsub.f32 %v1515, %v1547
        %v1564 = vsub.f32 %v1516, %v1548
        %v1565 = vsub.f32 %v1517, %v1549
        %v1566 = vsub.f32 %v1518, %v1550
        %v1567 = vsub.f32 %v1519, %v1551
        %v1568 = vsub.f32 %v1520, %v1552
        %v1569 = vsub.f32 %v1521, %v1553
        %v1570 = vsub.f32 %v1522, %v1554
        %v1571 = vsub.f32 %v1523, %v1555
        %v1572 = vsub.f32 %v1524, %v1556
        %v1573 = vsub.f32 %v1525, %v1557
        %v1574 = vadd.f32 %v1558, 1e-05
        %v1575 = vadd.f32 %v1559, 1e-05
        %v1576 = vadd.f32 %v1560, 1e-05
        %v1577 = vadd.f32 %v1561, 1e-05
        %v1578 = vadd.f32 %v1562, 1e-05
        %v1579 = vadd.f32 %v1563, 1e-05
        %v1580 = vadd.f32 %v1564, 1e-05
        %v1581 = vadd.f32 %v1565, 1e-05
        %v1582 = vadd.f32 %v1566, 1e-05
        %v1583 = vadd.f32 %v1567, 1e-05
        %v1584 = vadd.f32 %v1568, 1e-05
        %v1585 = vadd.f32 %v1569, 1e-05
        %v1586 = vadd.f32 %v1570, 1e-05
        %v1587 = vadd.f32 %v1571, 1e-05
        %v1588 = vadd.f32 %v1572, 1e-05
        %v1589 = vadd.f32 %v1573, 1e-05
        %v1590 = vrsqrt.pop %v1574
        %v1591 = vrsqrt.pop %v1575
        %v1592 = vrsqrt.pop %v1576
        %v1593 = vrsqrt.pop %v1577
        %v1594 = vrsqrt.pop %v1578
        %v1595 = vrsqrt.pop %v1579
        %v1596 = vrsqrt.pop %v1580
        %v1597 = vrsqrt.pop %v1581
        %v1598 = vrsqrt.pop %v1582
        %v1599 = vrsqrt.pop %v1583
        %v1600 = vrsqrt.pop %v1584
        %v1601 = vrsqrt.pop %v1585
        %v1602 = vrsqrt.pop %v1586
        %v1603 = vrsqrt.pop %v1587
        %v1604 = vrsqrt.pop %v1588
        %v1605 = vrsqrt.pop %v1589
        %v1606 = vmul.f32 %v1526, %v1590
        %v1607 = vmul.f32 %v1527, %v1591
        %v1608 = vmul.f32 %v1528, %v1592
        %v1609 = vmul.f32 %v1529, %v1593
        %v1610 = vmul.f32 %v1530, %v1594
        %v1611 = vmul.f32 %v1531, %v1595
        %v1612 = vmul.f32 %v1532, %v1596
        %v1613 = vmul.f32 %v1533, %v1597
        %v1614 = vmul.f32 %v1534, %v1598
        %v1615 = vmul.f32 %v1535, %v1599
        %v1616 = vmul.f32 %v1536, %v1600
        %v1617 = vmul.f32 %v1537, %v1601
        %v1618 = vmul.f32 %v1538, %v1602
        %v1619 = vmul.f32 %v1539, %v1603
        %v1620 = vmul.f32 %v1540, %v1604
        %v1621 = vmul.f32 %v1541, %v1605
        %s1622 = scalar_lea.vmem [#allocation5], 128
        %v1623 = vld [vmem:[%s1622] sm:$0xff]
        %v1624 = vld [vmem:[%s1622 + $0x8] sm:$0xff]
        %v1625 = vld [vmem:[%s1622 + $0x10] sm:$0xff]
        %v1626 = vld [vmem:[%s1622 + $0x18] sm:$0xff]
        %v1627 = vld [vmem:[%s1622 + $0x20] sm:$0xff]
        %v1628 = vld [vmem:[%s1622 + $0x28] sm:$0xff]
        %v1629 = vld [vmem:[%s1622 + $0x30] sm:$0xff]
        %v1630 = vld [vmem:[%s1622 + $0x38] sm:$0xff]
        %v1631 = vld [vmem:[%s1622 + $0x40] sm:$0xff]
        %v1632 = vld [vmem:[%s1622 + $0x48] sm:$0xff]
        %v1633 = vld [vmem:[%s1622 + $0x50] sm:$0xff]
        %v1634 = vld [vmem:[%s1622 + $0x58] sm:$0xff]
        %v1635 = vld [vmem:[%s1622 + $0x60] sm:$0xff]
        %v1636 = vld [vmem:[%s1622 + $0x68] sm:$0xff]
        %v1637 = vld [vmem:[%s1622 + $0x70] sm:$0xff]
        %v1638 = vld [vmem:[%s1622 + $0x78] sm:$0xff]
        %v1639 = vlaneseq
        %v1640 = vshrl.u32 %v1639, 7
        %v1641 = vsub.s32 0, %v1640
        %v1642 = vrot.slane %v1376, %v1641
        %1643 = vmatprep.subr.mxu0 0.0
        %1644 = vmatpush1.msra.mxu0 %v1638
        %1645 = vmatprep.subr.mxu0 0.0
        %1646 = vmatpush1.msra.mxu0 %v1637
        %1647 = vmatprep.subr.mxu0 0.0
        %1648 = vmatpush1.msra.mxu0 %v1636
        %1649 = vmatprep.subr.mxu0 0.0
        %1650 = vmatpush1.msra.mxu0 %v1635
        %1651 = vmatprep.subr.mxu0 0.0
        %1652 = vmatpush1.msra.mxu0 %v1634
        %1653 = vmatprep.subr.mxu0 0.0
        %1654 = vmatpush1.msra.mxu0 %v1633
        %1655 = vmatprep.subr.mxu0 0.0
        %1656 = vmatpush1.msra.mxu0 %v1632
        %1657 = vmatprep.subr.mxu0 0.0
        %1658 = vmatpush1.msra.mxu0 %v1631
        %1659 = vmatprep.subr.mxu0 0.0
        %1660 = vmatpush1.msra.mxu0 %v1630
        %1661 = vmatprep.subr.mxu0 0.0
        %1662 = vmatpush1.msra.mxu0 %v1629
        %1663 = vmatprep.subr.mxu0 0.0
        %1664 = vmatpush1.msra.mxu0 %v1628
        %1665 = vmatprep.subr.mxu0 0.0
        %1666 = vmatpush1.msra.mxu0 %v1627
        %1667 = vmatprep.subr.mxu0 0.0
        %1668 = vmatpush1.msra.mxu0 %v1626
        %1669 = vmatprep.subr.mxu0 0.0
        %1670 = vmatpush1.msra.mxu0 %v1625
        %1671 = vmatprep.subr.mxu0 0.0
        %1672 = vmatpush1.msra.mxu0 %v1624
        %1673 = vmatprep.subr.mxu0 0.0
        %1674 = vmatpush1.msra.mxu0 %v1623
        %1675 = vmatprep.subr.mxu0 0.0
        %1676 = vmatpush2.msra.mxu0 0.0
        %1677 = vmatprep.subr.mxu0 0.0
        %1678 = vmatpush2.msra.mxu0 0.0
        %1679 = vmatprep.subr.mxu0 0.0
        %1680 = vmatpush2.msra.mxu0 0.0
        %1681 = vmatprep.subr.mxu0 0.0
        %1682 = vmatpush2.msra.mxu0 0.0
        %1683 = vmatprep.subr.mxu0 0.0
        %1684 = vmatpush2.msra.mxu0 0.0
        %1685 = vmatprep.subr.mxu0 0.0
        %1686 = vmatpush2.msra.mxu0 0.0
        %1687 = vmatprep.subr.mxu0 0.0
        %1688 = vmatpush2.msra.mxu0 0.0
        %1689 = vmatprep.subr.mxu0 0.0
        %1690 = vmatpush2.msra.mxu0 0.0
        %1691 = vmatprep.subr.mxu0 0.0
        %1692 = vmatpush2.msra.mxu0 0.0
        %1693 = vmatprep.subr.mxu0 0.0
        %1694 = vmatpush2.msra.mxu0 0.0
        %1695 = vmatprep.subr.mxu0 0.0
        %1696 = vmatpush2.msra.mxu0 0.0
        %1697 = vmatprep.subr.mxu0 0.0
        %1698 = vmatpush2.msra.mxu0 0.0
        %1699 = vmatprep.subr.mxu0 0.0
        %1700 = vmatpush2.msra.mxu0 0.0
        %1701 = vmatprep.subr.mxu0 0.0
        %1702 = vmatpush2.msra.mxu0 0.0
        %1703 = vmatprep.subr.mxu0 0.0
        %1704 = vmatpush2.msra.mxu0 0.0
        %1705 = vmatprep.subr.mxu0 0.0
        %1706 = vmatpush2.msra.mxu0 0.0
        %1707 = vmatprep.mubr.f32.mxu0 0.0
        %1708 = vmatmul.mubr.f32.gmra.mxu0 %v1606
        %v1709 = vpop.f32.mrf.mxu0
        %v1710 = vadd.f32 %v1642, %v1709
        %v1711 = vpop.f32.mrf.mxu0
        %1712 = vmatprep.mubr.f32.mxu0 0.0
        %1713 = vmatmul.mubr.f32.gmra.mxu0 %v1607
        %v1714 = vpop.f32.mrf.mxu0
        %v1715 = vadd.f32 %v1642, %v1714
        %v1716 = vpop.f32.mrf.mxu0
        %1717 = vmatprep.mubr.f32.mxu0 0.0
        %1718 = vmatmul.mubr.f32.gmra.mxu0 %v1608
        %v1719 = vpop.f32.mrf.mxu0
        %v1720 = vadd.f32 %v1642, %v1719
        %v1721 = vpop.f32.mrf.mxu0
        %1722 = vmatprep.mubr.f32.mxu0 0.0
        %1723 = vmatmul.mubr.f32.gmra.mxu0 %v1609
        %v1724 = vpop.f32.mrf.mxu0
        %v1725 = vadd.f32 %v1642, %v1724
        %v1726 = vpop.f32.mrf.mxu0
        %1727 = vmatprep.mubr.f32.mxu0 0.0
        %1728 = vmatmul.mubr.f32.gmra.mxu0 %v1610
        %v1729 = vpop.f32.mrf.mxu0
        %v1730 = vadd.f32 %v1642, %v1729
        %v1731 = vpop.f32.mrf.mxu0
        %1732 = vmatprep.mubr.f32.mxu0 0.0
        %1733 = vmatmul.mubr.f32.gmra.mxu0 %v1611
        %v1734 = vpop.f32.mrf.mxu0
        %v1735 = vadd.f32 %v1642, %v1734
        %v1736 = vpop.f32.mrf.mxu0
        %1737 = vmatprep.mubr.f32.mxu0 0.0
        %1738 = vmatmul.mubr.f32.gmra.mxu0 %v1612
        %v1739 = vpop.f32.mrf.mxu0
        %v1740 = vadd.f32 %v1642, %v1739
        %v1741 = vpop.f32.mrf.mxu0
        %1742 = vmatprep.mubr.f32.mxu0 0.0
        %1743 = vmatmul.mubr.f32.gmra.mxu0 %v1613
        %v1744 = vpop.f32.mrf.mxu0
        %v1745 = vadd.f32 %v1642, %v1744
        %v1746 = vpop.f32.mrf.mxu0
        %1747 = vmatprep.mubr.f32.mxu0 0.0
        %1748 = vmatmul.mubr.f32.gmra.mxu0 %v1614
        %v1749 = vpop.f32.mrf.mxu0
        %v1750 = vadd.f32 %v1642, %v1749
        %v1751 = vpop.f32.mrf.mxu0
        %1752 = vmatprep.mubr.f32.mxu0 0.0
        %1753 = vmatmul.mubr.f32.gmra.mxu0 %v1615
        %v1754 = vpop.f32.mrf.mxu0
        %v1755 = vadd.f32 %v1642, %v1754
        %v1756 = vpop.f32.mrf.mxu0
        %1757 = vmatprep.mubr.f32.mxu0 0.0
        %1758 = vmatmul.mubr.f32.gmra.mxu0 %v1616
        %v1759 = vpop.f32.mrf.mxu0
        %v1760 = vadd.f32 %v1642, %v1759
        %v1761 = vpop.f32.mrf.mxu0
        %1762 = vmatprep.mubr.f32.mxu0 0.0
        %1763 = vmatmul.mubr.f32.gmra.mxu0 %v1617
        %v1764 = vpop.f32.mrf.mxu0
        %v1765 = vadd.f32 %v1642, %v1764
        %v1766 = vpop.f32.mrf.mxu0
        %1767 = vmatprep.mubr.f32.mxu0 0.0
        %1768 = vmatmul.mubr.f32.gmra.mxu0 %v1618
        %v1769 = vpop.f32.mrf.mxu0
        %v1770 = vadd.f32 %v1642, %v1769
        %v1771 = vpop.f32.mrf.mxu0
        %1772 = vmatprep.mubr.f32.mxu0 0.0
        %1773 = vmatmul.mubr.f32.gmra.mxu0 %v1619
        %v1774 = vpop.f32.mrf.mxu0
        %v1775 = vadd.f32 %v1642, %v1774
        %v1776 = vpop.f32.mrf.mxu0
        %1777 = vmatprep.mubr.f32.mxu0 0.0
        %1778 = vmatmul.mubr.f32.gmra.mxu0 %v1620
        %v1779 = vpop.f32.mrf.mxu0
        %v1780 = vadd.f32 %v1642, %v1779
        %v1781 = vpop.f32.mrf.mxu0
        %1782 = vmatprep.mubr.f32.mxu0 0.0
        %1783 = vmatmul.mubr.f32.gmra.mxu0 %v1621
        %v1784 = vpop.f32.mrf.mxu0
        %v1785 = vadd.f32 %v1642, %v1784
        %v1786 = vpop.f32.mrf.mxu0
        %1787 = vdwg.mxu0
        %v1788 = vmax.f32 %v1710, 0.0
        %v1789 = vmax.f32 %v1715, 0.0
        %v1790 = vmax.f32 %v1720, 0.0
        %v1791 = vmax.f32 %v1725, 0.0
        %v1792 = vmax.f32 %v1730, 0.0
        %v1793 = vmax.f32 %v1735, 0.0
        %v1794 = vmax.f32 %v1740, 0.0
        %v1795 = vmax.f32 %v1745, 0.0
        %v1796 = vmax.f32 %v1750, 0.0
        %v1797 = vmax.f32 %v1755, 0.0
        %v1798 = vmax.f32 %v1760, 0.0
        %v1799 = vmax.f32 %v1765, 0.0
        %v1800 = vmax.f32 %v1770, 0.0
        %v1801 = vmax.f32 %v1775, 0.0
        %v1802 = vmax.f32 %v1780, 0.0
        %v1803 = vmax.f32 %v1785, 0.0
        %1804 = vadd.xlane.f32.xlu0 %v1788
        %v1805 = vpop.xlane.xlu0 %1804
        %1806 = vadd.xlane.f32.xlu0 %v1789
        %v1807 = vpop.xlane.xlu0 %1806
        %1808 = vadd.xlane.f32.xlu0 %v1790
        %v1809 = vpop.xlane.xlu0 %1808
        %1810 = vadd.xlane.f32.xlu0 %v1791
        %v1811 = vpop.xlane.xlu0 %1810
        %1812 = vadd.xlane.f32.xlu0 %v1792
        %v1813 = vpop.xlane.xlu0 %1812
        %1814 = vadd.xlane.f32.xlu0 %v1793
        %v1815 = vpop.xlane.xlu0 %1814
        %1816 = vadd.xlane.f32.xlu0 %v1794
        %v1817 = vpop.xlane.xlu0 %1816
        %1818 = vadd.xlane.f32.xlu0 %v1795
        %v1819 = vpop.xlane.xlu0 %1818
        %1820 = vadd.xlane.f32.xlu0 %v1796
        %v1821 = vpop.xlane.xlu0 %1820
        %1822 = vadd.xlane.f32.xlu0 %v1797
        %v1823 = vpop.xlane.xlu0 %1822
        %1824 = vadd.xlane.f32.xlu0 %v1798
        %v1825 = vpop.xlane.xlu0 %1824
        %1826 = vadd.xlane.f32.xlu0 %v1799
        %v1827 = vpop.xlane.xlu0 %1826
        %1828 = vadd.xlane.f32.xlu0 %v1800
        %v1829 = vpop.xlane.xlu0 %1828
        %1830 = vadd.xlane.f32.xlu0 %v1801
        %v1831 = vpop.xlane.xlu0 %1830
        %1832 = vadd.xlane.f32.xlu0 %v1802
        %v1833 = vpop.xlane.xlu0 %1832
        %1834 = vadd.xlane.f32.xlu0 %v1803
        %v1835 = vpop.xlane.xlu0 %1834
        %v1836 = vmul.f32 %v1805, %v789
        %v1837 = vmul.f32 %v1807, %v789
        %v1838 = vmul.f32 %v1809, %v789
        %v1839 = vmul.f32 %v1811, %v789
        %v1840 = vmul.f32 %v1813, %v789
        %v1841 = vmul.f32 %v1815, %v789
        %v1842 = vmul.f32 %v1817, %v789
        %v1843 = vmul.f32 %v1819, %v789
        %v1844 = vmul.f32 %v1821, %v789
        %v1845 = vmul.f32 %v1823, %v789
        %v1846 = vmul.f32 %v1825, %v789
        %v1847 = vmul.f32 %v1827, %v789
        %v1848 = vmul.f32 %v1829, %v789
        %v1849 = vmul.f32 %v1831, %v789
        %v1850 = vmul.f32 %v1833, %v789
        %v1851 = vmul.f32 %v1835, %v789
        %v1852 = vmul.f32 %v1788, %v1788
        %v1853 = vmul.f32 %v1789, %v1789
        %v1854 = vmul.f32 %v1790, %v1790
        %v1855 = vmul.f32 %v1791, %v1791
        %v1856 = vmul.f32 %v1792, %v1792
        %v1857 = vmul.f32 %v1793, %v1793
        %v1858 = vmul.f32 %v1794, %v1794
        %v1859 = vmul.f32 %v1795, %v1795
        %v1860 = vmul.f32 %v1796, %v1796
        %v1861 = vmul.f32 %v1797, %v1797
        %v1862 = vmul.f32 %v1798, %v1798
        %v1863 = vmul.f32 %v1799, %v1799
        %v1864 = vmul.f32 %v1800, %v1800
        %v1865 = vmul.f32 %v1801, %v1801
        %v1866 = vmul.f32 %v1802, %v1802
        %v1867 = vmul.f32 %v1803, %v1803
        %1868 = vadd.xlane.f32.xlu0 %v1852
        %v1869 = vpop.xlane.xlu0 %1868
        %1870 = vadd.xlane.f32.xlu0 %v1853
        %v1871 = vpop.xlane.xlu0 %1870
        %1872 = vadd.xlane.f32.xlu0 %v1854
        %v1873 = vpop.xlane.xlu0 %1872
        %1874 = vadd.xlane.f32.xlu0 %v1855
        %v1875 = vpop.xlane.xlu0 %1874
        %1876 = vadd.xlane.f32.xlu0 %v1856
        %v1877 = vpop.xlane.xlu0 %1876
        %1878 = vadd.xlane.f32.xlu0 %v1857
        %v1879 = vpop.xlane.xlu0 %1878
        %1880 = vadd.xlane.f32.xlu0 %v1858
        %v1881 = vpop.xlane.xlu0 %1880
        %1882 = vadd.xlane.f32.xlu0 %v1859
        %v1883 = vpop.xlane.xlu0 %1882
        %1884 = vadd.xlane.f32.xlu0 %v1860
        %v1885 = vpop.xlane.xlu0 %1884
        %1886 = vadd.xlane.f32.xlu0 %v1861
        %v1887 = vpop.xlane.xlu0 %1886
        %1888 = vadd.xlane.f32.xlu0 %v1862
        %v1889 = vpop.xlane.xlu0 %1888
        %1890 = vadd.xlane.f32.xlu0 %v1863
        %v1891 = vpop.xlane.xlu0 %1890
        %1892 = vadd.xlane.f32.xlu0 %v1864
        %v1893 = vpop.xlane.xlu0 %1892
        %1894 = vadd.xlane.f32.xlu0 %v1865
        %v1895 = vpop.xlane.xlu0 %1894
        %1896 = vadd.xlane.f32.xlu0 %v1866
        %v1897 = vpop.xlane.xlu0 %1896
        %1898 = vadd.xlane.f32.xlu0 %v1867
        %v1899 = vpop.xlane.xlu0 %1898
        %v1900 = vmul.f32 %v1869, %v789
        %v1901 = vmul.f32 %v1871, %v789
        %v1902 = vmul.f32 %v1873, %v789
        %v1903 = vmul.f32 %v1875, %v789
        %v1904 = vmul.f32 %v1877, %v789
        %v1905 = vmul.f32 %v1879, %v789
        %v1906 = vmul.f32 %v1881, %v789
        %v1907 = vmul.f32 %v1883, %v789
        %v1908 = vmul.f32 %v1885, %v789
        %v1909 = vmul.f32 %v1887, %v789
        %v1910 = vmul.f32 %v1889, %v789
        %v1911 = vmul.f32 %v1891, %v789
        %v1912 = vmul.f32 %v1893, %v789
        %v1913 = vmul.f32 %v1895, %v789
        %v1914 = vmul.f32 %v1897, %v789
        %v1915 = vmul.f32 %v1899, %v789
        %v1916 = vsub.f32 %v1788, %v1836
        %v1917 = vsub.f32 %v1789, %v1837
        %v1918 = vsub.f32 %v1790, %v1838
        %v1919 = vsub.f32 %v1791, %v1839
        %v1920 = vsub.f32 %v1792, %v1840
        %v1921 = vsub.f32 %v1793, %v1841
        %v1922 = vsub.f32 %v1794, %v1842
        %v1923 = vsub.f32 %v1795, %v1843
        %v1924 = vsub.f32 %v1796, %v1844
        %v1925 = vsub.f32 %v1797, %v1845
        %v1926 = vsub.f32 %v1798, %v1846
        %v1927 = vsub.f32 %v1799, %v1847
        %v1928 = vsub.f32 %v1800, %v1848
        %v1929 = vsub.f32 %v1801, %v1849
        %v1930 = vsub.f32 %v1802, %v1850
        %v1931 = vsub.f32 %v1803, %v1851
        %v1932 = vmul.f32 %v1836, %v1836
        %v1933 = vmul.f32 %v1837, %v1837
        %v1934 = vmul.f32 %v1838, %v1838
        %v1935 = vmul.f32 %v1839, %v1839
        %v1936 = vmul.f32 %v1840, %v1840
        %v1937 = vmul.f32 %v1841, %v1841
        %v1938 = vmul.f32 %v1842, %v1842
        %v1939 = vmul.f32 %v1843, %v1843
        %v1940 = vmul.f32 %v1844, %v1844
        %v1941 = vmul.f32 %v1845, %v1845
        %v1942 = vmul.f32 %v1846, %v1846
        %v1943 = vmul.f32 %v1847, %v1847
        %v1944 = vmul.f32 %v1848, %v1848
        %v1945 = vmul.f32 %v1849, %v1849
        %v1946 = vmul.f32 %v1850, %v1850
        %v1947 = vmul.f32 %v1851, %v1851
        %v1948 = vsub.f32 %v1900, %v1932
        %v1949 = vsub.f32 %v1901, %v1933
        %v1950 = vsub.f32 %v1902, %v1934
        %v1951 = vsub.f32 %v1903, %v1935
        %v1952 = vsub.f32 %v1904, %v1936
        %v1953 = vsub.f32 %v1905, %v1937
        %v1954 = vsub.f32 %v1906, %v1938
        %v1955 = vsub.f32 %v1907, %v1939
        %v1956 = vsub.f32 %v1908, %v1940
        %v1957 = vsub.f32 %v1909, %v1941
        %v1958 = vsub.f32 %v1910, %v1942
        %v1959 = vsub.f32 %v1911, %v1943
        %v1960 = vsub.f32 %v1912, %v1944
        %v1961 = vsub.f32 %v1913, %v1945
        %v1962 = vsub.f32 %v1914, %v1946
        %v1963 = vsub.f32 %v1915, %v1947
        %v1964 = vadd.f32 %v1948, 1e-05
        %v1965 = vadd.f32 %v1949, 1e-05
        %v1966 = vadd.f32 %v1950, 1e-05
        %v1967 = vadd.f32 %v1951, 1e-05
        %v1968 = vadd.f32 %v1952, 1e-05
        %v1969 = vadd.f32 %v1953, 1e-05
        %v1970 = vadd.f32 %v1954, 1e-05
        %v1971 = vadd.f32 %v1955, 1e-05
        %v1972 = vadd.f32 %v1956, 1e-05
        %v1973 = vadd.f32 %v1957, 1e-05
        %v1974 = vadd.f32 %v1958, 1e-05
        %v1975 = vadd.f32 %v1959, 1e-05
        %v1976 = vadd.f32 %v1960, 1e-05
        %v1977 = vadd.f32 %v1961, 1e-05
        %v1978 = vadd.f32 %v1962, 1e-05
        %v1979 = vadd.f32 %v1963, 1e-05
        %v1980 = vrsqrt.pop %v1964
        %v1981 = vrsqrt.pop %v1965
        %v1982 = vrsqrt.pop %v1966
        %v1983 = vrsqrt.pop %v1967
        %v1984 = vrsqrt.pop %v1968
        %v1985 = vrsqrt.pop %v1969
        %v1986 = vrsqrt.pop %v1970
        %v1987 = vrsqrt.pop %v1971
        %v1988 = vrsqrt.pop %v1972
        %v1989 = vrsqrt.pop %v1973
        %v1990 = vrsqrt.pop %v1974
        %v1991 = vrsqrt.pop %v1975
        %v1992 = vrsqrt.pop %v1976
        %v1993 = vrsqrt.pop %v1977
        %v1994 = vrsqrt.pop %v1978
        %v1995 = vrsqrt.pop %v1979
        %v1996 = vmul.f32 %v1916, %v1980
        %v1997 = vmul.f32 %v1917, %v1981
        %v1998 = vmul.f32 %v1918, %v1982
        %v1999 = vmul.f32 %v1919, %v1983
        %v2000 = vmul.f32 %v1920, %v1984
        %v2001 = vmul.f32 %v1921, %v1985
        %v2002 = vmul.f32 %v1922, %v1986
        %v2003 = vmul.f32 %v1923, %v1987
        %v2004 = vmul.f32 %v1924, %v1988
        %v2005 = vmul.f32 %v1925, %v1989
        %v2006 = vmul.f32 %v1926, %v1990
        %v2007 = vmul.f32 %v1927, %v1991
        %v2008 = vmul.f32 %v1928, %v1992
        %v2009 = vmul.f32 %v1929, %v1993
        %v2010 = vmul.f32 %v1930, %v1994
        %v2011 = vmul.f32 %v1931, %v1995
        %v2012 = vlaneseq
        %v2013 = vshrl.u32 %v2012, 7
        %v2014 = vsub.s32 0, %v2013
        %v2015 = vrot.slane %v1377, %v2014
        %v2016 = vmul.f32 %v1996, %v2015
        %v2017 = vmul.f32 %v1997, %v2015
        %v2018 = vmul.f32 %v1998, %v2015
        %v2019 = vmul.f32 %v1999, %v2015
        %v2020 = vmul.f32 %v2000, %v2015
        %v2021 = vmul.f32 %v2001, %v2015
        %v2022 = vmul.f32 %v2002, %v2015
        %v2023 = vmul.f32 %v2003, %v2015
        %v2024 = vmul.f32 %v2004, %v2015
        %v2025 = vmul.f32 %v2005, %v2015
        %v2026 = vmul.f32 %v2006, %v2015
        %v2027 = vmul.f32 %v2007, %v2015
        %v2028 = vmul.f32 %v2008, %v2015
        %v2029 = vmul.f32 %v2009, %v2015
        %v2030 = vmul.f32 %v2010, %v2015
        %v2031 = vmul.f32 %v2011, %v2015
        %v2032 = vadd.f32 %v1359, %v2016
        %v2033 = vadd.f32 %v1360, %v2017
        %v2034 = vadd.f32 %v1361, %v2018
        %v2035 = vadd.f32 %v1362, %v2019
        %v2036 = vadd.f32 %v1363, %v2020
        %v2037 = vadd.f32 %v1364, %v2021
        %v2038 = vadd.f32 %v1365, %v2022
        %v2039 = vadd.f32 %v1366, %v2023
        %v2040 = vadd.f32 %v1367, %v2024
        %v2041 = vadd.f32 %v1368, %v2025
        %v2042 = vadd.f32 %v1369, %v2026
        %v2043 = vadd.f32 %v1370, %v2027
        %v2044 = vadd.f32 %v1371, %v2028
        %v2045 = vadd.f32 %v1372, %v2029
        %v2046 = vadd.f32 %v1373, %v2030
        %v2047 = vadd.f32 %v1374, %v2031
        %v2048 = vld [vmem:[%s3 + $0x6] sm:$0x1]
        %v2049 = vld [vmem:[%s3 + $0x7] sm:$0x1]
        %v2050 = vld [vmem:[%s3 + $0x8] sm:$0x1]
        %v2051 = vlaneseq
        %v2052 = vshrl.u32 %v2051, 7
        %v2053 = vsub.s32 0, %v2052
        %v2054 = vrot.slane %v2048, %v2053
        %v2055 = vadd.f32 %v624, %v2054
        %v2056 = vadd.f32 %v630, %v2054
        %v2057 = vadd.f32 %v636, %v2054
        %v2058 = vadd.f32 %v642, %v2054
        %v2059 = vadd.f32 %v648, %v2054
        %v2060 = vadd.f32 %v654, %v2054
        %v2061 = vadd.f32 %v660, %v2054
        %v2062 = vadd.f32 %v666, %v2054
        %v2063 = vadd.f32 %v672, %v2054
        %v2064 = vadd.f32 %v678, %v2054
        %v2065 = vadd.f32 %v684, %v2054
        %v2066 = vadd.f32 %v690, %v2054
        %v2067 = vadd.f32 %v696, %v2054
        %v2068 = vadd.f32 %v702, %v2054
        %v2069 = vadd.f32 %v708, %v2054
        %v2070 = vadd.f32 %v714, %v2054
        %v2071 = vmax.f32 %v2055, 0.0
        %v2072 = vmax.f32 %v2056, 0.0
        %v2073 = vmax.f32 %v2057, 0.0
        %v2074 = vmax.f32 %v2058, 0.0
        %v2075 = vmax.f32 %v2059, 0.0
        %v2076 = vmax.f32 %v2060, 0.0
        %v2077 = vmax.f32 %v2061, 0.0
        %v2078 = vmax.f32 %v2062, 0.0
        %v2079 = vmax.f32 %v2063, 0.0
        %v2080 = vmax.f32 %v2064, 0.0
        %v2081 = vmax.f32 %v2065, 0.0
        %v2082 = vmax.f32 %v2066, 0.0
        %v2083 = vmax.f32 %v2067, 0.0
        %v2084 = vmax.f32 %v2068, 0.0
        %v2085 = vmax.f32 %v2069, 0.0
        %v2086 = vmax.f32 %v2070, 0.0
        %2087 = vadd.xlane.f32.xlu0 %v2071
        %v2088 = vpop.xlane.xlu0 %2087
        %2089 = vadd.xlane.f32.xlu0 %v2072
        %v2090 = vpop.xlane.xlu0 %2089
        %2091 = vadd.xlane.f32.xlu0 %v2073
        %v2092 = vpop.xlane.xlu0 %2091
        %2093 = vadd.xlane.f32.xlu0 %v2074
        %v2094 = vpop.xlane.xlu0 %2093
        %2095 = vadd.xlane.f32.xlu0 %v2075
        %v2096 = vpop.xlane.xlu0 %2095
        %2097 = vadd.xlane.f32.xlu0 %v2076
        %v2098 = vpop.xlane.xlu0 %2097
        %2099 = vadd.xlane.f32.xlu0 %v2077
        %v2100 = vpop.xlane.xlu0 %2099
        %2101 = vadd.xlane.f32.xlu0 %v2078
        %v2102 = vpop.xlane.xlu0 %2101
        %2103 = vadd.xlane.f32.xlu0 %v2079
        %v2104 = vpop.xlane.xlu0 %2103
        %2105 = vadd.xlane.f32.xlu0 %v2080
        %v2106 = vpop.xlane.xlu0 %2105
        %2107 = vadd.xlane.f32.xlu0 %v2081
        %v2108 = vpop.xlane.xlu0 %2107
        %2109 = vadd.xlane.f32.xlu0 %v2082
        %v2110 = vpop.xlane.xlu0 %2109
        %2111 = vadd.xlane.f32.xlu0 %v2083
        %v2112 = vpop.xlane.xlu0 %2111
        %2113 = vadd.xlane.f32.xlu0 %v2084
        %v2114 = vpop.xlane.xlu0 %2113
        %2115 = vadd.xlane.f32.xlu0 %v2085
        %v2116 = vpop.xlane.xlu0 %2115
        %2117 = vadd.xlane.f32.xlu0 %v2086
        %v2118 = vpop.xlane.xlu0 %2117
        %v2119 = vmul.f32 %v2088, %v789
        %v2120 = vmul.f32 %v2090, %v789
        %v2121 = vmul.f32 %v2092, %v789
        %v2122 = vmul.f32 %v2094, %v789
        %v2123 = vmul.f32 %v2096, %v789
        %v2124 = vmul.f32 %v2098, %v789
        %v2125 = vmul.f32 %v2100, %v789
        %v2126 = vmul.f32 %v2102, %v789
        %v2127 = vmul.f32 %v2104, %v789
        %v2128 = vmul.f32 %v2106, %v789
        %v2129 = vmul.f32 %v2108, %v789
        %v2130 = vmul.f32 %v2110, %v789
        %v2131 = vmul.f32 %v2112, %v789
        %v2132 = vmul.f32 %v2114, %v789
        %v2133 = vmul.f32 %v2116, %v789
        %v2134 = vmul.f32 %v2118, %v789
        %v2135 = vmul.f32 %v2071, %v2071
        %v2136 = vmul.f32 %v2072, %v2072
        %v2137 = vmul.f32 %v2073, %v2073
        %v2138 = vmul.f32 %v2074, %v2074
        %v2139 = vmul.f32 %v2075, %v2075
        %v2140 = vmul.f32 %v2076, %v2076
        %v2141 = vmul.f32 %v2077, %v2077
        %v2142 = vmul.f32 %v2078, %v2078
        %v2143 = vmul.f32 %v2079, %v2079
        %v2144 = vmul.f32 %v2080, %v2080
        %v2145 = vmul.f32 %v2081, %v2081
        %v2146 = vmul.f32 %v2082, %v2082
        %v2147 = vmul.f32 %v2083, %v2083
        %v2148 = vmul.f32 %v2084, %v2084
        %v2149 = vmul.f32 %v2085, %v2085
        %v2150 = vmul.f32 %v2086, %v2086
        %2151 = vadd.xlane.f32.xlu0 %v2135
        %v2152 = vpop.xlane.xlu0 %2151
        %2153 = vadd.xlane.f32.xlu0 %v2136
        %v2154 = vpop.xlane.xlu0 %2153
        %2155 = vadd.xlane.f32.xlu0 %v2137
        %v2156 = vpop.xlane.xlu0 %2155
        %2157 = vadd.xlane.f32.xlu0 %v2138
        %v2158 = vpop.xlane.xlu0 %2157
        %2159 = vadd.xlane.f32.xlu0 %v2139
        %v2160 = vpop.xlane.xlu0 %2159
        %2161 = vadd.xlane.f32.xlu0 %v2140
        %v2162 = vpop.xlane.xlu0 %2161
        %2163 = vadd.xlane.f32.xlu0 %v2141
        %v2164 = vpop.xlane.xlu0 %2163
        %2165 = vadd.xlane.f32.xlu0 %v2142
        %v2166 = vpop.xlane.xlu0 %2165
        %2167 = vadd.xlane.f32.xlu0 %v2143
        %v2168 = vpop.xlane.xlu0 %2167
        %2169 = vadd.xlane.f32.xlu0 %v2144
        %v2170 = vpop.xlane.xlu0 %2169
        %2171 = vadd.xlane.f32.xlu0 %v2145
        %v2172 = vpop.xlane.xlu0 %2171
        %2173 = vadd.xlane.f32.xlu0 %v2146
        %v2174 = vpop.xlane.xlu0 %2173
        %2175 = vadd.xlane.f32.xlu0 %v2147
        %v2176 = vpop.xlane.xlu0 %2175
        %2177 = vadd.xlane.f32.xlu0 %v2148
        %v2178 = vpop.xlane.xlu0 %2177
        %2179 = vadd.xlane.f32.xlu0 %v2149
        %v2180 = vpop.xlane.xlu0 %2179
        %2181 = vadd.xlane.f32.xlu0 %v2150
        %v2182 = vpop.xlane.xlu0 %2181
        %v2183 = vmul.f32 %v2152, %v789
        %v2184 = vmul.f32 %v2154, %v789
        %v2185 = vmul.f32 %v2156, %v789
        %v2186 = vmul.f32 %v2158, %v789
        %v2187 = vmul.f32 %v2160, %v789
        %v2188 = vmul.f32 %v2162, %v789
        %v2189 = vmul.f32 %v2164, %v789
        %v2190 = vmul.f32 %v2166, %v789
        %v2191 = vmul.f32 %v2168, %v789
        %v2192 = vmul.f32 %v2170, %v789
        %v2193 = vmul.f32 %v2172, %v789
        %v2194 = vmul.f32 %v2174, %v789
        %v2195 = vmul.f32 %v2176, %v789
        %v2196 = vmul.f32 %v2178, %v789
        %v2197 = vmul.f32 %v2180, %v789
        %v2198 = vmul.f32 %v2182, %v789
        %v2199 = vsub.f32 %v2071, %v2119
        %v2200 = vsub.f32 %v2072, %v2120
        %v2201 = vsub.f32 %v2073, %v2121
        %v2202 = vsub.f32 %v2074, %v2122
        %v2203 = vsub.f32 %v2075, %v2123
        %v2204 = vsub.f32 %v2076, %v2124
        %v2205 = vsub.f32 %v2077, %v2125
        %v2206 = vsub.f32 %v2078, %v2126
        %v2207 = vsub.f32 %v2079, %v2127
        %v2208 = vsub.f32 %v2080, %v2128
        %v2209 = vsub.f32 %v2081, %v2129
        %v2210 = vsub.f32 %v2082, %v2130
        %v2211 = vsub.f32 %v2083, %v2131
        %v2212 = vsub.f32 %v2084, %v2132
        %v2213 = vsub.f32 %v2085, %v2133
        %v2214 = vsub.f32 %v2086, %v2134
        %v2215 = vmul.f32 %v2119, %v2119
        %v2216 = vmul.f32 %v2120, %v2120
        %v2217 = vmul.f32 %v2121, %v2121
        %v2218 = vmul.f32 %v2122, %v2122
        %v2219 = vmul.f32 %v2123, %v2123
        %v2220 = vmul.f32 %v2124, %v2124
        %v2221 = vmul.f32 %v2125, %v2125
        %v2222 = vmul.f32 %v2126, %v2126
        %v2223 = vmul.f32 %v2127, %v2127
        %v2224 = vmul.f32 %v2128, %v2128
        %v2225 = vmul.f32 %v2129, %v2129
        %v2226 = vmul.f32 %v2130, %v2130
        %v2227 = vmul.f32 %v2131, %v2131
        %v2228 = vmul.f32 %v2132, %v2132
        %v2229 = vmul.f32 %v2133, %v2133
        %v2230 = vmul.f32 %v2134, %v2134
        %v2231 = vsub.f32 %v2183, %v2215
        %v2232 = vsub.f32 %v2184, %v2216
        %v2233 = vsub.f32 %v2185, %v2217
        %v2234 = vsub.f32 %v2186, %v2218
        %v2235 = vsub.f32 %v2187, %v2219
        %v2236 = vsub.f32 %v2188, %v2220
        %v2237 = vsub.f32 %v2189, %v2221
        %v2238 = vsub.f32 %v2190, %v2222
        %v2239 = vsub.f32 %v2191, %v2223
        %v2240 = vsub.f32 %v2192, %v2224
        %v2241 = vsub.f32 %v2193, %v2225
        %v2242 = vsub.f32 %v2194, %v2226
        %v2243 = vsub.f32 %v2195, %v2227
        %v2244 = vsub.f32 %v2196, %v2228
        %v2245 = vsub.f32 %v2197, %v2229
        %v2246 = vsub.f32 %v2198, %v2230
        %v2247 = vadd.f32 %v2231, 1e-05
        %v2248 = vadd.f32 %v2232, 1e-05
        %v2249 = vadd.f32 %v2233, 1e-05
        %v2250 = vadd.f32 %v2234, 1e-05
        %v2251 = vadd.f32 %v2235, 1e-05
        %v2252 = vadd.f32 %v2236, 1e-05
        %v2253 = vadd.f32 %v2237, 1e-05
        %v2254 = vadd.f32 %v2238, 1e-05
        %v2255 = vadd.f32 %v2239, 1e-05
        %v2256 = vadd.f32 %v2240, 1e-05
        %v2257 = vadd.f32 %v2241, 1e-05
        %v2258 = vadd.f32 %v2242, 1e-05
        %v2259 = vadd.f32 %v2243, 1e-05
        %v2260 = vadd.f32 %v2244, 1e-05
        %v2261 = vadd.f32 %v2245, 1e-05
        %v2262 = vadd.f32 %v2246, 1e-05
        %v2263 = vrsqrt.pop %v2247
        %v2264 = vrsqrt.pop %v2248
        %v2265 = vrsqrt.pop %v2249
        %v2266 = vrsqrt.pop %v2250
        %v2267 = vrsqrt.pop %v2251
        %v2268 = vrsqrt.pop %v2252
        %v2269 = vrsqrt.pop %v2253
        %v2270 = vrsqrt.pop %v2254
        %v2271 = vrsqrt.pop %v2255
        %v2272 = vrsqrt.pop %v2256
        %v2273 = vrsqrt.pop %v2257
        %v2274 = vrsqrt.pop %v2258
        %v2275 = vrsqrt.pop %v2259
        %v2276 = vrsqrt.pop %v2260
        %v2277 = vrsqrt.pop %v2261
        %v2278 = vrsqrt.pop %v2262
        %v2279 = vmul.f32 %v2199, %v2263
        %v2280 = vmul.f32 %v2200, %v2264
        %v2281 = vmul.f32 %v2201, %v2265
        %v2282 = vmul.f32 %v2202, %v2266
        %v2283 = vmul.f32 %v2203, %v2267
        %v2284 = vmul.f32 %v2204, %v2268
        %v2285 = vmul.f32 %v2205, %v2269
        %v2286 = vmul.f32 %v2206, %v2270
        %v2287 = vmul.f32 %v2207, %v2271
        %v2288 = vmul.f32 %v2208, %v2272
        %v2289 = vmul.f32 %v2209, %v2273
        %v2290 = vmul.f32 %v2210, %v2274
        %v2291 = vmul.f32 %v2211, %v2275
        %v2292 = vmul.f32 %v2212, %v2276
        %v2293 = vmul.f32 %v2213, %v2277
        %v2294 = vmul.f32 %v2214, %v2278
        %s2295 = scalar_lea.vmem [#allocation5], 256
        %v2296 = vld [vmem:[%s2295] sm:$0xff]
        %v2297 = vld [vmem:[%s2295 + $0x8] sm:$0xff]
        %v2298 = vld [vmem:[%s2295 + $0x10] sm:$0xff]
        %v2299 = vld [vmem:[%s2295 + $0x18] sm:$0xff]
        %v2300 = vld [vmem:[%s2295 + $0x20] sm:$0xff]
        %v2301 = vld [vmem:[%s2295 + $0x28] sm:$0xff]
        %v2302 = vld [vmem:[%s2295 + $0x30] sm:$0xff]
        %v2303 = vld [vmem:[%s2295 + $0x38] sm:$0xff]
        %v2304 = vld [vmem:[%s2295 + $0x40] sm:$0xff]
        %v2305 = vld [vmem:[%s2295 + $0x48] sm:$0xff]
        %v2306 = vld [vmem:[%s2295 + $0x50] sm:$0xff]
        %v2307 = vld [vmem:[%s2295 + $0x58] sm:$0xff]
        %v2308 = vld [vmem:[%s2295 + $0x60] sm:$0xff]
        %v2309 = vld [vmem:[%s2295 + $0x68] sm:$0xff]
        %v2310 = vld [vmem:[%s2295 + $0x70] sm:$0xff]
        %v2311 = vld [vmem:[%s2295 + $0x78] sm:$0xff]
        %v2312 = vlaneseq
        %v2313 = vshrl.u32 %v2312, 7
        %v2314 = vsub.s32 0, %v2313
        %v2315 = vrot.slane %v2049, %v2314
        %2316 = vmatprep.subr.mxu0 0.0
        %2317 = vmatpush1.msra.mxu0 %v2311
        %2318 = vmatprep.subr.mxu0 0.0
        %2319 = vmatpush1.msra.mxu0 %v2310
        %2320 = vmatprep.subr.mxu0 0.0
        %2321 = vmatpush1.msra.mxu0 %v2309
        %2322 = vmatprep.subr.mxu0 0.0
        %2323 = vmatpush1.msra.mxu0 %v2308
        %2324 = vmatprep.subr.mxu0 0.0
        %2325 = vmatpush1.msra.mxu0 %v2307
        %2326 = vmatprep.subr.mxu0 0.0
        %2327 = vmatpush1.msra.mxu0 %v2306
        %2328 = vmatprep.subr.mxu0 0.0
        %2329 = vmatpush1.msra.mxu0 %v2305
        %2330 = vmatprep.subr.mxu0 0.0
        %2331 = vmatpush1.msra.mxu0 %v2304
        %2332 = vmatprep.subr.mxu0 0.0
        %2333 = vmatpush1.msra.mxu0 %v2303
        %2334 = vmatprep.subr.mxu0 0.0
        %2335 = vmatpush1.msra.mxu0 %v2302
        %2336 = vmatprep.subr.mxu0 0.0
        %2337 = vmatpush1.msra.mxu0 %v2301
        %2338 = vmatprep.subr.mxu0 0.0
        %2339 = vmatpush1.msra.mxu0 %v2300
        %2340 = vmatprep.subr.mxu0 0.0
        %2341 = vmatpush1.msra.mxu0 %v2299
        %2342 = vmatprep.subr.mxu0 0.0
        %2343 = vmatpush1.msra.mxu0 %v2298
        %2344 = vmatprep.subr.mxu0 0.0
        %2345 = vmatpush1.msra.mxu0 %v2297
        %2346 = vmatprep.subr.mxu0 0.0
        %2347 = vmatpush1.msra.mxu0 %v2296
        %2348 = vmatprep.subr.mxu0 0.0
        %2349 = vmatpush2.msra.mxu0 0.0
        %2350 = vmatprep.subr.mxu0 0.0
        %2351 = vmatpush2.msra.mxu0 0.0
        %2352 = vmatprep.subr.mxu0 0.0
        %2353 = vmatpush2.msra.mxu0 0.0
        %2354 = vmatprep.subr.mxu0 0.0
        %2355 = vmatpush2.msra.mxu0 0.0
        %2356 = vmatprep.subr.mxu0 0.0
        %2357 = vmatpush2.msra.mxu0 0.0
        %2358 = vmatprep.subr.mxu0 0.0
        %2359 = vmatpush2.msra.mxu0 0.0
        %2360 = vmatprep.subr.mxu0 0.0
        %2361 = vmatpush2.msra.mxu0 0.0
        %2362 = vmatprep.subr.mxu0 0.0
        %2363 = vmatpush2.msra.mxu0 0.0
        %2364 = vmatprep.subr.mxu0 0.0
        %2365 = vmatpush2.msra.mxu0 0.0
        %2366 = vmatprep.subr.mxu0 0.0
        %2367 = vmatpush2.msra.mxu0 0.0
        %2368 = vmatprep.subr.mxu0 0.0
        %2369 = vmatpush2.msra.mxu0 0.0
        %2370 = vmatprep.subr.mxu0 0.0
        %2371 = vmatpush2.msra.mxu0 0.0
        %2372 = vmatprep.subr.mxu0 0.0
        %2373 = vmatpush2.msra.mxu0 0.0
        %2374 = vmatprep.subr.mxu0 0.0
        %2375 = vmatpush2.msra.mxu0 0.0
        %2376 = vmatprep.subr.mxu0 0.0
        %2377 = vmatpush2.msra.mxu0 0.0
        %2378 = vmatprep.subr.mxu0 0.0
        %2379 = vmatpush2.msra.mxu0 0.0
        %2380 = vmatprep.mubr.f32.mxu0 0.0
        %2381 = vmatmul.mubr.f32.gmra.mxu0 %v2279
        %v2382 = vpop.f32.mrf.mxu0
        %v2383 = vadd.f32 %v2315, %v2382
        %v2384 = vpop.f32.mrf.mxu0
        %2385 = vmatprep.mubr.f32.mxu0 0.0
        %2386 = vmatmul.mubr.f32.gmra.mxu0 %v2280
        %v2387 = vpop.f32.mrf.mxu0
        %v2388 = vadd.f32 %v2315, %v2387
        %v2389 = vpop.f32.mrf.mxu0
        %2390 = vmatprep.mubr.f32.mxu0 0.0
        %2391 = vmatmul.mubr.f32.gmra.mxu0 %v2281
        %v2392 = vpop.f32.mrf.mxu0
        %v2393 = vadd.f32 %v2315, %v2392
        %v2394 = vpop.f32.mrf.mxu0
        %2395 = vmatprep.mubr.f32.mxu0 0.0
        %2396 = vmatmul.mubr.f32.gmra.mxu0 %v2282
        %v2397 = vpop.f32.mrf.mxu0
        %v2398 = vadd.f32 %v2315, %v2397
        %v2399 = vpop.f32.mrf.mxu0
        %2400 = vmatprep.mubr.f32.mxu0 0.0
        %2401 = vmatmul.mubr.f32.gmra.mxu0 %v2283
        %v2402 = vpop.f32.mrf.mxu0
        %v2403 = vadd.f32 %v2315, %v2402
        %v2404 = vpop.f32.mrf.mxu0
        %2405 = vmatprep.mubr.f32.mxu0 0.0
        %2406 = vmatmul.mubr.f32.gmra.mxu0 %v2284
        %v2407 = vpop.f32.mrf.mxu0
        %v2408 = vadd.f32 %v2315, %v2407
        %v2409 = vpop.f32.mrf.mxu0
        %2410 = vmatprep.mubr.f32.mxu0 0.0
        %2411 = vmatmul.mubr.f32.gmra.mxu0 %v2285
        %v2412 = vpop.f32.mrf.mxu0
        %v2413 = vadd.f32 %v2315, %v2412
        %v2414 = vpop.f32.mrf.mxu0
        %2415 = vmatprep.mubr.f32.mxu0 0.0
        %2416 = vmatmul.mubr.f32.gmra.mxu0 %v2286
        %v2417 = vpop.f32.mrf.mxu0
        %v2418 = vadd.f32 %v2315, %v2417
        %v2419 = vpop.f32.mrf.mxu0
        %2420 = vmatprep.mubr.f32.mxu0 0.0
        %2421 = vmatmul.mubr.f32.gmra.mxu0 %v2287
        %v2422 = vpop.f32.mrf.mxu0
        %v2423 = vadd.f32 %v2315, %v2422
        %v2424 = vpop.f32.mrf.mxu0
        %2425 = vmatprep.mubr.f32.mxu0 0.0
        %2426 = vmatmul.mubr.f32.gmra.mxu0 %v2288
        %v2427 = vpop.f32.mrf.mxu0
        %v2428 = vadd.f32 %v2315, %v2427
        %v2429 = vpop.f32.mrf.mxu0
        %2430 = vmatprep.mubr.f32.mxu0 0.0
        %2431 = vmatmul.mubr.f32.gmra.mxu0 %v2289
        %v2432 = vpop.f32.mrf.mxu0
        %v2433 = vadd.f32 %v2315, %v2432
        %v2434 = vpop.f32.mrf.mxu0
        %2435 = vmatprep.mubr.f32.mxu0 0.0
        %2436 = vmatmul.mubr.f32.gmra.mxu0 %v2290
        %v2437 = vpop.f32.mrf.mxu0
        %v2438 = vadd.f32 %v2315, %v2437
        %v2439 = vpop.f32.mrf.mxu0
        %2440 = vmatprep.mubr.f32.mxu0 0.0
        %2441 = vmatmul.mubr.f32.gmra.mxu0 %v2291
        %v2442 = vpop.f32.mrf.mxu0
        %v2443 = vadd.f32 %v2315, %v2442
        %v2444 = vpop.f32.mrf.mxu0
        %2445 = vmatprep.mubr.f32.mxu0 0.0
        %2446 = vmatmul.mubr.f32.gmra.mxu0 %v2292
        %v2447 = vpop.f32.mrf.mxu0
        %v2448 = vadd.f32 %v2315, %v2447
        %v2449 = vpop.f32.mrf.mxu0
        %2450 = vmatprep.mubr.f32.mxu0 0.0
        %2451 = vmatmul.mubr.f32.gmra.mxu0 %v2293
        %v2452 = vpop.f32.mrf.mxu0
        %v2453 = vadd.f32 %v2315, %v2452
        %v2454 = vpop.f32.mrf.mxu0
        %2455 = vmatprep.mubr.f32.mxu0 0.0
        %2456 = vmatmul.mubr.f32.gmra.mxu0 %v2294
        %v2457 = vpop.f32.mrf.mxu0
        %v2458 = vadd.f32 %v2315, %v2457
        %v2459 = vpop.f32.mrf.mxu0
        %2460 = vdwg.mxu0
        %v2461 = vmax.f32 %v2383, 0.0
        %v2462 = vmax.f32 %v2388, 0.0
        %v2463 = vmax.f32 %v2393, 0.0
        %v2464 = vmax.f32 %v2398, 0.0
        %v2465 = vmax.f32 %v2403, 0.0
        %v2466 = vmax.f32 %v2408, 0.0
        %v2467 = vmax.f32 %v2413, 0.0
        %v2468 = vmax.f32 %v2418, 0.0
        %v2469 = vmax.f32 %v2423, 0.0
        %v2470 = vmax.f32 %v2428, 0.0
        %v2471 = vmax.f32 %v2433, 0.0
        %v2472 = vmax.f32 %v2438, 0.0
        %v2473 = vmax.f32 %v2443, 0.0
        %v2474 = vmax.f32 %v2448, 0.0
        %v2475 = vmax.f32 %v2453, 0.0
        %v2476 = vmax.f32 %v2458, 0.0
        %2477 = vadd.xlane.f32.xlu0 %v2461
        %v2478 = vpop.xlane.xlu0 %2477
        %2479 = vadd.xlane.f32.xlu0 %v2462
        %v2480 = vpop.xlane.xlu0 %2479
        %2481 = vadd.xlane.f32.xlu0 %v2463
        %v2482 = vpop.xlane.xlu0 %2481
        %2483 = vadd.xlane.f32.xlu0 %v2464
        %v2484 = vpop.xlane.xlu0 %2483
        %2485 = vadd.xlane.f32.xlu0 %v2465
        %v2486 = vpop.xlane.xlu0 %2485
        %2487 = vadd.xlane.f32.xlu0 %v2466
        %v2488 = vpop.xlane.xlu0 %2487
        %2489 = vadd.xlane.f32.xlu0 %v2467
        %v2490 = vpop.xlane.xlu0 %2489
        %2491 = vadd.xlane.f32.xlu0 %v2468
        %v2492 = vpop.xlane.xlu0 %2491
        %2493 = vadd.xlane.f32.xlu0 %v2469
        %v2494 = vpop.xlane.xlu0 %2493
        %2495 = vadd.xlane.f32.xlu0 %v2470
        %v2496 = vpop.xlane.xlu0 %2495
        %2497 = vadd.xlane.f32.xlu0 %v2471
        %v2498 = vpop.xlane.xlu0 %2497
        %2499 = vadd.xlane.f32.xlu0 %v2472
        %v2500 = vpop.xlane.xlu0 %2499
        %2501 = vadd.xlane.f32.xlu0 %v2473
        %v2502 = vpop.xlane.xlu0 %2501
        %2503 = vadd.xlane.f32.xlu0 %v2474
        %v2504 = vpop.xlane.xlu0 %2503
        %2505 = vadd.xlane.f32.xlu0 %v2475
        %v2506 = vpop.xlane.xlu0 %2505
        %2507 = vadd.xlane.f32.xlu0 %v2476
        %v2508 = vpop.xlane.xlu0 %2507
        %v2509 = vmul.f32 %v2478, %v789
        %v2510 = vmul.f32 %v2480, %v789
        %v2511 = vmul.f32 %v2482, %v789
        %v2512 = vmul.f32 %v2484, %v789
        %v2513 = vmul.f32 %v2486, %v789
        %v2514 = vmul.f32 %v2488, %v789
        %v2515 = vmul.f32 %v2490, %v789
        %v2516 = vmul.f32 %v2492, %v789
        %v2517 = vmul.f32 %v2494, %v789
        %v2518 = vmul.f32 %v2496, %v789
        %v2519 = vmul.f32 %v2498, %v789
        %v2520 = vmul.f32 %v2500, %v789
        %v2521 = vmul.f32 %v2502, %v789
        %v2522 = vmul.f32 %v2504, %v789
        %v2523 = vmul.f32 %v2506, %v789
        %v2524 = vmul.f32 %v2508, %v789
        %v2525 = vmul.f32 %v2461, %v2461
        %v2526 = vmul.f32 %v2462, %v2462
        %v2527 = vmul.f32 %v2463, %v2463
        %v2528 = vmul.f32 %v2464, %v2464
        %v2529 = vmul.f32 %v2465, %v2465
        %v2530 = vmul.f32 %v2466, %v2466
        %v2531 = vmul.f32 %v2467, %v2467
        %v2532 = vmul.f32 %v2468, %v2468
        %v2533 = vmul.f32 %v2469, %v2469
        %v2534 = vmul.f32 %v2470, %v2470
        %v2535 = vmul.f32 %v2471, %v2471
        %v2536 = vmul.f32 %v2472, %v2472
        %v2537 = vmul.f32 %v2473, %v2473
        %v2538 = vmul.f32 %v2474, %v2474
        %v2539 = vmul.f32 %v2475, %v2475
        %v2540 = vmul.f32 %v2476, %v2476
        %2541 = vadd.xlane.f32.xlu0 %v2525
        %v2542 = vpop.xlane.xlu0 %2541
        %2543 = vadd.xlane.f32.xlu0 %v2526
        %v2544 = vpop.xlane.xlu0 %2543
        %2545 = vadd.xlane.f32.xlu0 %v2527
        %v2546 = vpop.xlane.xlu0 %2545
        %2547 = vadd.xlane.f32.xlu0 %v2528
        %v2548 = vpop.xlane.xlu0 %2547
        %2549 = vadd.xlane.f32.xlu0 %v2529
        %v2550 = vpop.xlane.xlu0 %2549
        %2551 = vadd.xlane.f32.xlu0 %v2530
        %v2552 = vpop.xlane.xlu0 %2551
        %2553 = vadd.xlane.f32.xlu0 %v2531
        %v2554 = vpop.xlane.xlu0 %2553
        %2555 = vadd.xlane.f32.xlu0 %v2532
        %v2556 = vpop.xlane.xlu0 %2555
        %2557 = vadd.xlane.f32.xlu0 %v2533
        %v2558 = vpop.xlane.xlu0 %2557
        %2559 = vadd.xlane.f32.xlu0 %v2534
        %v2560 = vpop.xlane.xlu0 %2559
        %2561 = vadd.xlane.f32.xlu0 %v2535
        %v2562 = vpop.xlane.xlu0 %2561
        %2563 = vadd.xlane.f32.xlu0 %v2536
        %v2564 = vpop.xlane.xlu0 %2563
        %2565 = vadd.xlane.f32.xlu0 %v2537
        %v2566 = vpop.xlane.xlu0 %2565
        %2567 = vadd.xlane.f32.xlu0 %v2538
        %v2568 = vpop.xlane.xlu0 %2567
        %2569 = vadd.xlane.f32.xlu0 %v2539
        %v2570 = vpop.xlane.xlu0 %2569
        %2571 = vadd.xlane.f32.xlu0 %v2540
        %v2572 = vpop.xlane.xlu0 %2571
        %v2573 = vmul.f32 %v2542, %v789
        %v2574 = vmul.f32 %v2544, %v789
        %v2575 = vmul.f32 %v2546, %v789
        %v2576 = vmul.f32 %v2548, %v789
        %v2577 = vmul.f32 %v2550, %v789
        %v2578 = vmul.f32 %v2552, %v789
        %v2579 = vmul.f32 %v2554, %v789
        %v2580 = vmul.f32 %v2556, %v789
        %v2581 = vmul.f32 %v2558, %v789
        %v2582 = vmul.f32 %v2560, %v789
        %v2583 = vmul.f32 %v2562, %v789
        %v2584 = vmul.f32 %v2564, %v789
        %v2585 = vmul.f32 %v2566, %v789
        %v2586 = vmul.f32 %v2568, %v789
        %v2587 = vmul.f32 %v2570, %v789
        %v2588 = vmul.f32 %v2572, %v789
        %v2589 = vsub.f32 %v2461, %v2509
        %v2590 = vsub.f32 %v2462, %v2510
        %v2591 = vsub.f32 %v2463, %v2511
        %v2592 = vsub.f32 %v2464, %v2512
        %v2593 = vsub.f32 %v2465, %v2513
        %v2594 = vsub.f32 %v2466, %v2514
        %v2595 = vsub.f32 %v2467, %v2515
        %v2596 = vsub.f32 %v2468, %v2516
        %v2597 = vsub.f32 %v2469, %v2517
        %v2598 = vsub.f32 %v2470, %v2518
        %v2599 = vsub.f32 %v2471, %v2519
        %v2600 = vsub.f32 %v2472, %v2520
        %v2601 = vsub.f32 %v2473, %v2521
        %v2602 = vsub.f32 %v2474, %v2522
        %v2603 = vsub.f32 %v2475, %v2523
        %v2604 = vsub.f32 %v2476, %v2524
        %v2605 = vmul.f32 %v2509, %v2509
        %v2606 = vmul.f32 %v2510, %v2510
        %v2607 = vmul.f32 %v2511, %v2511
        %v2608 = vmul.f32 %v2512, %v2512
        %v2609 = vmul.f32 %v2513, %v2513
        %v2610 = vmul.f32 %v2514, %v2514
        %v2611 = vmul.f32 %v2515, %v2515
        %v2612 = vmul.f32 %v2516, %v2516
        %v2613 = vmul.f32 %v2517, %v2517
        %v2614 = vmul.f32 %v2518, %v2518
        %v2615 = vmul.f32 %v2519, %v2519
        %v2616 = vmul.f32 %v2520, %v2520
        %v2617 = vmul.f32 %v2521, %v2521
        %v2618 = vmul.f32 %v2522, %v2522
        %v2619 = vmul.f32 %v2523, %v2523
        %v2620 = vmul.f32 %v2524, %v2524
        %v2621 = vsub.f32 %v2573, %v2605
        %v2622 = vsub.f32 %v2574, %v2606
        %v2623 = vsub.f32 %v2575, %v2607
        %v2624 = vsub.f32 %v2576, %v2608
        %v2625 = vsub.f32 %v2577, %v2609
        %v2626 = vsub.f32 %v2578, %v2610
        %v2627 = vsub.f32 %v2579, %v2611
        %v2628 = vsub.f32 %v2580, %v2612
        %v2629 = vsub.f32 %v2581, %v2613
        %v2630 = vsub.f32 %v2582, %v2614
        %v2631 = vsub.f32 %v2583, %v2615
        %v2632 = vsub.f32 %v2584, %v2616
        %v2633 = vsub.f32 %v2585, %v2617
        %v2634 = vsub.f32 %v2586, %v2618
        %v2635 = vsub.f32 %v2587, %v2619
        %v2636 = vsub.f32 %v2588, %v2620
        %v2637 = vadd.f32 %v2621, 1e-05
        %v2638 = vadd.f32 %v2622, 1e-05
        %v2639 = vadd.f32 %v2623, 1e-05
        %v2640 = vadd.f32 %v2624, 1e-05
        %v2641 = vadd.f32 %v2625, 1e-05
        %v2642 = vadd.f32 %v2626, 1e-05
        %v2643 = vadd.f32 %v2627, 1e-05
        %v2644 = vadd.f32 %v2628, 1e-05
        %v2645 = vadd.f32 %v2629, 1e-05
        %v2646 = vadd.f32 %v2630, 1e-05
        %v2647 = vadd.f32 %v2631, 1e-05
        %v2648 = vadd.f32 %v2632, 1e-05
        %v2649 = vadd.f32 %v2633, 1e-05
        %v2650 = vadd.f32 %v2634, 1e-05
        %v2651 = vadd.f32 %v2635, 1e-05
        %v2652 = vadd.f32 %v2636, 1e-05
        %v2653 = vrsqrt.pop %v2637
        %v2654 = vrsqrt.pop %v2638
        %v2655 = vrsqrt.pop %v2639
        %v2656 = vrsqrt.pop %v2640
        %v2657 = vrsqrt.pop %v2641
        %v2658 = vrsqrt.pop %v2642
        %v2659 = vrsqrt.pop %v2643
        %v2660 = vrsqrt.pop %v2644
        %v2661 = vrsqrt.pop %v2645
        %v2662 = vrsqrt.pop %v2646
        %v2663 = vrsqrt.pop %v2647
        %v2664 = vrsqrt.pop %v2648
        %v2665 = vrsqrt.pop %v2649
        %v2666 = vrsqrt.pop %v2650
        %v2667 = vrsqrt.pop %v2651
        %v2668 = vrsqrt.pop %v2652
        %v2669 = vmul.f32 %v2589, %v2653
        %v2670 = vmul.f32 %v2590, %v2654
        %v2671 = vmul.f32 %v2591, %v2655
        %v2672 = vmul.f32 %v2592, %v2656
        %v2673 = vmul.f32 %v2593, %v2657
        %v2674 = vmul.f32 %v2594, %v2658
        %v2675 = vmul.f32 %v2595, %v2659
        %v2676 = vmul.f32 %v2596, %v2660
        %v2677 = vmul.f32 %v2597, %v2661
        %v2678 = vmul.f32 %v2598, %v2662
        %v2679 = vmul.f32 %v2599, %v2663
        %v2680 = vmul.f32 %v2600, %v2664
        %v2681 = vmul.f32 %v2601, %v2665
        %v2682 = vmul.f32 %v2602, %v2666
        %v2683 = vmul.f32 %v2603, %v2667
        %v2684 = vmul.f32 %v2604, %v2668
        %v2685 = vlaneseq
        %v2686 = vshrl.u32 %v2685, 7
        %v2687 = vsub.s32 0, %v2686
        %v2688 = vrot.slane %v2050, %v2687
        %v2689 = vmul.f32 %v2669, %v2688
        %v2690 = vmul.f32 %v2670, %v2688
        %v2691 = vmul.f32 %v2671, %v2688
        %v2692 = vmul.f32 %v2672, %v2688
        %v2693 = vmul.f32 %v2673, %v2688
        %v2694 = vmul.f32 %v2674, %v2688
        %v2695 = vmul.f32 %v2675, %v2688
        %v2696 = vmul.f32 %v2676, %v2688
        %v2697 = vmul.f32 %v2677, %v2688
        %v2698 = vmul.f32 %v2678, %v2688
        %v2699 = vmul.f32 %v2679, %v2688
        %v2700 = vmul.f32 %v2680, %v2688
        %v2701 = vmul.f32 %v2681, %v2688
        %v2702 = vmul.f32 %v2682, %v2688
        %v2703 = vmul.f32 %v2683, %v2688
        %v2704 = vmul.f32 %v2684, %v2688
        %v2705 = vadd.f32 %v2032, %v2689
        %v2706 = vadd.f32 %v2033, %v2690
        %v2707 = vadd.f32 %v2034, %v2691
        %v2708 = vadd.f32 %v2035, %v2692
        %v2709 = vadd.f32 %v2036, %v2693
        %v2710 = vadd.f32 %v2037, %v2694
        %v2711 = vadd.f32 %v2038, %v2695
        %v2712 = vadd.f32 %v2039, %v2696
        %v2713 = vadd.f32 %v2040, %v2697
        %v2714 = vadd.f32 %v2041, %v2698
        %v2715 = vadd.f32 %v2042, %v2699
        %v2716 = vadd.f32 %v2043, %v2700
        %v2717 = vadd.f32 %v2044, %v2701
        %v2718 = vadd.f32 %v2045, %v2702
        %v2719 = vadd.f32 %v2046, %v2703
        %v2720 = vadd.f32 %v2047, %v2704
        %v2721 = vld [vmem:[%s3 + $0x9] sm:$0x1]
        %v2722 = vld [vmem:[%s3 + $0xa] sm:$0x1]
        %v2723 = vld [vmem:[%s3 + $0xb] sm:$0x1]
        %v2724 = vlaneseq
        %v2725 = vshrl.u32 %v2724, 7
        %v2726 = vsub.s32 0, %v2725
        %v2727 = vrot.slane %v2721, %v2726
        %v2728 = vadd.f32 %v626, %v2727
        %v2729 = vadd.f32 %v632, %v2727
        %v2730 = vadd.f32 %v638, %v2727
        %v2731 = vadd.f32 %v644, %v2727
        %v2732 = vadd.f32 %v650, %v2727
        %v2733 = vadd.f32 %v656, %v2727
        %v2734 = vadd.f32 %v662, %v2727
        %v2735 = vadd.f32 %v668, %v2727
        %v2736 = vadd.f32 %v674, %v2727
        %v2737 = vadd.f32 %v680, %v2727
        %v2738 = vadd.f32 %v686, %v2727
        %v2739 = vadd.f32 %v692, %v2727
        %v2740 = vadd.f32 %v698, %v2727
        %v2741 = vadd.f32 %v704, %v2727
        %v2742 = vadd.f32 %v710, %v2727
        %v2743 = vadd.f32 %v716, %v2727
        %v2744 = vmax.f32 %v2728, 0.0
        %v2745 = vmax.f32 %v2729, 0.0
        %v2746 = vmax.f32 %v2730, 0.0
        %v2747 = vmax.f32 %v2731, 0.0
        %v2748 = vmax.f32 %v2732, 0.0
        %v2749 = vmax.f32 %v2733, 0.0
        %v2750 = vmax.f32 %v2734, 0.0
        %v2751 = vmax.f32 %v2735, 0.0
        %v2752 = vmax.f32 %v2736, 0.0
        %v2753 = vmax.f32 %v2737, 0.0
        %v2754 = vmax.f32 %v2738, 0.0
        %v2755 = vmax.f32 %v2739, 0.0
        %v2756 = vmax.f32 %v2740, 0.0
        %v2757 = vmax.f32 %v2741, 0.0
        %v2758 = vmax.f32 %v2742, 0.0
        %v2759 = vmax.f32 %v2743, 0.0
        %2760 = vadd.xlane.f32.xlu0 %v2744
        %v2761 = vpop.xlane.xlu0 %2760
        %2762 = vadd.xlane.f32.xlu0 %v2745
        %v2763 = vpop.xlane.xlu0 %2762
        %2764 = vadd.xlane.f32.xlu0 %v2746
        %v2765 = vpop.xlane.xlu0 %2764
        %2766 = vadd.xlane.f32.xlu0 %v2747
        %v2767 = vpop.xlane.xlu0 %2766
        %2768 = vadd.xlane.f32.xlu0 %v2748
        %v2769 = vpop.xlane.xlu0 %2768
        %2770 = vadd.xlane.f32.xlu0 %v2749
        %v2771 = vpop.xlane.xlu0 %2770
        %2772 = vadd.xlane.f32.xlu0 %v2750
        %v2773 = vpop.xlane.xlu0 %2772
        %2774 = vadd.xlane.f32.xlu0 %v2751
        %v2775 = vpop.xlane.xlu0 %2774
        %2776 = vadd.xlane.f32.xlu0 %v2752
        %v2777 = vpop.xlane.xlu0 %2776
        %2778 = vadd.xlane.f32.xlu0 %v2753
        %v2779 = vpop.xlane.xlu0 %2778
        %2780 = vadd.xlane.f32.xlu0 %v2754
        %v2781 = vpop.xlane.xlu0 %2780
        %2782 = vadd.xlane.f32.xlu0 %v2755
        %v2783 = vpop.xlane.xlu0 %2782
        %2784 = vadd.xlane.f32.xlu0 %v2756
        %v2785 = vpop.xlane.xlu0 %2784
        %2786 = vadd.xlane.f32.xlu0 %v2757
        %v2787 = vpop.xlane.xlu0 %2786
        %2788 = vadd.xlane.f32.xlu0 %v2758
        %v2789 = vpop.xlane.xlu0 %2788
        %2790 = vadd.xlane.f32.xlu0 %v2759
        %v2791 = vpop.xlane.xlu0 %2790
        %v2792 = vmul.f32 %v2761, %v789
        %v2793 = vmul.f32 %v2763, %v789
        %v2794 = vmul.f32 %v2765, %v789
        %v2795 = vmul.f32 %v2767, %v789
        %v2796 = vmul.f32 %v2769, %v789
        %v2797 = vmul.f32 %v2771, %v789
        %v2798 = vmul.f32 %v2773, %v789
        %v2799 = vmul.f32 %v2775, %v789
        %v2800 = vmul.f32 %v2777, %v789
        %v2801 = vmul.f32 %v2779, %v789
        %v2802 = vmul.f32 %v2781, %v789
        %v2803 = vmul.f32 %v2783, %v789
        %v2804 = vmul.f32 %v2785, %v789
        %v2805 = vmul.f32 %v2787, %v789
        %v2806 = vmul.f32 %v2789, %v789
        %v2807 = vmul.f32 %v2791, %v789
        %v2808 = vmul.f32 %v2744, %v2744
        %v2809 = vmul.f32 %v2745, %v2745
        %v2810 = vmul.f32 %v2746, %v2746
        %v2811 = vmul.f32 %v2747, %v2747
        %v2812 = vmul.f32 %v2748, %v2748
        %v2813 = vmul.f32 %v2749, %v2749
        %v2814 = vmul.f32 %v2750, %v2750
        %v2815 = vmul.f32 %v2751, %v2751
        %v2816 = vmul.f32 %v2752, %v2752
        %v2817 = vmul.f32 %v2753, %v2753
        %v2818 = vmul.f32 %v2754, %v2754
        %v2819 = vmul.f32 %v2755, %v2755
        %v2820 = vmul.f32 %v2756, %v2756
        %v2821 = vmul.f32 %v2757, %v2757
        %v2822 = vmul.f32 %v2758, %v2758
        %v2823 = vmul.f32 %v2759, %v2759
        %2824 = vadd.xlane.f32.xlu0 %v2808
        %v2825 = vpop.xlane.xlu0 %2824
        %2826 = vadd.xlane.f32.xlu0 %v2809
        %v2827 = vpop.xlane.xlu0 %2826
        %2828 = vadd.xlane.f32.xlu0 %v2810
        %v2829 = vpop.xlane.xlu0 %2828
        %2830 = vadd.xlane.f32.xlu0 %v2811
        %v2831 = vpop.xlane.xlu0 %2830
        %2832 = vadd.xlane.f32.xlu0 %v2812
        %v2833 = vpop.xlane.xlu0 %2832
        %2834 = vadd.xlane.f32.xlu0 %v2813
        %v2835 = vpop.xlane.xlu0 %2834
        %2836 = vadd.xlane.f32.xlu0 %v2814
        %v2837 = vpop.xlane.xlu0 %2836
        %2838 = vadd.xlane.f32.xlu0 %v2815
        %v2839 = vpop.xlane.xlu0 %2838
        %2840 = vadd.xlane.f32.xlu0 %v2816
        %v2841 = vpop.xlane.xlu0 %2840
        %2842 = vadd.xlane.f32.xlu0 %v2817
        %v2843 = vpop.xlane.xlu0 %2842
        %2844 = vadd.xlane.f32.xlu0 %v2818
        %v2845 = vpop.xlane.xlu0 %2844
        %2846 = vadd.xlane.f32.xlu0 %v2819
        %v2847 = vpop.xlane.xlu0 %2846
        %2848 = vadd.xlane.f32.xlu0 %v2820
        %v2849 = vpop.xlane.xlu0 %2848
        %2850 = vadd.xlane.f32.xlu0 %v2821
        %v2851 = vpop.xlane.xlu0 %2850
        %2852 = vadd.xlane.f32.xlu0 %v2822
        %v2853 = vpop.xlane.xlu0 %2852
        %2854 = vadd.xlane.f32.xlu0 %v2823
        %v2855 = vpop.xlane.xlu0 %2854
        %v2856 = vmul.f32 %v2825, %v789
        %v2857 = vmul.f32 %v2827, %v789
        %v2858 = vmul.f32 %v2829, %v789
        %v2859 = vmul.f32 %v2831, %v789
        %v2860 = vmul.f32 %v2833, %v789
        %v2861 = vmul.f32 %v2835, %v789
        %v2862 = vmul.f32 %v2837, %v789
        %v2863 = vmul.f32 %v2839, %v789
        %v2864 = vmul.f32 %v2841, %v789
        %v2865 = vmul.f32 %v2843, %v789
        %v2866 = vmul.f32 %v2845, %v789
        %v2867 = vmul.f32 %v2847, %v789
        %v2868 = vmul.f32 %v2849, %v789
        %v2869 = vmul.f32 %v2851, %v789
        %v2870 = vmul.f32 %v2853, %v789
        %v2871 = vmul.f32 %v2855, %v789
        %v2872 = vsub.f32 %v2744, %v2792
        %v2873 = vsub.f32 %v2745, %v2793
        %v2874 = vsub.f32 %v2746, %v2794
        %v2875 = vsub.f32 %v2747, %v2795
        %v2876 = vsub.f32 %v2748, %v2796
        %v2877 = vsub.f32 %v2749, %v2797
        %v2878 = vsub.f32 %v2750, %v2798
        %v2879 = vsub.f32 %v2751, %v2799
        %v2880 = vsub.f32 %v2752, %v2800
        %v2881 = vsub.f32 %v2753, %v2801
        %v2882 = vsub.f32 %v2754, %v2802
        %v2883 = vsub.f32 %v2755, %v2803
        %v2884 = vsub.f32 %v2756, %v2804
        %v2885 = vsub.f32 %v2757, %v2805
        %v2886 = vsub.f32 %v2758, %v2806
        %v2887 = vsub.f32 %v2759, %v2807
        %v2888 = vmul.f32 %v2792, %v2792
        %v2889 = vmul.f32 %v2793, %v2793
        %v2890 = vmul.f32 %v2794, %v2794
        %v2891 = vmul.f32 %v2795, %v2795
        %v2892 = vmul.f32 %v2796, %v2796
        %v2893 = vmul.f32 %v2797, %v2797
        %v2894 = vmul.f32 %v2798, %v2798
        %v2895 = vmul.f32 %v2799, %v2799
        %v2896 = vmul.f32 %v2800, %v2800
        %v2897 = vmul.f32 %v2801, %v2801
        %v2898 = vmul.f32 %v2802, %v2802
        %v2899 = vmul.f32 %v2803, %v2803
        %v2900 = vmul.f32 %v2804, %v2804
        %v2901 = vmul.f32 %v2805, %v2805
        %v2902 = vmul.f32 %v2806, %v2806
        %v2903 = vmul.f32 %v2807, %v2807
        %v2904 = vsub.f32 %v2856, %v2888
        %v2905 = vsub.f32 %v2857, %v2889
        %v2906 = vsub.f32 %v2858, %v2890
        %v2907 = vsub.f32 %v2859, %v2891
        %v2908 = vsub.f32 %v2860, %v2892
        %v2909 = vsub.f32 %v2861, %v2893
        %v2910 = vsub.f32 %v2862, %v2894
        %v2911 = vsub.f32 %v2863, %v2895
        %v2912 = vsub.f32 %v2864, %v2896
        %v2913 = vsub.f32 %v2865, %v2897
        %v2914 = vsub.f32 %v2866, %v2898
        %v2915 = vsub.f32 %v2867, %v2899
        %v2916 = vsub.f32 %v2868, %v2900
        %v2917 = vsub.f32 %v2869, %v2901
        %v2918 = vsub.f32 %v2870, %v2902
        %v2919 = vsub.f32 %v2871, %v2903
        %v2920 = vadd.f32 %v2904, 1e-05
        %v2921 = vadd.f32 %v2905, 1e-05
        %v2922 = vadd.f32 %v2906, 1e-05
        %v2923 = vadd.f32 %v2907, 1e-05
        %v2924 = vadd.f32 %v2908, 1e-05
        %v2925 = vadd.f32 %v2909, 1e-05
        %v2926 = vadd.f32 %v2910, 1e-05
        %v2927 = vadd.f32 %v2911, 1e-05
        %v2928 = vadd.f32 %v2912, 1e-05
        %v2929 = vadd.f32 %v2913, 1e-05
        %v2930 = vadd.f32 %v2914, 1e-05
        %v2931 = vadd.f32 %v2915, 1e-05
        %v2932 = vadd.f32 %v2916, 1e-05
        %v2933 = vadd.f32 %v2917, 1e-05
        %v2934 = vadd.f32 %v2918, 1e-05
        %v2935 = vadd.f32 %v2919, 1e-05
        %v2936 = vrsqrt.pop %v2920
        %v2937 = vrsqrt.pop %v2921
        %v2938 = vrsqrt.pop %v2922
        %v2939 = vrsqrt.pop %v2923
        %v2940 = vrsqrt.pop %v2924
        %v2941 = vrsqrt.pop %v2925
        %v2942 = vrsqrt.pop %v2926
        %v2943 = vrsqrt.pop %v2927
        %v2944 = vrsqrt.pop %v2928
        %v2945 = vrsqrt.pop %v2929
        %v2946 = vrsqrt.pop %v2930
        %v2947 = vrsqrt.pop %v2931
        %v2948 = vrsqrt.pop %v2932
        %v2949 = vrsqrt.pop %v2933
        %v2950 = vrsqrt.pop %v2934
        %v2951 = vrsqrt.pop %v2935
        %v2952 = vmul.f32 %v2872, %v2936
        %v2953 = vmul.f32 %v2873, %v2937
        %v2954 = vmul.f32 %v2874, %v2938
        %v2955 = vmul.f32 %v2875, %v2939
        %v2956 = vmul.f32 %v2876, %v2940
        %v2957 = vmul.f32 %v2877, %v2941
        %v2958 = vmul.f32 %v2878, %v2942
        %v2959 = vmul.f32 %v2879, %v2943
        %v2960 = vmul.f32 %v2880, %v2944
        %v2961 = vmul.f32 %v2881, %v2945
        %v2962 = vmul.f32 %v2882, %v2946
        %v2963 = vmul.f32 %v2883, %v2947
        %v2964 = vmul.f32 %v2884, %v2948
        %v2965 = vmul.f32 %v2885, %v2949
        %v2966 = vmul.f32 %v2886, %v2950
        %v2967 = vmul.f32 %v2887, %v2951
        %s2968 = scalar_lea.vmem [#allocation5], 384
        %v2969 = vld [vmem:[%s2968] sm:$0xff]
        %v2970 = vld [vmem:[%s2968 + $0x8] sm:$0xff]
        %v2971 = vld [vmem:[%s2968 + $0x10] sm:$0xff]
        %v2972 = vld [vmem:[%s2968 + $0x18] sm:$0xff]
        %v2973 = vld [vmem:[%s2968 + $0x20] sm:$0xff]
        %v2974 = vld [vmem:[%s2968 + $0x28] sm:$0xff]
        %v2975 = vld [vmem:[%s2968 + $0x30] sm:$0xff]
        %v2976 = vld [vmem:[%s2968 + $0x38] sm:$0xff]
        %v2977 = vld [vmem:[%s2968 + $0x40] sm:$0xff]
        %v2978 = vld [vmem:[%s2968 + $0x48] sm:$0xff]
        %v2979 = vld [vmem:[%s2968 + $0x50] sm:$0xff]
        %v2980 = vld [vmem:[%s2968 + $0x58] sm:$0xff]
        %v2981 = vld [vmem:[%s2968 + $0x60] sm:$0xff]
        %v2982 = vld [vmem:[%s2968 + $0x68] sm:$0xff]
        %v2983 = vld [vmem:[%s2968 + $0x70] sm:$0xff]
        %v2984 = vld [vmem:[%s2968 + $0x78] sm:$0xff]
        %v2985 = vlaneseq
        %v2986 = vshrl.u32 %v2985, 7
        %v2987 = vsub.s32 0, %v2986
        %v2988 = vrot.slane %v2722, %v2987
        %2989 = vmatprep.subr.mxu0 0.0
        %2990 = vmatpush1.msra.mxu0 %v2984
        %2991 = vmatprep.subr.mxu0 0.0
        %2992 = vmatpush1.msra.mxu0 %v2983
        %2993 = vmatprep.subr.mxu0 0.0
        %2994 = vmatpush1.msra.mxu0 %v2982
        %2995 = vmatprep.subr.mxu0 0.0
        %2996 = vmatpush1.msra.mxu0 %v2981
        %2997 = vmatprep.subr.mxu0 0.0
        %2998 = vmatpush1.msra.mxu0 %v2980
        %2999 = vmatprep.subr.mxu0 0.0
        %3000 = vmatpush1.msra.mxu0 %v2979
        %3001 = vmatprep.subr.mxu0 0.0
        %3002 = vmatpush1.msra.mxu0 %v2978
        %3003 = vmatprep.subr.mxu0 0.0
        %3004 = vmatpush1.msra.mxu0 %v2977
        %3005 = vmatprep.subr.mxu0 0.0
        %3006 = vmatpush1.msra.mxu0 %v2976
        %3007 = vmatprep.subr.mxu0 0.0
        %3008 = vmatpush1.msra.mxu0 %v2975
        %3009 = vmatprep.subr.mxu0 0.0
        %3010 = vmatpush1.msra.mxu0 %v2974
        %3011 = vmatprep.subr.mxu0 0.0
        %3012 = vmatpush1.msra.mxu0 %v2973
        %3013 = vmatprep.subr.mxu0 0.0
        %3014 = vmatpush1.msra.mxu0 %v2972
        %3015 = vmatprep.subr.mxu0 0.0
        %3016 = vmatpush1.msra.mxu0 %v2971
        %3017 = vmatprep.subr.mxu0 0.0
        %3018 = vmatpush1.msra.mxu0 %v2970
        %3019 = vmatprep.subr.mxu0 0.0
        %3020 = vmatpush1.msra.mxu0 %v2969
        %3021 = vmatprep.subr.mxu0 0.0
        %3022 = vmatpush2.msra.mxu0 0.0
        %3023 = vmatprep.subr.mxu0 0.0
        %3024 = vmatpush2.msra.mxu0 0.0
        %3025 = vmatprep.subr.mxu0 0.0
        %3026 = vmatpush2.msra.mxu0 0.0
        %3027 = vmatprep.subr.mxu0 0.0
        %3028 = vmatpush2.msra.mxu0 0.0
        %3029 = vmatprep.subr.mxu0 0.0
        %3030 = vmatpush2.msra.mxu0 0.0
        %3031 = vmatprep.subr.mxu0 0.0
        %3032 = vmatpush2.msra.mxu0 0.0
        %3033 = vmatprep.subr.mxu0 0.0
        %3034 = vmatpush2.msra.mxu0 0.0
        %3035 = vmatprep.subr.mxu0 0.0
        %3036 = vmatpush2.msra.mxu0 0.0
        %3037 = vmatprep.subr.mxu0 0.0
        %3038 = vmatpush2.msra.mxu0 0.0
        %3039 = vmatprep.subr.mxu0 0.0
        %3040 = vmatpush2.msra.mxu0 0.0
        %3041 = vmatprep.subr.mxu0 0.0
        %3042 = vmatpush2.msra.mxu0 0.0
        %3043 = vmatprep.subr.mxu0 0.0
        %3044 = vmatpush2.msra.mxu0 0.0
        %3045 = vmatprep.subr.mxu0 0.0
        %3046 = vmatpush2.msra.mxu0 0.0
        %3047 = vmatprep.subr.mxu0 0.0
        %3048 = vmatpush2.msra.mxu0 0.0
        %3049 = vmatprep.subr.mxu0 0.0
        %3050 = vmatpush2.msra.mxu0 0.0
        %3051 = vmatprep.subr.mxu0 0.0
        %3052 = vmatpush2.msra.mxu0 0.0
        %3053 = vmatprep.mubr.f32.mxu0 0.0
        %3054 = vmatmul.mubr.f32.gmra.mxu0 %v2952
        %v3055 = vpop.f32.mrf.mxu0
        %v3056 = vadd.f32 %v2988, %v3055
        %v3057 = vpop.f32.mrf.mxu0
        %3058 = vmatprep.mubr.f32.mxu0 0.0
        %3059 = vmatmul.mubr.f32.gmra.mxu0 %v2953
        %v3060 = vpop.f32.mrf.mxu0
        %v3061 = vadd.f32 %v2988, %v3060
        %v3062 = vpop.f32.mrf.mxu0
        %3063 = vmatprep.mubr.f32.mxu0 0.0
        %3064 = vmatmul.mubr.f32.gmra.mxu0 %v2954
        %v3065 = vpop.f32.mrf.mxu0
        %v3066 = vadd.f32 %v2988, %v3065
        %v3067 = vpop.f32.mrf.mxu0
        %3068 = vmatprep.mubr.f32.mxu0 0.0
        %3069 = vmatmul.mubr.f32.gmra.mxu0 %v2955
        %v3070 = vpop.f32.mrf.mxu0
        %v3071 = vadd.f32 %v2988, %v3070
        %v3072 = vpop.f32.mrf.mxu0
        %3073 = vmatprep.mubr.f32.mxu0 0.0
        %3074 = vmatmul.mubr.f32.gmra.mxu0 %v2956
        %v3075 = vpop.f32.mrf.mxu0
        %v3076 = vadd.f32 %v2988, %v3075
        %v3077 = vpop.f32.mrf.mxu0
        %3078 = vmatprep.mubr.f32.mxu0 0.0
        %3079 = vmatmul.mubr.f32.gmra.mxu0 %v2957
        %v3080 = vpop.f32.mrf.mxu0
        %v3081 = vadd.f32 %v2988, %v3080
        %v3082 = vpop.f32.mrf.mxu0
        %3083 = vmatprep.mubr.f32.mxu0 0.0
        %3084 = vmatmul.mubr.f32.gmra.mxu0 %v2958
        %v3085 = vpop.f32.mrf.mxu0
        %v3086 = vadd.f32 %v2988, %v3085
        %v3087 = vpop.f32.mrf.mxu0
        %3088 = vmatprep.mubr.f32.mxu0 0.0
        %3089 = vmatmul.mubr.f32.gmra.mxu0 %v2959
        %v3090 = vpop.f32.mrf.mxu0
        %v3091 = vadd.f32 %v2988, %v3090
        %v3092 = vpop.f32.mrf.mxu0
        %3093 = vmatprep.mubr.f32.mxu0 0.0
        %3094 = vmatmul.mubr.f32.gmra.mxu0 %v2960
        %v3095 = vpop.f32.mrf.mxu0
        %v3096 = vadd.f32 %v2988, %v3095
        %v3097 = vpop.f32.mrf.mxu0
        %3098 = vmatprep.mubr.f32.mxu0 0.0
        %3099 = vmatmul.mubr.f32.gmra.mxu0 %v2961
        %v3100 = vpop.f32.mrf.mxu0
        %v3101 = vadd.f32 %v2988, %v3100
        %v3102 = vpop.f32.mrf.mxu0
        %3103 = vmatprep.mubr.f32.mxu0 0.0
        %3104 = vmatmul.mubr.f32.gmra.mxu0 %v2962
        %v3105 = vpop.f32.mrf.mxu0
        %v3106 = vadd.f32 %v2988, %v3105
        %v3107 = vpop.f32.mrf.mxu0
        %3108 = vmatprep.mubr.f32.mxu0 0.0
        %3109 = vmatmul.mubr.f32.gmra.mxu0 %v2963
        %v3110 = vpop.f32.mrf.mxu0
        %v3111 = vadd.f32 %v2988, %v3110
        %v3112 = vpop.f32.mrf.mxu0
        %3113 = vmatprep.mubr.f32.mxu0 0.0
        %3114 = vmatmul.mubr.f32.gmra.mxu0 %v2964
        %v3115 = vpop.f32.mrf.mxu0
        %v3116 = vadd.f32 %v2988, %v3115
        %v3117 = vpop.f32.mrf.mxu0
        %3118 = vmatprep.mubr.f32.mxu0 0.0
        %3119 = vmatmul.mubr.f32.gmra.mxu0 %v2965
        %v3120 = vpop.f32.mrf.mxu0
        %v3121 = vadd.f32 %v2988, %v3120
        %v3122 = vpop.f32.mrf.mxu0
        %3123 = vmatprep.mubr.f32.mxu0 0.0
        %3124 = vmatmul.mubr.f32.gmra.mxu0 %v2966
        %v3125 = vpop.f32.mrf.mxu0
        %v3126 = vadd.f32 %v2988, %v3125
        %v3127 = vpop.f32.mrf.mxu0
        %3128 = vmatprep.mubr.f32.mxu0 0.0
        %3129 = vmatmul.mubr.f32.gmra.mxu0 %v2967
        %v3130 = vpop.f32.mrf.mxu0
        %v3131 = vadd.f32 %v2988, %v3130
        %v3132 = vpop.f32.mrf.mxu0
        %3133 = vdwg.mxu0
        %v3134 = vmax.f32 %v3056, 0.0
        %v3135 = vmax.f32 %v3061, 0.0
        %v3136 = vmax.f32 %v3066, 0.0
        %v3137 = vmax.f32 %v3071, 0.0
        %v3138 = vmax.f32 %v3076, 0.0
        %v3139 = vmax.f32 %v3081, 0.0
        %v3140 = vmax.f32 %v3086, 0.0
        %v3141 = vmax.f32 %v3091, 0.0
        %v3142 = vmax.f32 %v3096, 0.0
        %v3143 = vmax.f32 %v3101, 0.0
        %v3144 = vmax.f32 %v3106, 0.0
        %v3145 = vmax.f32 %v3111, 0.0
        %v3146 = vmax.f32 %v3116, 0.0
        %v3147 = vmax.f32 %v3121, 0.0
        %v3148 = vmax.f32 %v3126, 0.0
        %v3149 = vmax.f32 %v3131, 0.0
        %3150 = vadd.xlane.f32.xlu0 %v3134
        %v3151 = vpop.xlane.xlu0 %3150
        %3152 = vadd.xlane.f32.xlu0 %v3135
        %v3153 = vpop.xlane.xlu0 %3152
        %3154 = vadd.xlane.f32.xlu0 %v3136
        %v3155 = vpop.xlane.xlu0 %3154
        %3156 = vadd.xlane.f32.xlu0 %v3137
        %v3157 = vpop.xlane.xlu0 %3156
        %3158 = vadd.xlane.f32.xlu0 %v3138
        %v3159 = vpop.xlane.xlu0 %3158
        %3160 = vadd.xlane.f32.xlu0 %v3139
        %v3161 = vpop.xlane.xlu0 %3160
        %3162 = vadd.xlane.f32.xlu0 %v3140
        %v3163 = vpop.xlane.xlu0 %3162
        %3164 = vadd.xlane.f32.xlu0 %v3141
        %v3165 = vpop.xlane.xlu0 %3164
        %3166 = vadd.xlane.f32.xlu0 %v3142
        %v3167 = vpop.xlane.xlu0 %3166
        %3168 = vadd.xlane.f32.xlu0 %v3143
        %v3169 = vpop.xlane.xlu0 %3168
        %3170 = vadd.xlane.f32.xlu0 %v3144
        %v3171 = vpop.xlane.xlu0 %3170
        %3172 = vadd.xlane.f32.xlu0 %v3145
        %v3173 = vpop.xlane.xlu0 %3172
        %3174 = vadd.xlane.f32.xlu0 %v3146
        %v3175 = vpop.xlane.xlu0 %3174
        %3176 = vadd.xlane.f32.xlu0 %v3147
        %v3177 = vpop.xlane.xlu0 %3176
        %3178 = vadd.xlane.f32.xlu0 %v3148
        %v3179 = vpop.xlane.xlu0 %3178
        %3180 = vadd.xlane.f32.xlu0 %v3149
        %v3181 = vpop.xlane.xlu0 %3180
        %v3182 = vmul.f32 %v3151, %v789
        %v3183 = vmul.f32 %v3153, %v789
        %v3184 = vmul.f32 %v3155, %v789
        %v3185 = vmul.f32 %v3157, %v789
        %v3186 = vmul.f32 %v3159, %v789
        %v3187 = vmul.f32 %v3161, %v789
        %v3188 = vmul.f32 %v3163, %v789
        %v3189 = vmul.f32 %v3165, %v789
        %v3190 = vmul.f32 %v3167, %v789
        %v3191 = vmul.f32 %v3169, %v789
        %v3192 = vmul.f32 %v3171, %v789
        %v3193 = vmul.f32 %v3173, %v789
        %v3194 = vmul.f32 %v3175, %v789
        %v3195 = vmul.f32 %v3177, %v789
        %v3196 = vmul.f32 %v3179, %v789
        %v3197 = vmul.f32 %v3181, %v789
        %v3198 = vmul.f32 %v3134, %v3134
        %v3199 = vmul.f32 %v3135, %v3135
        %v3200 = vmul.f32 %v3136, %v3136
        %v3201 = vmul.f32 %v3137, %v3137
        %v3202 = vmul.f32 %v3138, %v3138
        %v3203 = vmul.f32 %v3139, %v3139
        %v3204 = vmul.f32 %v3140, %v3140
        %v3205 = vmul.f32 %v3141, %v3141
        %v3206 = vmul.f32 %v3142, %v3142
        %v3207 = vmul.f32 %v3143, %v3143
        %v3208 = vmul.f32 %v3144, %v3144
        %v3209 = vmul.f32 %v3145, %v3145
        %v3210 = vmul.f32 %v3146, %v3146
        %v3211 = vmul.f32 %v3147, %v3147
        %v3212 = vmul.f32 %v3148, %v3148
        %v3213 = vmul.f32 %v3149, %v3149
        %3214 = vadd.xlane.f32.xlu0 %v3198
        %v3215 = vpop.xlane.xlu0 %3214
        %3216 = vadd.xlane.f32.xlu0 %v3199
        %v3217 = vpop.xlane.xlu0 %3216
        %3218 = vadd.xlane.f32.xlu0 %v3200
        %v3219 = vpop.xlane.xlu0 %3218
        %3220 = vadd.xlane.f32.xlu0 %v3201
        %v3221 = vpop.xlane.xlu0 %3220
        %3222 = vadd.xlane.f32.xlu0 %v3202
        %v3223 = vpop.xlane.xlu0 %3222
        %3224 = vadd.xlane.f32.xlu0 %v3203
        %v3225 = vpop.xlane.xlu0 %3224
        %3226 = vadd.xlane.f32.xlu0 %v3204
        %v3227 = vpop.xlane.xlu0 %3226
        %3228 = vadd.xlane.f32.xlu0 %v3205
        %v3229 = vpop.xlane.xlu0 %3228
        %3230 = vadd.xlane.f32.xlu0 %v3206
        %v3231 = vpop.xlane.xlu0 %3230
        %3232 = vadd.xlane.f32.xlu0 %v3207
        %v3233 = vpop.xlane.xlu0 %3232
        %3234 = vadd.xlane.f32.xlu0 %v3208
        %v3235 = vpop.xlane.xlu0 %3234
        %3236 = vadd.xlane.f32.xlu0 %v3209
        %v3237 = vpop.xlane.xlu0 %3236
        %3238 = vadd.xlane.f32.xlu0 %v3210
        %v3239 = vpop.xlane.xlu0 %3238
        %3240 = vadd.xlane.f32.xlu0 %v3211
        %v3241 = vpop.xlane.xlu0 %3240
        %3242 = vadd.xlane.f32.xlu0 %v3212
        %v3243 = vpop.xlane.xlu0 %3242
        %3244 = vadd.xlane.f32.xlu0 %v3213
        %v3245 = vpop.xlane.xlu0 %3244
        %v3246 = vmul.f32 %v3215, %v789
        %v3247 = vmul.f32 %v3217, %v789
        %v3248 = vmul.f32 %v3219, %v789
        %v3249 = vmul.f32 %v3221, %v789
        %v3250 = vmul.f32 %v3223, %v789
        %v3251 = vmul.f32 %v3225, %v789
        %v3252 = vmul.f32 %v3227, %v789
        %v3253 = vmul.f32 %v3229, %v789
        %v3254 = vmul.f32 %v3231, %v789
        %v3255 = vmul.f32 %v3233, %v789
        %v3256 = vmul.f32 %v3235, %v789
        %v3257 = vmul.f32 %v3237, %v789
        %v3258 = vmul.f32 %v3239, %v789
        %v3259 = vmul.f32 %v3241, %v789
        %v3260 = vmul.f32 %v3243, %v789
        %v3261 = vmul.f32 %v3245, %v789
        %v3262 = vsub.f32 %v3134, %v3182
        %v3263 = vsub.f32 %v3135, %v3183
        %v3264 = vsub.f32 %v3136, %v3184
        %v3265 = vsub.f32 %v3137, %v3185
        %v3266 = vsub.f32 %v3138, %v3186
        %v3267 = vsub.f32 %v3139, %v3187
        %v3268 = vsub.f32 %v3140, %v3188
        %v3269 = vsub.f32 %v3141, %v3189
        %v3270 = vsub.f32 %v3142, %v3190
        %v3271 = vsub.f32 %v3143, %v3191
        %v3272 = vsub.f32 %v3144, %v3192
        %v3273 = vsub.f32 %v3145, %v3193
        %v3274 = vsub.f32 %v3146, %v3194
        %v3275 = vsub.f32 %v3147, %v3195
        %v3276 = vsub.f32 %v3148, %v3196
        %v3277 = vsub.f32 %v3149, %v3197
        %v3278 = vmul.f32 %v3182, %v3182
        %v3279 = vmul.f32 %v3183, %v3183
        %v3280 = vmul.f32 %v3184, %v3184
        %v3281 = vmul.f32 %v3185, %v3185
        %v3282 = vmul.f32 %v3186, %v3186
        %v3283 = vmul.f32 %v3187, %v3187
        %v3284 = vmul.f32 %v3188, %v3188
        %v3285 = vmul.f32 %v3189, %v3189
        %v3286 = vmul.f32 %v3190, %v3190
        %v3287 = vmul.f32 %v3191, %v3191
        %v3288 = vmul.f32 %v3192, %v3192
        %v3289 = vmul.f32 %v3193, %v3193
        %v3290 = vmul.f32 %v3194, %v3194
        %v3291 = vmul.f32 %v3195, %v3195
        %v3292 = vmul.f32 %v3196, %v3196
        %v3293 = vmul.f32 %v3197, %v3197
        %v3294 = vsub.f32 %v3246, %v3278
        %v3295 = vsub.f32 %v3247, %v3279
        %v3296 = vsub.f32 %v3248, %v3280
        %v3297 = vsub.f32 %v3249, %v3281
        %v3298 = vsub.f32 %v3250, %v3282
        %v3299 = vsub.f32 %v3251, %v3283
        %v3300 = vsub.f32 %v3252, %v3284
        %v3301 = vsub.f32 %v3253, %v3285
        %v3302 = vsub.f32 %v3254, %v3286
        %v3303 = vsub.f32 %v3255, %v3287
        %v3304 = vsub.f32 %v3256, %v3288
        %v3305 = vsub.f32 %v3257, %v3289
        %v3306 = vsub.f32 %v3258, %v3290
        %v3307 = vsub.f32 %v3259, %v3291
        %v3308 = vsub.f32 %v3260, %v3292
        %v3309 = vsub.f32 %v3261, %v3293
        %v3310 = vadd.f32 %v3294, 1e-05
        %v3311 = vadd.f32 %v3295, 1e-05
        %v3312 = vadd.f32 %v3296, 1e-05
        %v3313 = vadd.f32 %v3297, 1e-05
        %v3314 = vadd.f32 %v3298, 1e-05
        %v3315 = vadd.f32 %v3299, 1e-05
        %v3316 = vadd.f32 %v3300, 1e-05
        %v3317 = vadd.f32 %v3301, 1e-05
        %v3318 = vadd.f32 %v3302, 1e-05
        %v3319 = vadd.f32 %v3303, 1e-05
        %v3320 = vadd.f32 %v3304, 1e-05
        %v3321 = vadd.f32 %v3305, 1e-05
        %v3322 = vadd.f32 %v3306, 1e-05
        %v3323 = vadd.f32 %v3307, 1e-05
        %v3324 = vadd.f32 %v3308, 1e-05
        %v3325 = vadd.f32 %v3309, 1e-05
        %v3326 = vrsqrt.pop %v3310
        %v3327 = vrsqrt.pop %v3311
        %v3328 = vrsqrt.pop %v3312
        %v3329 = vrsqrt.pop %v3313
        %v3330 = vrsqrt.pop %v3314
        %v3331 = vrsqrt.pop %v3315
        %v3332 = vrsqrt.pop %v3316
        %v3333 = vrsqrt.pop %v3317
        %v3334 = vrsqrt.pop %v3318
        %v3335 = vrsqrt.pop %v3319
        %v3336 = vrsqrt.pop %v3320
        %v3337 = vrsqrt.pop %v3321
        %v3338 = vrsqrt.pop %v3322
        %v3339 = vrsqrt.pop %v3323
        %v3340 = vrsqrt.pop %v3324
        %v3341 = vrsqrt.pop %v3325
        %v3342 = vmul.f32 %v3262, %v3326
        %v3343 = vmul.f32 %v3263, %v3327
        %v3344 = vmul.f32 %v3264, %v3328
        %v3345 = vmul.f32 %v3265, %v3329
        %v3346 = vmul.f32 %v3266, %v3330
        %v3347 = vmul.f32 %v3267, %v3331
        %v3348 = vmul.f32 %v3268, %v3332
        %v3349 = vmul.f32 %v3269, %v3333
        %v3350 = vmul.f32 %v3270, %v3334
        %v3351 = vmul.f32 %v3271, %v3335
        %v3352 = vmul.f32 %v3272, %v3336
        %v3353 = vmul.f32 %v3273, %v3337
        %v3354 = vmul.f32 %v3274, %v3338
        %v3355 = vmul.f32 %v3275, %v3339
        %v3356 = vmul.f32 %v3276, %v3340
        %v3357 = vmul.f32 %v3277, %v3341
        %v3358 = vlaneseq
        %v3359 = vshrl.u32 %v3358, 7
        %v3360 = vsub.s32 0, %v3359
        %v3361 = vrot.slane %v2723, %v3360
        %v3362 = vmul.f32 %v3342, %v3361
        %v3363 = vmul.f32 %v3343, %v3361
        %v3364 = vmul.f32 %v3344, %v3361
        %v3365 = vmul.f32 %v3345, %v3361
        %v3366 = vmul.f32 %v3346, %v3361
        %v3367 = vmul.f32 %v3347, %v3361
        %v3368 = vmul.f32 %v3348, %v3361
        %v3369 = vmul.f32 %v3349, %v3361
        %v3370 = vmul.f32 %v3350, %v3361
        %v3371 = vmul.f32 %v3351, %v3361
        %v3372 = vmul.f32 %v3352, %v3361
        %v3373 = vmul.f32 %v3353, %v3361
        %v3374 = vmul.f32 %v3354, %v3361
        %v3375 = vmul.f32 %v3355, %v3361
        %v3376 = vmul.f32 %v3356, %v3361
        %v3377 = vmul.f32 %v3357, %v3361
        %v3378 = vadd.f32 %v2705, %v3362
        %v3379 = vadd.f32 %v2706, %v3363
        %v3380 = vadd.f32 %v2707, %v3364
        %v3381 = vadd.f32 %v2708, %v3365
        %v3382 = vadd.f32 %v2709, %v3366
        %v3383 = vadd.f32 %v2710, %v3367
        %v3384 = vadd.f32 %v2711, %v3368
        %v3385 = vadd.f32 %v2712, %v3369
        %v3386 = vadd.f32 %v2713, %v3370
        %v3387 = vadd.f32 %v2714, %v3371
        %v3388 = vadd.f32 %v2715, %v3372
        %v3389 = vadd.f32 %v2716, %v3373
        %v3390 = vadd.f32 %v2717, %v3374
        %v3391 = vadd.f32 %v2718, %v3375
        %v3392 = vadd.f32 %v2719, %v3376
        %v3393 = vadd.f32 %v2720, %v3377
        %v3394 = vld [vmem:[%s6] sm:$0x1]
        %v3395 = vld [vmem:[%s6 + $0x1] sm:$0x1]
        %v3396 = vld [vmem:[%s6 + $0x2] sm:$0x1]
        %v3397 = vld [vmem:[%s6 + $0x3] sm:$0x1]
        %v3398 = vld [vmem:[%s4] sm:$0xff]
        %v3399 = vld [vmem:[%s4 + $0x8] sm:$0xff]
        %v3400 = vld [vmem:[%s4 + $0x10] sm:$0xff]
        %v3401 = vld [vmem:[%s4 + $0x18] sm:$0xff]
        %v3402 = vld [vmem:[%s4 + $0x20] sm:$0xff]
        %v3403 = vld [vmem:[%s4 + $0x28] sm:$0xff]
        %v3404 = vld [vmem:[%s4 + $0x30] sm:$0xff]
        %v3405 = vld [vmem:[%s4 + $0x38] sm:$0xff]
        %v3406 = vld [vmem:[%s4 + $0x40] sm:$0xff]
        %v3407 = vld [vmem:[%s4 + $0x48] sm:$0xff]
        %v3408 = vld [vmem:[%s4 + $0x50] sm:$0xff]
        %v3409 = vld [vmem:[%s4 + $0x58] sm:$0xff]
        %v3410 = vld [vmem:[%s4 + $0x60] sm:$0xff]
        %v3411 = vld [vmem:[%s4 + $0x68] sm:$0xff]
        %v3412 = vld [vmem:[%s4 + $0x70] sm:$0xff]
        %v3413 = vld [vmem:[%s4 + $0x78] sm:$0xff]
        %v3414 = vlaneseq
        %v3415 = vshrl.u32 %v3414, 7
        %v3416 = vsub.s32 0, %v3415
        %v3417 = vrot.slane %v3394, %v3416
        %3418 = vmatprep.subr.mxu0 0.0
        %3419 = vmatpush1.msra.mxu0 %v3413
        %3420 = vmatprep.subr.mxu0 0.0
        %3421 = vmatpush1.msra.mxu0 %v3412
        %3422 = vmatprep.subr.mxu0 0.0
        %3423 = vmatpush1.msra.mxu0 %v3411
        %3424 = vmatprep.subr.mxu0 0.0
        %3425 = vmatpush1.msra.mxu0 %v3410
        %3426 = vmatprep.subr.mxu0 0.0
        %3427 = vmatpush1.msra.mxu0 %v3409
        %3428 = vmatprep.subr.mxu0 0.0
        %3429 = vmatpush1.msra.mxu0 %v3408
        %3430 = vmatprep.subr.mxu0 0.0
        %3431 = vmatpush1.msra.mxu0 %v3407
        %3432 = vmatprep.subr.mxu0 0.0
        %3433 = vmatpush1.msra.mxu0 %v3406
        %3434 = vmatprep.subr.mxu0 0.0
        %3435 = vmatpush1.msra.mxu0 %v3405
        %3436 = vmatprep.subr.mxu0 0.0
        %3437 = vmatpush1.msra.mxu0 %v3404
        %3438 = vmatprep.subr.mxu0 0.0
        %3439 = vmatpush1.msra.mxu0 %v3403
        %3440 = vmatprep.subr.mxu0 0.0
        %3441 = vmatpush1.msra.mxu0 %v3402
        %3442 = vmatprep.subr.mxu0 0.0
        %3443 = vmatpush1.msra.mxu0 %v3401
        %3444 = vmatprep.subr.mxu0 0.0
        %3445 = vmatpush1.msra.mxu0 %v3400
        %3446 = vmatprep.subr.mxu0 0.0
        %3447 = vmatpush1.msra.mxu0 %v3399
        %3448 = vmatprep.subr.mxu0 0.0
        %3449 = vmatpush1.msra.mxu0 %v3398
        %3450 = vmatprep.subr.mxu0 0.0
        %3451 = vmatpush2.msra.mxu0 0.0
        %3452 = vmatprep.subr.mxu0 0.0
        %3453 = vmatpush2.msra.mxu0 0.0
        %3454 = vmatprep.subr.mxu0 0.0
        %3455 = vmatpush2.msra.mxu0 0.0
        %3456 = vmatprep.subr.mxu0 0.0
        %3457 = vmatpush2.msra.mxu0 0.0
        %3458 = vmatprep.subr.mxu0 0.0
        %3459 = vmatpush2.msra.mxu0 0.0
        %3460 = vmatprep.subr.mxu0 0.0
        %3461 = vmatpush2.msra.mxu0 0.0
        %3462 = vmatprep.subr.mxu0 0.0
        %3463 = vmatpush2.msra.mxu0 0.0
        %3464 = vmatprep.subr.mxu0 0.0
        %3465 = vmatpush2.msra.mxu0 0.0
        %3466 = vmatprep.subr.mxu0 0.0
        %3467 = vmatpush2.msra.mxu0 0.0
        %3468 = vmatprep.subr.mxu0 0.0
        %3469 = vmatpush2.msra.mxu0 0.0
        %3470 = vmatprep.subr.mxu0 0.0
        %3471 = vmatpush2.msra.mxu0 0.0
        %3472 = vmatprep.subr.mxu0 0.0
        %3473 = vmatpush2.msra.mxu0 0.0
        %3474 = vmatprep.subr.mxu0 0.0
        %3475 = vmatpush2.msra.mxu0 0.0
        %3476 = vmatprep.subr.mxu0 0.0
        %3477 = vmatpush2.msra.mxu0 0.0
        %3478 = vmatprep.subr.mxu0 0.0
        %3479 = vmatpush2.msra.mxu0 0.0
        %3480 = vmatprep.subr.mxu0 0.0
        %3481 = vmatpush2.msra.mxu0 0.0
        %3482 = vmatprep.mubr.f32.mxu0 0.0
        %3483 = vmatmul.mubr.f32.gmra.mxu0 %v3378
        %v3484 = vpop.f32.mrf.mxu0
        %v3485 = vadd.f32 %v3417, %v3484
        %v3486 = vpop.f32.mrf.mxu0
        %3487 = vmatprep.mubr.f32.mxu0 0.0
        %3488 = vmatmul.mubr.f32.gmra.mxu0 %v3379
        %v3489 = vpop.f32.mrf.mxu0
        %v3490 = vadd.f32 %v3417, %v3489
        %v3491 = vpop.f32.mrf.mxu0
        %3492 = vmatprep.mubr.f32.mxu0 0.0
        %3493 = vmatmul.mubr.f32.gmra.mxu0 %v3380
        %v3494 = vpop.f32.mrf.mxu0
        %v3495 = vadd.f32 %v3417, %v3494
        %v3496 = vpop.f32.mrf.mxu0
        %3497 = vmatprep.mubr.f32.mxu0 0.0
        %3498 = vmatmul.mubr.f32.gmra.mxu0 %v3381
        %v3499 = vpop.f32.mrf.mxu0
        %v3500 = vadd.f32 %v3417, %v3499
        %v3501 = vpop.f32.mrf.mxu0
        %3502 = vmatprep.mubr.f32.mxu0 0.0
        %3503 = vmatmul.mubr.f32.gmra.mxu0 %v3382
        %v3504 = vpop.f32.mrf.mxu0
        %v3505 = vadd.f32 %v3417, %v3504
        %v3506 = vpop.f32.mrf.mxu0
        %3507 = vmatprep.mubr.f32.mxu0 0.0
        %3508 = vmatmul.mubr.f32.gmra.mxu0 %v3383
        %v3509 = vpop.f32.mrf.mxu0
        %v3510 = vadd.f32 %v3417, %v3509
        %v3511 = vpop.f32.mrf.mxu0
        %3512 = vmatprep.mubr.f32.mxu0 0.0
        %3513 = vmatmul.mubr.f32.gmra.mxu0 %v3384
        %v3514 = vpop.f32.mrf.mxu0
        %v3515 = vadd.f32 %v3417, %v3514
        %v3516 = vpop.f32.mrf.mxu0
        %3517 = vmatprep.mubr.f32.mxu0 0.0
        %3518 = vmatmul.mubr.f32.gmra.mxu0 %v3385
        %v3519 = vpop.f32.mrf.mxu0
        %v3520 = vadd.f32 %v3417, %v3519
        %v3521 = vpop.f32.mrf.mxu0
        %3522 = vmatprep.mubr.f32.mxu0 0.0
        %3523 = vmatmul.mubr.f32.gmra.mxu0 %v3386
        %v3524 = vpop.f32.mrf.mxu0
        %v3525 = vadd.f32 %v3417, %v3524
        %v3526 = vpop.f32.mrf.mxu0
        %3527 = vmatprep.mubr.f32.mxu0 0.0
        %3528 = vmatmul.mubr.f32.gmra.mxu0 %v3387
        %v3529 = vpop.f32.mrf.mxu0
        %v3530 = vadd.f32 %v3417, %v3529
        %v3531 = vpop.f32.mrf.mxu0
        %3532 = vmatprep.mubr.f32.mxu0 0.0
        %3533 = vmatmul.mubr.f32.gmra.mxu0 %v3388
        %v3534 = vpop.f32.mrf.mxu0
        %v3535 = vadd.f32 %v3417, %v3534
        %v3536 = vpop.f32.mrf.mxu0
        %3537 = vmatprep.mubr.f32.mxu0 0.0
        %3538 = vmatmul.mubr.f32.gmra.mxu0 %v3389
        %v3539 = vpop.f32.mrf.mxu0
        %v3540 = vadd.f32 %v3417, %v3539
        %v3541 = vpop.f32.mrf.mxu0
        %3542 = vmatprep.mubr.f32.mxu0 0.0
        %3543 = vmatmul.mubr.f32.gmra.mxu0 %v3390
        %v3544 = vpop.f32.mrf.mxu0
        %v3545 = vadd.f32 %v3417, %v3544
        %v3546 = vpop.f32.mrf.mxu0
        %3547 = vmatprep.mubr.f32.mxu0 0.0
        %3548 = vmatmul.mubr.f32.gmra.mxu0 %v3391
        %v3549 = vpop.f32.mrf.mxu0
        %v3550 = vadd.f32 %v3417, %v3549
        %v3551 = vpop.f32.mrf.mxu0
        %3552 = vmatprep.mubr.f32.mxu0 0.0
        %3553 = vmatmul.mubr.f32.gmra.mxu0 %v3392
        %v3554 = vpop.f32.mrf.mxu0
        %v3555 = vadd.f32 %v3417, %v3554
        %v3556 = vpop.f32.mrf.mxu0
        %3557 = vmatprep.mubr.f32.mxu0 0.0
        %3558 = vmatmul.mubr.f32.gmra.mxu0 %v3393
        %v3559 = vpop.f32.mrf.mxu0
        %v3560 = vadd.f32 %v3417, %v3559
        %v3561 = vpop.f32.mrf.mxu0
        %3562 = vdwg.mxu0
        %v3563 = vmax.f32 %v3485, 0.0
        %v3564 = vmax.f32 %v3490, 0.0
        %v3565 = vmax.f32 %v3495, 0.0
        %v3566 = vmax.f32 %v3500, 0.0
        %v3567 = vmax.f32 %v3505, 0.0
        %v3568 = vmax.f32 %v3510, 0.0
        %v3569 = vmax.f32 %v3515, 0.0
        %v3570 = vmax.f32 %v3520, 0.0
        %v3571 = vmax.f32 %v3525, 0.0
        %v3572 = vmax.f32 %v3530, 0.0
        %v3573 = vmax.f32 %v3535, 0.0
        %v3574 = vmax.f32 %v3540, 0.0
        %v3575 = vmax.f32 %v3545, 0.0
        %v3576 = vmax.f32 %v3550, 0.0
        %v3577 = vmax.f32 %v3555, 0.0
        %v3578 = vmax.f32 %v3560, 0.0
        %3579 = vadd.xlane.f32.xlu0 %v3563
        %v3580 = vpop.xlane.xlu0 %3579
        %3581 = vadd.xlane.f32.xlu0 %v3564
        %v3582 = vpop.xlane.xlu0 %3581
        %3583 = vadd.xlane.f32.xlu0 %v3565
        %v3584 = vpop.xlane.xlu0 %3583
        %3585 = vadd.xlane.f32.xlu0 %v3566
        %v3586 = vpop.xlane.xlu0 %3585
        %3587 = vadd.xlane.f32.xlu0 %v3567
        %v3588 = vpop.xlane.xlu0 %3587
        %3589 = vadd.xlane.f32.xlu0 %v3568
        %v3590 = vpop.xlane.xlu0 %3589
        %3591 = vadd.xlane.f32.xlu0 %v3569
        %v3592 = vpop.xlane.xlu0 %3591
        %3593 = vadd.xlane.f32.xlu0 %v3570
        %v3594 = vpop.xlane.xlu0 %3593
        %3595 = vadd.xlane.f32.xlu0 %v3571
        %v3596 = vpop.xlane.xlu0 %3595
        %3597 = vadd.xlane.f32.xlu0 %v3572
        %v3598 = vpop.xlane.xlu0 %3597
        %3599 = vadd.xlane.f32.xlu0 %v3573
        %v3600 = vpop.xlane.xlu0 %3599
        %3601 = vadd.xlane.f32.xlu0 %v3574
        %v3602 = vpop.xlane.xlu0 %3601
        %3603 = vadd.xlane.f32.xlu0 %v3575
        %v3604 = vpop.xlane.xlu0 %3603
        %3605 = vadd.xlane.f32.xlu0 %v3576
        %v3606 = vpop.xlane.xlu0 %3605
        %3607 = vadd.xlane.f32.xlu0 %v3577
        %v3608 = vpop.xlane.xlu0 %3607
        %3609 = vadd.xlane.f32.xlu0 %v3578
        %v3610 = vpop.xlane.xlu0 %3609
        %v3611 = vmul.f32 %v3580, %v789
        %v3612 = vmul.f32 %v3582, %v789
        %v3613 = vmul.f32 %v3584, %v789
        %v3614 = vmul.f32 %v3586, %v789
        %v3615 = vmul.f32 %v3588, %v789
        %v3616 = vmul.f32 %v3590, %v789
        %v3617 = vmul.f32 %v3592, %v789
        %v3618 = vmul.f32 %v3594, %v789
        %v3619 = vmul.f32 %v3596, %v789
        %v3620 = vmul.f32 %v3598, %v789
        %v3621 = vmul.f32 %v3600, %v789
        %v3622 = vmul.f32 %v3602, %v789
        %v3623 = vmul.f32 %v3604, %v789
        %v3624 = vmul.f32 %v3606, %v789
        %v3625 = vmul.f32 %v3608, %v789
        %v3626 = vmul.f32 %v3610, %v789
        %v3627 = vmul.f32 %v3563, %v3563
        %v3628 = vmul.f32 %v3564, %v3564
        %v3629 = vmul.f32 %v3565, %v3565
        %v3630 = vmul.f32 %v3566, %v3566
        %v3631 = vmul.f32 %v3567, %v3567
        %v3632 = vmul.f32 %v3568, %v3568
        %v3633 = vmul.f32 %v3569, %v3569
        %v3634 = vmul.f32 %v3570, %v3570
        %v3635 = vmul.f32 %v3571, %v3571
        %v3636 = vmul.f32 %v3572, %v3572
        %v3637 = vmul.f32 %v3573, %v3573
        %v3638 = vmul.f32 %v3574, %v3574
        %v3639 = vmul.f32 %v3575, %v3575
        %v3640 = vmul.f32 %v3576, %v3576
        %v3641 = vmul.f32 %v3577, %v3577
        %v3642 = vmul.f32 %v3578, %v3578
        %3643 = vadd.xlane.f32.xlu0 %v3627
        %v3644 = vpop.xlane.xlu0 %3643
        %3645 = vadd.xlane.f32.xlu0 %v3628
        %v3646 = vpop.xlane.xlu0 %3645
        %3647 = vadd.xlane.f32.xlu0 %v3629
        %v3648 = vpop.xlane.xlu0 %3647
        %3649 = vadd.xlane.f32.xlu0 %v3630
        %v3650 = vpop.xlane.xlu0 %3649
        %3651 = vadd.xlane.f32.xlu0 %v3631
        %v3652 = vpop.xlane.xlu0 %3651
        %3653 = vadd.xlane.f32.xlu0 %v3632
        %v3654 = vpop.xlane.xlu0 %3653
        %3655 = vadd.xlane.f32.xlu0 %v3633
        %v3656 = vpop.xlane.xlu0 %3655
        %3657 = vadd.xlane.f32.xlu0 %v3634
        %v3658 = vpop.xlane.xlu0 %3657
        %3659 = vadd.xlane.f32.xlu0 %v3635
        %v3660 = vpop.xlane.xlu0 %3659
        %3661 = vadd.xlane.f32.xlu0 %v3636
        %v3662 = vpop.xlane.xlu0 %3661
        %3663 = vadd.xlane.f32.xlu0 %v3637
        %v3664 = vpop.xlane.xlu0 %3663
        %3665 = vadd.xlane.f32.xlu0 %v3638
        %v3666 = vpop.xlane.xlu0 %3665
        %3667 = vadd.xlane.f32.xlu0 %v3639
        %v3668 = vpop.xlane.xlu0 %3667
        %3669 = vadd.xlane.f32.xlu0 %v3640
        %v3670 = vpop.xlane.xlu0 %3669
        %3671 = vadd.xlane.f32.xlu0 %v3641
        %v3672 = vpop.xlane.xlu0 %3671
        %3673 = vadd.xlane.f32.xlu0 %v3642
        %v3674 = vpop.xlane.xlu0 %3673
        %v3675 = vmul.f32 %v3644, %v789
        %v3676 = vmul.f32 %v3646, %v789
        %v3677 = vmul.f32 %v3648, %v789
        %v3678 = vmul.f32 %v3650, %v789
        %v3679 = vmul.f32 %v3652, %v789
        %v3680 = vmul.f32 %v3654, %v789
        %v3681 = vmul.f32 %v3656, %v789
        %v3682 = vmul.f32 %v3658, %v789
        %v3683 = vmul.f32 %v3660, %v789
        %v3684 = vmul.f32 %v3662, %v789
        %v3685 = vmul.f32 %v3664, %v789
        %v3686 = vmul.f32 %v3666, %v789
        %v3687 = vmul.f32 %v3668, %v789
        %v3688 = vmul.f32 %v3670, %v789
        %v3689 = vmul.f32 %v3672, %v789
        %v3690 = vmul.f32 %v3674, %v789
        %v3691 = vsub.f32 %v3563, %v3611
        %v3692 = vsub.f32 %v3564, %v3612
        %v3693 = vsub.f32 %v3565, %v3613
        %v3694 = vsub.f32 %v3566, %v3614
        %v3695 = vsub.f32 %v3567, %v3615
        %v3696 = vsub.f32 %v3568, %v3616
        %v3697 = vsub.f32 %v3569, %v3617
        %v3698 = vsub.f32 %v3570, %v3618
        %v3699 = vsub.f32 %v3571, %v3619
        %v3700 = vsub.f32 %v3572, %v3620
        %v3701 = vsub.f32 %v3573, %v3621
        %v3702 = vsub.f32 %v3574, %v3622
        %v3703 = vsub.f32 %v3575, %v3623
        %v3704 = vsub.f32 %v3576, %v3624
        %v3705 = vsub.f32 %v3577, %v3625
        %v3706 = vsub.f32 %v3578, %v3626
        %v3707 = vmul.f32 %v3611, %v3611
        %v3708 = vmul.f32 %v3612, %v3612
        %v3709 = vmul.f32 %v3613, %v3613
        %v3710 = vmul.f32 %v3614, %v3614
        %v3711 = vmul.f32 %v3615, %v3615
        %v3712 = vmul.f32 %v3616, %v3616
        %v3713 = vmul.f32 %v3617, %v3617
        %v3714 = vmul.f32 %v3618, %v3618
        %v3715 = vmul.f32 %v3619, %v3619
        %v3716 = vmul.f32 %v3620, %v3620
        %v3717 = vmul.f32 %v3621, %v3621
        %v3718 = vmul.f32 %v3622, %v3622
        %v3719 = vmul.f32 %v3623, %v3623
        %v3720 = vmul.f32 %v3624, %v3624
        %v3721 = vmul.f32 %v3625, %v3625
        %v3722 = vmul.f32 %v3626, %v3626
        %v3723 = vsub.f32 %v3675, %v3707
        %v3724 = vsub.f32 %v3676, %v3708
        %v3725 = vsub.f32 %v3677, %v3709
        %v3726 = vsub.f32 %v3678, %v3710
        %v3727 = vsub.f32 %v3679, %v3711
        %v3728 = vsub.f32 %v3680, %v3712
        %v3729 = vsub.f32 %v3681, %v3713
        %v3730 = vsub.f32 %v3682, %v3714
        %v3731 = vsub.f32 %v3683, %v3715
        %v3732 = vsub.f32 %v3684, %v3716
        %v3733 = vsub.f32 %v3685, %v3717
        %v3734 = vsub.f32 %v3686, %v3718
        %v3735 = vsub.f32 %v3687, %v3719
        %v3736 = vsub.f32 %v3688, %v3720
        %v3737 = vsub.f32 %v3689, %v3721
        %v3738 = vsub.f32 %v3690, %v3722
        %v3739 = vadd.f32 %v3723, 1e-05
        %v3740 = vadd.f32 %v3724, 1e-05
        %v3741 = vadd.f32 %v3725, 1e-05
        %v3742 = vadd.f32 %v3726, 1e-05
        %v3743 = vadd.f32 %v3727, 1e-05
        %v3744 = vadd.f32 %v3728, 1e-05
        %v3745 = vadd.f32 %v3729, 1e-05
        %v3746 = vadd.f32 %v3730, 1e-05
        %v3747 = vadd.f32 %v3731, 1e-05
        %v3748 = vadd.f32 %v3732, 1e-05
        %v3749 = vadd.f32 %v3733, 1e-05
        %v3750 = vadd.f32 %v3734, 1e-05
        %v3751 = vadd.f32 %v3735, 1e-05
        %v3752 = vadd.f32 %v3736, 1e-05
        %v3753 = vadd.f32 %v3737, 1e-05
        %v3754 = vadd.f32 %v3738, 1e-05
        %v3755 = vrsqrt.pop %v3739
        %v3756 = vrsqrt.pop %v3740
        %v3757 = vrsqrt.pop %v3741
        %v3758 = vrsqrt.pop %v3742
        %v3759 = vrsqrt.pop %v3743
        %v3760 = vrsqrt.pop %v3744
        %v3761 = vrsqrt.pop %v3745
        %v3762 = vrsqrt.pop %v3746
        %v3763 = vrsqrt.pop %v3747
        %v3764 = vrsqrt.pop %v3748
        %v3765 = vrsqrt.pop %v3749
        %v3766 = vrsqrt.pop %v3750
        %v3767 = vrsqrt.pop %v3751
        %v3768 = vrsqrt.pop %v3752
        %v3769 = vrsqrt.pop %v3753
        %v3770 = vrsqrt.pop %v3754
        %v3771 = vmul.f32 %v3691, %v3755
        %v3772 = vmul.f32 %v3692, %v3756
        %v3773 = vmul.f32 %v3693, %v3757
        %v3774 = vmul.f32 %v3694, %v3758
        %v3775 = vmul.f32 %v3695, %v3759
        %v3776 = vmul.f32 %v3696, %v3760
        %v3777 = vmul.f32 %v3697, %v3761
        %v3778 = vmul.f32 %v3698, %v3762
        %v3779 = vmul.f32 %v3699, %v3763
        %v3780 = vmul.f32 %v3700, %v3764
        %v3781 = vmul.f32 %v3701, %v3765
        %v3782 = vmul.f32 %v3702, %v3766
        %v3783 = vmul.f32 %v3703, %v3767
        %v3784 = vmul.f32 %v3704, %v3768
        %v3785 = vmul.f32 %v3705, %v3769
        %v3786 = vmul.f32 %v3706, %v3770
        %v3787 = vld [vmem:[%s5] sm:$0xff]
        %v3788 = vld [vmem:[%s5 + $0x8] sm:$0xff]
        %v3789 = vld [vmem:[%s5 + $0x10] sm:$0xff]
        %v3790 = vld [vmem:[%s5 + $0x18] sm:$0xff]
        %v3791 = vld [vmem:[%s5 + $0x20] sm:$0xff]
        %v3792 = vld [vmem:[%s5 + $0x28] sm:$0xff]
        %v3793 = vld [vmem:[%s5 + $0x30] sm:$0xff]
        %v3794 = vld [vmem:[%s5 + $0x38] sm:$0xff]
        %v3795 = vld [vmem:[%s5 + $0x40] sm:$0xff]
        %v3796 = vld [vmem:[%s5 + $0x48] sm:$0xff]
        %v3797 = vld [vmem:[%s5 + $0x50] sm:$0xff]
        %v3798 = vld [vmem:[%s5 + $0x58] sm:$0xff]
        %v3799 = vld [vmem:[%s5 + $0x60] sm:$0xff]
        %v3800 = vld [vmem:[%s5 + $0x68] sm:$0xff]
        %v3801 = vld [vmem:[%s5 + $0x70] sm:$0xff]
        %v3802 = vld [vmem:[%s5 + $0x78] sm:$0xff]
        %v3803 = vlaneseq
        %v3804 = vshrl.u32 %v3803, 7
        %v3805 = vsub.s32 0, %v3804
        %v3806 = vrot.slane %v3395, %v3805
        %3807 = vmatprep.subr.mxu0 0.0
        %3808 = vmatpush1.msra.mxu0 %v3802
        %3809 = vmatprep.subr.mxu0 0.0
        %3810 = vmatpush1.msra.mxu0 %v3801
        %3811 = vmatprep.subr.mxu0 0.0
        %3812 = vmatpush1.msra.mxu0 %v3800
        %3813 = vmatprep.subr.mxu0 0.0
        %3814 = vmatpush1.msra.mxu0 %v3799
        %3815 = vmatprep.subr.mxu0 0.0
        %3816 = vmatpush1.msra.mxu0 %v3798
        %3817 = vmatprep.subr.mxu0 0.0
        %3818 = vmatpush1.msra.mxu0 %v3797
        %3819 = vmatprep.subr.mxu0 0.0
        %3820 = vmatpush1.msra.mxu0 %v3796
        %3821 = vmatprep.subr.mxu0 0.0
        %3822 = vmatpush1.msra.mxu0 %v3795
        %3823 = vmatprep.subr.mxu0 0.0
        %3824 = vmatpush1.msra.mxu0 %v3794
        %3825 = vmatprep.subr.mxu0 0.0
        %3826 = vmatpush1.msra.mxu0 %v3793
        %3827 = vmatprep.subr.mxu0 0.0
        %3828 = vmatpush1.msra.mxu0 %v3792
        %3829 = vmatprep.subr.mxu0 0.0
        %3830 = vmatpush1.msra.mxu0 %v3791
        %3831 = vmatprep.subr.mxu0 0.0
        %3832 = vmatpush1.msra.mxu0 %v3790
        %3833 = vmatprep.subr.mxu0 0.0
        %3834 = vmatpush1.msra.mxu0 %v3789
        %3835 = vmatprep.subr.mxu0 0.0
        %3836 = vmatpush1.msra.mxu0 %v3788
        %3837 = vmatprep.subr.mxu0 0.0
        %3838 = vmatpush1.msra.mxu0 %v3787
        %3839 = vmatprep.subr.mxu0 0.0
        %3840 = vmatpush2.msra.mxu0 0.0
        %3841 = vmatprep.subr.mxu0 0.0
        %3842 = vmatpush2.msra.mxu0 0.0
        %3843 = vmatprep.subr.mxu0 0.0
        %3844 = vmatpush2.msra.mxu0 0.0
        %3845 = vmatprep.subr.mxu0 0.0
        %3846 = vmatpush2.msra.mxu0 0.0
        %3847 = vmatprep.subr.mxu0 0.0
        %3848 = vmatpush2.msra.mxu0 0.0
        %3849 = vmatprep.subr.mxu0 0.0
        %3850 = vmatpush2.msra.mxu0 0.0
        %3851 = vmatprep.subr.mxu0 0.0
        %3852 = vmatpush2.msra.mxu0 0.0
        %3853 = vmatprep.subr.mxu0 0.0
        %3854 = vmatpush2.msra.mxu0 0.0
        %3855 = vmatprep.subr.mxu0 0.0
        %3856 = vmatpush2.msra.mxu0 0.0
        %3857 = vmatprep.subr.mxu0 0.0
        %3858 = vmatpush2.msra.mxu0 0.0
        %3859 = vmatprep.subr.mxu0 0.0
        %3860 = vmatpush2.msra.mxu0 0.0
        %3861 = vmatprep.subr.mxu0 0.0
        %3862 = vmatpush2.msra.mxu0 0.0
        %3863 = vmatprep.subr.mxu0 0.0
        %3864 = vmatpush2.msra.mxu0 0.0
        %3865 = vmatprep.subr.mxu0 0.0
        %3866 = vmatpush2.msra.mxu0 0.0
        %3867 = vmatprep.subr.mxu0 0.0
        %3868 = vmatpush2.msra.mxu0 0.0
        %3869 = vmatprep.subr.mxu0 0.0
        %3870 = vmatpush2.msra.mxu0 0.0
        %3871 = vmatprep.mubr.f32.mxu0 0.0
        %3872 = vmatmul.mubr.f32.gmra.mxu0 %v3771
        %v3873 = vpop.f32.mrf.mxu0
        %v3874 = vadd.f32 %v3806, %v3873
        %v3875 = vpop.f32.mrf.mxu0
        %3876 = vmatprep.mubr.f32.mxu0 0.0
        %3877 = vmatmul.mubr.f32.gmra.mxu0 %v3772
        %v3878 = vpop.f32.mrf.mxu0
        %v3879 = vadd.f32 %v3806, %v3878
        %v3880 = vpop.f32.mrf.mxu0
        %3881 = vmatprep.mubr.f32.mxu0 0.0
        %3882 = vmatmul.mubr.f32.gmra.mxu0 %v3773
        %v3883 = vpop.f32.mrf.mxu0
        %v3884 = vadd.f32 %v3806, %v3883
        %v3885 = vpop.f32.mrf.mxu0
        %3886 = vmatprep.mubr.f32.mxu0 0.0
        %3887 = vmatmul.mubr.f32.gmra.mxu0 %v3774
        %v3888 = vpop.f32.mrf.mxu0
        %v3889 = vadd.f32 %v3806, %v3888
        %v3890 = vpop.f32.mrf.mxu0
        %3891 = vmatprep.mubr.f32.mxu0 0.0
        %3892 = vmatmul.mubr.f32.gmra.mxu0 %v3775
        %v3893 = vpop.f32.mrf.mxu0
        %v3894 = vadd.f32 %v3806, %v3893
        %v3895 = vpop.f32.mrf.mxu0
        %3896 = vmatprep.mubr.f32.mxu0 0.0
        %3897 = vmatmul.mubr.f32.gmra.mxu0 %v3776
        %v3898 = vpop.f32.mrf.mxu0
        %v3899 = vadd.f32 %v3806, %v3898
        %v3900 = vpop.f32.mrf.mxu0
        %3901 = vmatprep.mubr.f32.mxu0 0.0
        %3902 = vmatmul.mubr.f32.gmra.mxu0 %v3777
        %v3903 = vpop.f32.mrf.mxu0
        %v3904 = vadd.f32 %v3806, %v3903
        %v3905 = vpop.f32.mrf.mxu0
        %3906 = vmatprep.mubr.f32.mxu0 0.0
        %3907 = vmatmul.mubr.f32.gmra.mxu0 %v3778
        %v3908 = vpop.f32.mrf.mxu0
        %v3909 = vadd.f32 %v3806, %v3908
        %v3910 = vpop.f32.mrf.mxu0
        %3911 = vmatprep.mubr.f32.mxu0 0.0
        %3912 = vmatmul.mubr.f32.gmra.mxu0 %v3779
        %v3913 = vpop.f32.mrf.mxu0
        %v3914 = vadd.f32 %v3806, %v3913
        %v3915 = vpop.f32.mrf.mxu0
        %3916 = vmatprep.mubr.f32.mxu0 0.0
        %3917 = vmatmul.mubr.f32.gmra.mxu0 %v3780
        %v3918 = vpop.f32.mrf.mxu0
        %v3919 = vadd.f32 %v3806, %v3918
        %v3920 = vpop.f32.mrf.mxu0
        %3921 = vmatprep.mubr.f32.mxu0 0.0
        %3922 = vmatmul.mubr.f32.gmra.mxu0 %v3781
        %v3923 = vpop.f32.mrf.mxu0
        %v3924 = vadd.f32 %v3806, %v3923
        %v3925 = vpop.f32.mrf.mxu0
        %3926 = vmatprep.mubr.f32.mxu0 0.0
        %3927 = vmatmul.mubr.f32.gmra.mxu0 %v3782
        %v3928 = vpop.f32.mrf.mxu0
        %v3929 = vadd.f32 %v3806, %v3928
        %v3930 = vpop.f32.mrf.mxu0
        %3931 = vmatprep.mubr.f32.mxu0 0.0
        %3932 = vmatmul.mubr.f32.gmra.mxu0 %v3783
        %v3933 = vpop.f32.mrf.mxu0
        %v3934 = vadd.f32 %v3806, %v3933
        %v3935 = vpop.f32.mrf.mxu0
        %3936 = vmatprep.mubr.f32.mxu0 0.0
        %3937 = vmatmul.mubr.f32.gmra.mxu0 %v3784
        %v3938 = vpop.f32.mrf.mxu0
        %v3939 = vadd.f32 %v3806, %v3938
        %v3940 = vpop.f32.mrf.mxu0
        %3941 = vmatprep.mubr.f32.mxu0 0.0
        %3942 = vmatmul.mubr.f32.gmra.mxu0 %v3785
        %v3943 = vpop.f32.mrf.mxu0
        %v3944 = vadd.f32 %v3806, %v3943
        %v3945 = vpop.f32.mrf.mxu0
        %3946 = vmatprep.mubr.f32.mxu0 0.0
        %3947 = vmatmul.mubr.f32.gmra.mxu0 %v3786
        %v3948 = vpop.f32.mrf.mxu0
        %v3949 = vadd.f32 %v3806, %v3948
        %v3950 = vpop.f32.mrf.mxu0
        %3951 = vdwg.mxu0
        %v3952 = vmax.f32 %v3874, 0.0
        %v3953 = vmax.f32 %v3879, 0.0
        %v3954 = vmax.f32 %v3884, 0.0
        %v3955 = vmax.f32 %v3889, 0.0
        %v3956 = vmax.f32 %v3894, 0.0
        %v3957 = vmax.f32 %v3899, 0.0
        %v3958 = vmax.f32 %v3904, 0.0
        %v3959 = vmax.f32 %v3909, 0.0
        %v3960 = vmax.f32 %v3914, 0.0
        %v3961 = vmax.f32 %v3919, 0.0
        %v3962 = vmax.f32 %v3924, 0.0
        %v3963 = vmax.f32 %v3929, 0.0
        %v3964 = vmax.f32 %v3934, 0.0
        %v3965 = vmax.f32 %v3939, 0.0
        %v3966 = vmax.f32 %v3944, 0.0
        %v3967 = vmax.f32 %v3949, 0.0
        %3968 = vadd.xlane.f32.xlu0 %v3952
        %v3969 = vpop.xlane.xlu0 %3968
        %3970 = vadd.xlane.f32.xlu0 %v3953
        %v3971 = vpop.xlane.xlu0 %3970
        %3972 = vadd.xlane.f32.xlu0 %v3954
        %v3973 = vpop.xlane.xlu0 %3972
        %3974 = vadd.xlane.f32.xlu0 %v3955
        %v3975 = vpop.xlane.xlu0 %3974
        %3976 = vadd.xlane.f32.xlu0 %v3956
        %v3977 = vpop.xlane.xlu0 %3976
        %3978 = vadd.xlane.f32.xlu0 %v3957
        %v3979 = vpop.xlane.xlu0 %3978
        %3980 = vadd.xlane.f32.xlu0 %v3958
        %v3981 = vpop.xlane.xlu0 %3980
        %3982 = vadd.xlane.f32.xlu0 %v3959
        %v3983 = vpop.xlane.xlu0 %3982
        %3984 = vadd.xlane.f32.xlu0 %v3960
        %v3985 = vpop.xlane.xlu0 %3984
        %3986 = vadd.xlane.f32.xlu0 %v3961
        %v3987 = vpop.xlane.xlu0 %3986
        %3988 = vadd.xlane.f32.xlu0 %v3962
        %v3989 = vpop.xlane.xlu0 %3988
        %3990 = vadd.xlane.f32.xlu0 %v3963
        %v3991 = vpop.xlane.xlu0 %3990
        %3992 = vadd.xlane.f32.xlu0 %v3964
        %v3993 = vpop.xlane.xlu0 %3992
        %3994 = vadd.xlane.f32.xlu0 %v3965
        %v3995 = vpop.xlane.xlu0 %3994
        %3996 = vadd.xlane.f32.xlu0 %v3966
        %v3997 = vpop.xlane.xlu0 %3996
        %3998 = vadd.xlane.f32.xlu0 %v3967
        %v3999 = vpop.xlane.xlu0 %3998
        %v4000 = vmul.f32 %v3969, %v789
        %v4001 = vmul.f32 %v3971, %v789
        %v4002 = vmul.f32 %v3973, %v789
        %v4003 = vmul.f32 %v3975, %v789
        %v4004 = vmul.f32 %v3977, %v789
        %v4005 = vmul.f32 %v3979, %v789
        %v4006 = vmul.f32 %v3981, %v789
        %v4007 = vmul.f32 %v3983, %v789
        %v4008 = vmul.f32 %v3985, %v789
        %v4009 = vmul.f32 %v3987, %v789
        %v4010 = vmul.f32 %v3989, %v789
        %v4011 = vmul.f32 %v3991, %v789
        %v4012 = vmul.f32 %v3993, %v789
        %v4013 = vmul.f32 %v3995, %v789
        %v4014 = vmul.f32 %v3997, %v789
        %v4015 = vmul.f32 %v3999, %v789
        %v4016 = vmul.f32 %v3952, %v3952
        %v4017 = vmul.f32 %v3953, %v3953
        %v4018 = vmul.f32 %v3954, %v3954
        %v4019 = vmul.f32 %v3955, %v3955
        %v4020 = vmul.f32 %v3956, %v3956
        %v4021 = vmul.f32 %v3957, %v3957
        %v4022 = vmul.f32 %v3958, %v3958
        %v4023 = vmul.f32 %v3959, %v3959
        %v4024 = vmul.f32 %v3960, %v3960
        %v4025 = vmul.f32 %v3961, %v3961
        %v4026 = vmul.f32 %v3962, %v3962
        %v4027 = vmul.f32 %v3963, %v3963
        %v4028 = vmul.f32 %v3964, %v3964
        %v4029 = vmul.f32 %v3965, %v3965
        %v4030 = vmul.f32 %v3966, %v3966
        %v4031 = vmul.f32 %v3967, %v3967
        %4032 = vadd.xlane.f32.xlu0 %v4016
        %v4033 = vpop.xlane.xlu0 %4032
        %4034 = vadd.xlane.f32.xlu0 %v4017
        %v4035 = vpop.xlane.xlu0 %4034
        %4036 = vadd.xlane.f32.xlu0 %v4018
        %v4037 = vpop.xlane.xlu0 %4036
        %4038 = vadd.xlane.f32.xlu0 %v4019
        %v4039 = vpop.xlane.xlu0 %4038
        %4040 = vadd.xlane.f32.xlu0 %v4020
        %v4041 = vpop.xlane.xlu0 %4040
        %4042 = vadd.xlane.f32.xlu0 %v4021
        %v4043 = vpop.xlane.xlu0 %4042
        %4044 = vadd.xlane.f32.xlu0 %v4022
        %v4045 = vpop.xlane.xlu0 %4044
        %4046 = vadd.xlane.f32.xlu0 %v4023
        %v4047 = vpop.xlane.xlu0 %4046
        %4048 = vadd.xlane.f32.xlu0 %v4024
        %v4049 = vpop.xlane.xlu0 %4048
        %4050 = vadd.xlane.f32.xlu0 %v4025
        %v4051 = vpop.xlane.xlu0 %4050
        %4052 = vadd.xlane.f32.xlu0 %v4026
        %v4053 = vpop.xlane.xlu0 %4052
        %4054 = vadd.xlane.f32.xlu0 %v4027
        %v4055 = vpop.xlane.xlu0 %4054
        %4056 = vadd.xlane.f32.xlu0 %v4028
        %v4057 = vpop.xlane.xlu0 %4056
        %4058 = vadd.xlane.f32.xlu0 %v4029
        %v4059 = vpop.xlane.xlu0 %4058
        %4060 = vadd.xlane.f32.xlu0 %v4030
        %v4061 = vpop.xlane.xlu0 %4060
        %4062 = vadd.xlane.f32.xlu0 %v4031
        %v4063 = vpop.xlane.xlu0 %4062
        %v4064 = vmul.f32 %v4033, %v789
        %v4065 = vmul.f32 %v4035, %v789
        %v4066 = vmul.f32 %v4037, %v789
        %v4067 = vmul.f32 %v4039, %v789
        %v4068 = vmul.f32 %v4041, %v789
        %v4069 = vmul.f32 %v4043, %v789
        %v4070 = vmul.f32 %v4045, %v789
        %v4071 = vmul.f32 %v4047, %v789
        %v4072 = vmul.f32 %v4049, %v789
        %v4073 = vmul.f32 %v4051, %v789
        %v4074 = vmul.f32 %v4053, %v789
        %v4075 = vmul.f32 %v4055, %v789
        %v4076 = vmul.f32 %v4057, %v789
        %v4077 = vmul.f32 %v4059, %v789
        %v4078 = vmul.f32 %v4061, %v789
        %v4079 = vmul.f32 %v4063, %v789
        %v4080 = vsub.f32 %v3952, %v4000
        %v4081 = vsub.f32 %v3953, %v4001
        %v4082 = vsub.f32 %v3954, %v4002
        %v4083 = vsub.f32 %v3955, %v4003
        %v4084 = vsub.f32 %v3956, %v4004
        %v4085 = vsub.f32 %v3957, %v4005
        %v4086 = vsub.f32 %v3958, %v4006
        %v4087 = vsub.f32 %v3959, %v4007
        %v4088 = vsub.f32 %v3960, %v4008
        %v4089 = vsub.f32 %v3961, %v4009
        %v4090 = vsub.f32 %v3962, %v4010
        %v4091 = vsub.f32 %v3963, %v4011
        %v4092 = vsub.f32 %v3964, %v4012
        %v4093 = vsub.f32 %v3965, %v4013
        %v4094 = vsub.f32 %v3966, %v4014
        %v4095 = vsub.f32 %v3967, %v4015
        %v4096 = vmul.f32 %v4000, %v4000
        %v4097 = vmul.f32 %v4001, %v4001
        %v4098 = vmul.f32 %v4002, %v4002
        %v4099 = vmul.f32 %v4003, %v4003
        %v4100 = vmul.f32 %v4004, %v4004
        %v4101 = vmul.f32 %v4005, %v4005
        %v4102 = vmul.f32 %v4006, %v4006
        %v4103 = vmul.f32 %v4007, %v4007
        %v4104 = vmul.f32 %v4008, %v4008
        %v4105 = vmul.f32 %v4009, %v4009
        %v4106 = vmul.f32 %v4010, %v4010
        %v4107 = vmul.f32 %v4011, %v4011
        %v4108 = vmul.f32 %v4012, %v4012
        %v4109 = vmul.f32 %v4013, %v4013
        %v4110 = vmul.f32 %v4014, %v4014
        %v4111 = vmul.f32 %v4015, %v4015
        %v4112 = vsub.f32 %v4064, %v4096
        %v4113 = vsub.f32 %v4065, %v4097
        %v4114 = vsub.f32 %v4066, %v4098
        %v4115 = vsub.f32 %v4067, %v4099
        %v4116 = vsub.f32 %v4068, %v4100
        %v4117 = vsub.f32 %v4069, %v4101
        %v4118 = vsub.f32 %v4070, %v4102
        %v4119 = vsub.f32 %v4071, %v4103
        %v4120 = vsub.f32 %v4072, %v4104
        %v4121 = vsub.f32 %v4073, %v4105
        %v4122 = vsub.f32 %v4074, %v4106
        %v4123 = vsub.f32 %v4075, %v4107
        %v4124 = vsub.f32 %v4076, %v4108
        %v4125 = vsub.f32 %v4077, %v4109
        %v4126 = vsub.f32 %v4078, %v4110
        %v4127 = vsub.f32 %v4079, %v4111
        %v4128 = vadd.f32 %v4112, 1e-05
        %v4129 = vadd.f32 %v4113, 1e-05
        %v4130 = vadd.f32 %v4114, 1e-05
        %v4131 = vadd.f32 %v4115, 1e-05
        %v4132 = vadd.f32 %v4116, 1e-05
        %v4133 = vadd.f32 %v4117, 1e-05
        %v4134 = vadd.f32 %v4118, 1e-05
        %v4135 = vadd.f32 %v4119, 1e-05
        %v4136 = vadd.f32 %v4120, 1e-05
        %v4137 = vadd.f32 %v4121, 1e-05
        %v4138 = vadd.f32 %v4122, 1e-05
        %v4139 = vadd.f32 %v4123, 1e-05
        %v4140 = vadd.f32 %v4124, 1e-05
        %v4141 = vadd.f32 %v4125, 1e-05
        %v4142 = vadd.f32 %v4126, 1e-05
        %v4143 = vadd.f32 %v4127, 1e-05
        %v4144 = vrsqrt.pop %v4128
        %v4145 = vrsqrt.pop %v4129
        %v4146 = vrsqrt.pop %v4130
        %v4147 = vrsqrt.pop %v4131
        %v4148 = vrsqrt.pop %v4132
        %v4149 = vrsqrt.pop %v4133
        %v4150 = vrsqrt.pop %v4134
        %v4151 = vrsqrt.pop %v4135
        %v4152 = vrsqrt.pop %v4136
        %v4153 = vrsqrt.pop %v4137
        %v4154 = vrsqrt.pop %v4138
        %v4155 = vrsqrt.pop %v4139
        %v4156 = vrsqrt.pop %v4140
        %v4157 = vrsqrt.pop %v4141
        %v4158 = vrsqrt.pop %v4142
        %v4159 = vrsqrt.pop %v4143
        %v4160 = vmul.f32 %v4080, %v4144
        %v4161 = vmul.f32 %v4081, %v4145
        %v4162 = vmul.f32 %v4082, %v4146
        %v4163 = vmul.f32 %v4083, %v4147
        %v4164 = vmul.f32 %v4084, %v4148
        %v4165 = vmul.f32 %v4085, %v4149
        %v4166 = vmul.f32 %v4086, %v4150
        %v4167 = vmul.f32 %v4087, %v4151
        %v4168 = vmul.f32 %v4088, %v4152
        %v4169 = vmul.f32 %v4089, %v4153
        %v4170 = vmul.f32 %v4090, %v4154
        %v4171 = vmul.f32 %v4091, %v4155
        %v4172 = vmul.f32 %v4092, %v4156
        %v4173 = vmul.f32 %v4093, %v4157
        %v4174 = vmul.f32 %v4094, %v4158
        %v4175 = vmul.f32 %v4095, %v4159
        %v4176 = vlaneseq
        %v4177 = vshrl.u32 %v4176, 7
        %v4178 = vsub.s32 0, %v4177
        %v4179 = vrot.slane %v3396, %v4178
        %v4180 = vmul.f32 %v4160, %v4179
        %v4181 = vmul.f32 %v4161, %v4179
        %v4182 = vmul.f32 %v4162, %v4179
        %v4183 = vmul.f32 %v4163, %v4179
        %v4184 = vmul.f32 %v4164, %v4179
        %v4185 = vmul.f32 %v4165, %v4179
        %v4186 = vmul.f32 %v4166, %v4179
        %v4187 = vmul.f32 %v4167, %v4179
        %v4188 = vmul.f32 %v4168, %v4179
        %v4189 = vmul.f32 %v4169, %v4179
        %v4190 = vmul.f32 %v4170, %v4179
        %v4191 = vmul.f32 %v4171, %v4179
        %v4192 = vmul.f32 %v4172, %v4179
        %v4193 = vmul.f32 %v4173, %v4179
        %v4194 = vmul.f32 %v4174, %v4179
        %v4195 = vmul.f32 %v4175, %v4179
        %v4196 = vlaneseq
        %v4197 = vshrl.u32 %v4196, 7
        %v4198 = vsub.s32 0, %v4197
        %v4199 = vrot.slane %v3397, %v4198
        %v4200 = vadd.f32 %v4180, %v4199
        %v4201 = vadd.f32 %v4181, %v4199
        %v4202 = vadd.f32 %v4182, %v4199
        %v4203 = vadd.f32 %v4183, %v4199
        %v4204 = vadd.f32 %v4184, %v4199
        %v4205 = vadd.f32 %v4185, %v4199
        %v4206 = vadd.f32 %v4186, %v4199
        %v4207 = vadd.f32 %v4187, %v4199
        %v4208 = vadd.f32 %v4188, %v4199
        %v4209 = vadd.f32 %v4189, %v4199
        %v4210 = vadd.f32 %v4190, %v4199
        %v4211 = vadd.f32 %v4191, %v4199
        %v4212 = vadd.f32 %v4192, %v4199
        %v4213 = vadd.f32 %v4193, %v4199
        %v4214 = vadd.f32 %v4194, %v4199
        %v4215 = vadd.f32 %v4195, %v4199
        %4216 = vst [vmem:[%s302] sm:$0xff] %v4200
        %4217 = vst [vmem:[%s302 + $0x8] sm:$0xff] %v4201
        %4218 = vst [vmem:[%s302 + $0x10] sm:$0xff] %v4202
        %4219 = vst [vmem:[%s302 + $0x18] sm:$0xff] %v4203
        %4220 = vst [vmem:[%s302 + $0x20] sm:$0xff] %v4204
        %4221 = vst [vmem:[%s302 + $0x28] sm:$0xff] %v4205
        %4222 = vst [vmem:[%s302 + $0x30] sm:$0xff] %v4206
        %4223 = vst [vmem:[%s302 + $0x38] sm:$0xff] %v4207
        %4224 = vst [vmem:[%s302 + $0x40] sm:$0xff] %v4208
        %4225 = vst [vmem:[%s302 + $0x48] sm:$0xff] %v4209
        %4226 = vst [vmem:[%s302 + $0x50] sm:$0xff] %v4210
        %4227 = vst [vmem:[%s302 + $0x58] sm:$0xff] %v4211
        %4228 = vst [vmem:[%s302 + $0x60] sm:$0xff] %v4212
        %4229 = vst [vmem:[%s302 + $0x68] sm:$0xff] %v4213
        %4230 = vst [vmem:[%s302 + $0x70] sm:$0xff] %v4214
        %4231 = vst [vmem:[%s302 + $0x78] sm:$0xff] %v4215
        %s4232 = sand.u32 %s183, 1
        %s4233 = scalar_lea.sflag [#allocation4], %s4232
        %s4234 = sand.u32 %s183, 1
        %s4235 = smul.addr %s4234, 128
        %s4236 = scalar_lea.vmem [#allocation7], %s4235
        // Predicated region
        $region57: #{tpu_custom_call.1} parent=47 // pred_check
          %p4237 = pneg %p193
        $region58: #{tpu_custom_call.1} parent=47 // pred_check_branch
          %4239 = sbr.rel (%p4237) target = $region60
        $region59: #{tpu_custom_call.1} parent=47 // pred_region
          %s4240 = smul.u32 16, %s23
          %s4242 = ssub.s32 2048, 2048
          %4243 = vsyncadd %s4233, %s4242
          %s4244 = smul.addr %s4240, 128
          %s4245 = scalar_lea.hbm %s7, %s4244
          %s4246 = sshll.u32 %s4236, 4
          %s4247 = int_to_ptr.vmem [resolvable:$true] %s4246
          %4252 = dma.vmem_to_hbm [thread:$0]  %s4247, 2048, %s4245, %s4233, 128, 128, 8
        $region60: #{tpu_custom_call.1} parent=47 // pred_fallthru
          _
      $region48: #{tpu_custom_call.1} parent=5 // pred_fallthru
        _
      %p4253 = scmp.le.s32.totalorder 2, %s18
      // Predicated region
      $region61: #{tpu_custom_call.1} parent=5 // pred_check
        %p4254 = pneg %p4253
      $region62: #{tpu_custom_call.1} parent=5 // pred_check_branch
        %4256 = sbr.rel (%p4254) target = $region64
      $region63: #{tpu_custom_call.1} parent=5 // pred_region
        %s4257 = ssub.s32 %s18, 2
        // Predicated region
        $region65: #{tpu_custom_call.1} parent=63 // pred_check
          %p4258 = pneg %p199
        $region66: #{tpu_custom_call.1} parent=63 // pred_check_branch
          %4260 = sbr.rel (%p4258) target = $region68
        $region67: #{tpu_custom_call.1} parent=63 // pred_region
          %s4261 = sand.u32 %s184, 1
          %s4262 = scalar_lea.sflag [#allocation4], %s4261
          %s4263 = sand.u32 %s184, 1
          %s4264 = smul.addr %s4263, 128
          %s4265 = scalar_lea.vmem [#allocation7], %s4264
          %4266 = dma.done %s4262, 2048
        $region68: #{tpu_custom_call.1} parent=63 // pred_fallthru
          _
      $region64: #{tpu_custom_call.1} parent=5 // pred_fallthru
        _
    $region6: #{tpu_custom_call.1} parent=1 // loop_footer
      %s22 = sadd.s32 1, %s18
    $region7: #{tpu_custom_call.1} parent=1 // loop_footer_branch
      %17 = sbr.rel target = $region3
    $region8: #{tpu_custom_call.1} parent=1 // loop_exit
      _
    %4267 = vsyncpa [#allocation3], 1
    %s4268 = scalar_lea.sflag [#allocation3], 1
    %4269 = vsyncpa %s4268, 1
    %4270 = vsyncpa [#allocation6], 1
    %4271 = vsyncpa [#allocation4], 1
    %s4272 = scalar_lea.sflag [#allocation4], 1
    %4273 = vsyncpa %s4272, 1

</llo_original>
